<compile_context>
chip_gen: v7x
topology: tpu7x:2x2x1
jax: 0.10.0
libtpu: 0.0.40
codegen_flags: <defaults>
</compile_context>

<pallas_src>
import jax
import jax.numpy as jnp
import numpy as np
from jax.experimental import pallas as pl
from jax.experimental.pallas import tpu as pltpu


def decoder_kernel(enc_ref, y_ref, attn_ref, gates_ref, final_ref, out_ref):
    enc = enc_ref[...]                              # (B, W, E)
    B, W, E = enc.shape
    G = gates_ref.shape[1]                          # 4*D
    D = G // 4

    # ---- static slab views (loaded once, zero-cost slicing) -----------------
    w1hc = attn_ref[0:2 * D, :]                     # (2D, E) hidden|cell half
    w1e = attn_ref[2 * D:2 * D + E, :]              # (E, E)  encoder half
    b1 = attn_ref[2 * D + E:2 * D + E + 1, :]       # (1, E)
    w2_row = attn_ref[2 * D + E + 1:2 * D + E + 2, :]   # (1, E)
    w_gates = gates_ref[...]                        # (E+D+F+1, 4D)
    wff = final_ref[0:D + E, :]                     # (D+E, F)
    bff = final_ref[D + E:D + E + 1, :]             # (1, F)

    # ---- step-invariant prologue (off the recurrence dependency chain) ------
    # encoder contribution of attn_layer[0] + its bias, hoisted out of the loop
    pre_e = (jnp.dot(enc.reshape(B * W, E), w1e,
                     preferred_element_type=jnp.float32)
             + b1).reshape(B, W, E)                 # (B, W, E)
    # y_history augmented with a constant-1 column so the LSTM-gate bias is
    # accumulated inside the single fused per-step matmul.
    aug = jnp.concatenate(
        [y_ref[...], jnp.ones((B, W, 1), jnp.float32)], axis=2)   # (B, W, F+1)

    hidden = jnp.zeros((B, D), jnp.float32)
    cell = jnp.zeros((B, D), jnp.float32)
    context = jnp.zeros((B, E), jnp.float32)

    # Static trip count -> fully unrolled single basic block; per-step indices
    # are compile-time constants (static slices only).
    for t in range(W):
        # attn_layer[0] on the recurrent half: one MXU op (b1 already in pre_e)
        hc = jnp.dot(jnp.concatenate([hidden, cell], axis=1), w1hc,
                     preferred_element_type=jnp.float32)          # (B, E)
        z = jnp.tanh(pre_e + hc[:, None, :])                      # (B, W, E)

        # attn_layer[2] (E -> 1): VPU multiply + lane reduce, sublane-major.
        # b2 dropped: softmax over the window is shift invariant.
        scores = jnp.sum(z * w2_row, axis=-1, keepdims=True)      # (B, W, 1)

        # softmax over the window axis, kept in (B, W, 1) layout so alpha never
        # needs a lane<->sublane relayout before the context reduction.
        m = jnp.max(scores, axis=1, keepdims=True)
        ex = jnp.exp(scores - m)
        denom = jnp.sum(ex, axis=1, keepdims=True)
        r = pl.reciprocal(denom, approx=True)
        r = r * (2.0 - denom * r)       # one Newton step -> full f32 accuracy
        alpha = ex * r                                            # (B, W, 1)

        # context = bmm(alpha, input_encoded)
        context = jnp.sum(alpha * enc, axis=1)                    # (B, E)

        # fc + LSTM input/hidden matmuls fused into ONE MXU op:
        #   [context | hidden | y_hist[t] | 1] @ [Wc'; Whh; Wy'; b']
        gin = jnp.concatenate([context, hidden, aug[:, t]], axis=1)
        gates = jnp.dot(gin, w_gates,
                        preferred_element_type=jnp.float32)       # (B, 4D)

        # PyTorch gate order i, f, g, o. One sigmoid over the full 4D vreg.
        sg = jax.nn.sigmoid(gates)
        i = sg[:, 0:D]
        f = sg[:, D:2 * D]
        o = sg[:, 3 * D:4 * D]
        g = jnp.tanh(gates[:, 2 * D:3 * D])
        cell = f * cell + i * g
        hidden = o * jnp.tanh(cell)

    # fc_final(cat(hidden[0], context)) as a single matmul.
    final_in = jnp.concatenate([hidden, context], axis=1)         # (B, D+E)
    out_ref[...] = (jnp.dot(final_in, wff,
                            preferred_element_type=jnp.float32) + bff)


def decoder_forward(input_encoded, y_history, params):
    B, W, E = input_encoded.shape
    F = y_history.shape[2]
    vmem = pl.BlockSpec(memory_space=pltpu.MemorySpace.VMEM)
    args = (input_encoded, y_history,
            params["attn_slab"], params["gates_slab"], params["final_slab"])
    return pl.pallas_call(
        decoder_kernel,
        out_shape=jax.ShapeDtypeStruct((B, F), jnp.float32),
        in_specs=[vmem] * len(args),
        out_specs=vmem,
    )(*args)


def init_raw_params(key, E, D, F):
    """Deterministic synthetic parameters in the original PyTorch layout."""
    ks = jax.random.split(key, 12)

    def w(k, shape, scale=0.1):
        return scale * jax.random.normal(k, shape, jnp.float32)

    return dict(
        attn_w1=w(ks[0], (E, 2 * D + E)),      # attn_layer[0].weight
        attn_b1=w(ks[1], (E,)),                # attn_layer[0].bias
        attn_w2=w(ks[2], (1, E)),              # attn_layer[2].weight
        attn_b2=w(ks[3], (1,)),                # attn_layer[2].bias
        fc_w=jax.random.normal(ks[4], (F, E + F), jnp.float32),  # fc.weight.data.normal_()
        fc_b=w(ks[5], (F,)),
        w_ih=w(ks[6], (4 * D, F)),             # lstm.weight_ih_l0
        w_hh=w(ks[7], (4 * D, D)),             # lstm.weight_hh_l0
        b_ih=w(ks[8], (4 * D,)),
        b_hh=w(ks[9], (4 * D,)),
        ff_w=w(ks[10], (F, D + E)),            # fc_final.weight
        ff_b=w(ks[11], (F,)),
    )


def kernel_params(raw, E, D, F):
    """Transpose / algebraically precompose / slab-pack weights for the kernel.

    fc is folded into the LSTM gate matmul:
        Wc' = wfc_c @ wih, Wy' = wfc_y @ wih, b' = bfc @ wih + b_ih + b_hh
    and the gate matrix rows are stacked so one matmul per step does it all.
    b2 of attn_layer[2] is dropped (softmax shift invariance).
    """
    wih = raw["w_ih"].T                        # (F, 4D)
    wfc_c = raw["fc_w"][:, :E].T               # (E, F)
    wfc_y = raw["fc_w"][:, E:].T               # (F, F)
    wc_gates = wfc_c @ wih                     # (E, 4D)
    wy_gates = wfc_y @ wih                     # (F, 4D)
    whh = raw["w_hh"].T                        # (D, 4D)
    bgates = raw["fc_b"] @ wih + raw["b_ih"] + raw["b_hh"]        # (4D,)

    attn_slab = jnp.concatenate([
        raw["attn_w1"][:, :2 * D].T,           # (2D, E) hidden|cell halves fused
        raw["attn_w1"][:, 2 * D:].T,           # (E, E)  encoder half (hoisted)
        raw["attn_b1"][None, :],               # (1, E)
        raw["attn_w2"],                        # (1, E)  row for VPU reduce
    ], axis=0)                                 # (2D+E+2, E)

    gates_slab = jnp.concatenate([
        wc_gates,                              # rows 0:E        (context)
        whh,                                   # rows E:E+D      (hidden)
        wy_gates,                              # rows E+D:E+D+F  (y_history)
        bgates[None, :],                       # last row        (bias, * 1.0)
    ], axis=0)                                 # (E+D+F+1, 4D)

    final_slab = jnp.concatenate([
        raw["ff_w"].T,                         # (D+E, F)
        raw["ff_b"][None, :],                  # (1, F)
    ], axis=0)                                 # (D+E+1, F)

    return dict(attn_slab=attn_slab, gates_slab=gates_slab,
                final_slab=final_slab)


def decoder_reference(input_encoded, y_history, raw):
    """Pure-JAX replica of the PyTorch forward (raw weight layout)."""
    B, W, E = input_encoded.shape
    D = raw["w_hh"].shape[1]
    hidden = jnp.zeros((B, D), jnp.float32)
    cell = jnp.zeros((B, D), jnp.float32)
    context = jnp.zeros((B, E), jnp.float32)
    for t in range(W):
        x = jnp.concatenate(
            [jnp.broadcast_to(hidden[:, None, :], (B, W, D)),
             jnp.broadcast_to(cell[:, None, :], (B, W, D)),
             input_encoded], axis=2)
        z = jnp.tanh(x.reshape(B * W, -1) @ raw["attn_w1"].T + raw["attn_b1"])
        scores = (z @ raw["attn_w2"].T + raw["attn_b2"]).reshape(B, W)
        alpha = jax.nn.softmax(scores, axis=1)
        context = jnp.einsum("bw,bwe->be", alpha, input_encoded)
        y_tilde = (jnp.concatenate([context, y_history[:, t]], axis=1)
                   @ raw["fc_w"].T + raw["fc_b"])
        gates = (y_tilde @ raw["w_ih"].T + hidden @ raw["w_hh"].T
                 + raw["b_ih"] + raw["b_hh"])
        i = jax.nn.sigmoid(gates[:, :D])
        f = jax.nn.sigmoid(gates[:, D:2 * D])
        g = jnp.tanh(gates[:, 2 * D:3 * D])
        o = jax.nn.sigmoid(gates[:, 3 * D:])
        cell = f * cell + i * g
        hidden = o * jnp.tanh(cell)
    return (jnp.concatenate([hidden, context], axis=1) @ raw["ff_w"].T
            + raw["ff_b"])


if __name__ == "__main__":
    B, W, E, D, F = 8, 8, 32, 32, 4   # batch, window, enc_hidden, dec_hidden, out_feats

    key = jax.random.PRNGKey(0)
    k_enc, k_yh, k_par = jax.random.split(key, 3)
    input_encoded = jax.random.normal(k_enc, (B, W, E), jnp.float32)
    y_history = jax.random.normal(k_yh, (B, W, F), jnp.float32)

    raw = init_raw_params(k_par, E, D, F)
    params = kernel_params(raw, E, D, F)

    # NOTE: self.lstm_layer.flatten_parameters() is a CUDA memory-layout
    # no-op; there is nothing to translate.
    out = jax.block_until_ready(decoder_forward(input_encoded, y_history, params))

    ref = decoder_reference(input_encoded, y_history, raw)
    np.testing.assert_allclose(np.asarray(out), np.asarray(ref),
                               rtol=5e-4, atol=5e-4)
    print("KERNEL_OK")
</pallas_src>

<mosaic_0001>
module attributes {stable_mosaic.version = 11 : i64} {
  func.func @decoder_kernel(%arg0: memref<8x8x32xf32, #tpu.memory_space<vmem>>, %arg1: memref<8x8x4xf32, #tpu.memory_space<vmem>>, %arg2: memref<98x32xf32, #tpu.memory_space<vmem>>, %arg3: memref<69x128xf32, #tpu.memory_space<vmem>>, %arg4: memref<65x4xf32, #tpu.memory_space<vmem>>, %arg5: memref<8x4xf32, #tpu.memory_space<vmem>>) attributes {dimension_semantics = [], scalar_prefetch = 0 : i64, scratch_operands = 0 : i64, tpu.core_type = #tpu.core_type<tc>} {
    %c0 = arith.constant 0 : index
    %c0_0 = arith.constant 0 : index
    %c0_1 = arith.constant 0 : index
    %0 = vector.load %arg0[%c0, %c0_0, %c0_1] : memref<8x8x32xf32, #tpu.memory_space<vmem>>, vector<8x8x32xf32>
    %c0_2 = arith.constant 0 : index
    %c0_3 = arith.constant 0 : index
    %1 = vector.load %arg2[%c0_2, %c0_3] : memref<98x32xf32, #tpu.memory_space<vmem>>, vector<64x32xf32>
    %c64 = arith.constant 64 : index
    %c0_4 = arith.constant 0 : index
    %2 = vector.load %arg2[%c64, %c0_4] : memref<98x32xf32, #tpu.memory_space<vmem>>, vector<32x32xf32>
    %c96 = arith.constant 96 : index
    %c0_5 = arith.constant 0 : index
    %3 = vector.load %arg2[%c96, %c0_5] : memref<98x32xf32, #tpu.memory_space<vmem>>, vector<1x32xf32>
    %c97 = arith.constant 97 : index
    %c0_6 = arith.constant 0 : index
    %4 = vector.load %arg2[%c97, %c0_6] : memref<98x32xf32, #tpu.memory_space<vmem>>, vector<1x32xf32>
    %c0_7 = arith.constant 0 : index
    %c0_8 = arith.constant 0 : index
    %5 = vector.load %arg3[%c0_7, %c0_8] : memref<69x128xf32, #tpu.memory_space<vmem>>, vector<69x128xf32>
    %c0_9 = arith.constant 0 : index
    %c0_10 = arith.constant 0 : index
    %6 = vector.load %arg4[%c0_9, %c0_10] : memref<65x4xf32, #tpu.memory_space<vmem>>, vector<64x4xf32>
    %c64_11 = arith.constant 64 : index
    %c0_12 = arith.constant 0 : index
    %7 = vector.load %arg4[%c64_11, %c0_12] : memref<65x4xf32, #tpu.memory_space<vmem>>, vector<1x4xf32>
    %8 = vector.shape_cast %0 : vector<8x8x32xf32> to vector<64x32xf32>
    %cst = arith.constant dense<0.000000e+00> : vector<64x32xf32>
    %9 = tpu.matmul %8, %2, %cst {dimension_numbers = #tpu.dot_dimension_numbers<[1], [0], [0], [1], [0, 0, 1, 1], [], []>} : vector<64x32xf32>, vector<32x32xf32>, vector<64x32xf32> -> vector<64x32xf32>
    %10 = vector.broadcast %3 : vector<1x32xf32> to vector<64x32xf32>
    %11 = arith.addf %9, %10 : vector<64x32xf32>
    %12 = vector.shape_cast %11 : vector<64x32xf32> to vector<8x8x32xf32>
    %c0_13 = arith.constant 0 : index
    %c0_14 = arith.constant 0 : index
    %c0_15 = arith.constant 0 : index
    %13 = vector.load %arg1[%c0_13, %c0_14, %c0_15] : memref<8x8x4xf32, #tpu.memory_space<vmem>>, vector<8x8x4xf32>
    %cst_16 = arith.constant 1.000000e+00 : f32
    %14 = vector.broadcast %cst_16 : f32 to vector<8x8x1xf32>
    %15 = tpu.concatenate %13, %14 in 2 : vector<8x8x4xf32>, vector<8x8x1xf32> -> vector<8x8x5xf32>
    %cst_17 = arith.constant 0.000000e+00 : f32
    %16 = vector.broadcast %cst_17 : f32 to vector<8x32xf32>
    %cst_18 = arith.constant 0.000000e+00 : f32
    %17 = vector.broadcast %cst_18 : f32 to vector<8x32xf32>
    %18 = tpu.concatenate %16, %17 in 1 : vector<8x32xf32>, vector<8x32xf32> -> vector<8x64xf32>
    %cst_19 = arith.constant dense<0.000000e+00> : vector<8x32xf32>
    %19 = tpu.matmul %18, %1, %cst_19 {dimension_numbers = #tpu.dot_dimension_numbers<[1], [0], [0], [1], [0, 0, 1, 1], [], []>} : vector<8x64xf32>, vector<64x32xf32>, vector<8x32xf32> -> vector<8x32xf32>
    %20 = vector.shape_cast %19 : vector<8x32xf32> to vector<8x1x32xf32>
    %21 = vector.broadcast %20 : vector<8x1x32xf32> to vector<8x8x32xf32>
    %22 = arith.addf %12, %21 : vector<8x8x32xf32>
    %23 = math.tanh %22 : vector<8x8x32xf32>
    %24 = vector.shape_cast %4 : vector<1x32xf32> to vector<1x1x32xf32>
    %25 = vector.broadcast %24 : vector<1x1x32xf32> to vector<8x8x32xf32>
    %26 = arith.mulf %23, %25 : vector<8x8x32xf32>
    %cst_20 = arith.constant dense<0.000000e+00> : vector<8x8xf32>
    %27 = vector.multi_reduction <add>, %26, %cst_20 [2] : vector<8x8x32xf32> to vector<8x8xf32>
    %28 = vector.shape_cast %27 : vector<8x8xf32> to vector<8x8x1xf32>
    %cst_21 = arith.constant dense<0xFF800000> : vector<8x1xf32>
    %29 = vector.multi_reduction <maximumf>, %28, %cst_21 [1] : vector<8x8x1xf32> to vector<8x1xf32>
    %30 = vector.shape_cast %29 : vector<8x1xf32> to vector<8x1x1xf32>
    %31 = vector.broadcast %30 : vector<8x1x1xf32> to vector<8x8x1xf32>
    %32 = arith.subf %28, %31 : vector<8x8x1xf32>
    %33 = math.exp %32 : vector<8x8x1xf32>
    %cst_22 = arith.constant dense<0.000000e+00> : vector<8x1xf32>
    %34 = vector.multi_reduction <add>, %33, %cst_22 [1] : vector<8x8x1xf32> to vector<8x1xf32>
    %35 = vector.shape_cast %34 : vector<8x1xf32> to vector<8x1x1xf32>
    %36 = tpu.reciprocal %35 {approx = true} : vector<8x1x1xf32> -> vector<8x1x1xf32>
    %37 = arith.mulf %35, %36 : vector<8x1x1xf32>
    %cst_23 = arith.constant 2.000000e+00 : f32
    %38 = vector.broadcast %cst_23 : f32 to vector<8x1x1xf32>
    %39 = arith.subf %38, %37 : vector<8x1x1xf32>
    %40 = arith.mulf %36, %39 : vector<8x1x1xf32>
    %41 = vector.broadcast %40 : vector<8x1x1xf32> to vector<8x8x1xf32>
    %42 = arith.mulf %33, %41 : vector<8x8x1xf32>
    %43 = vector.broadcast %42 : vector<8x8x1xf32> to vector<8x8x32xf32>
    %44 = arith.mulf %43, %0 : vector<8x8x32xf32>
    %cst_24 = arith.constant dense<0.000000e+00> : vector<8x32xf32>
    %45 = vector.multi_reduction <add>, %44, %cst_24 [1] : vector<8x8x32xf32> to vector<8x32xf32>
    %46 = vector.extract_strided_slice %15 {offsets = [0, 0, 0], sizes = [8, 1, 5], strides = [1, 1, 1]} : vector<8x8x5xf32> to vector<8x1x5xf32>
    %47 = vector.shape_cast %46 : vector<8x1x5xf32> to vector<8x5xf32>
    %48 = tpu.concatenate %45, %16, %47 in 1 : vector<8x32xf32>, vector<8x32xf32>, vector<8x5xf32> -> vector<8x69xf32>
    %cst_25 = arith.constant dense<0.000000e+00> : vector<8x128xf32>
    %49 = tpu.matmul %48, %5, %cst_25 {dimension_numbers = #tpu.dot_dimension_numbers<[1], [0], [0], [1], [0, 0, 1, 1], [], []>} : vector<8x69xf32>, vector<69x128xf32>, vector<8x128xf32> -> vector<8x128xf32>
    %50 = arith.negf %49 : vector<8x128xf32>
    %51 = math.exp %50 : vector<8x128xf32>
    %cst_26 = arith.constant 1.000000e+00 : f32
    %52 = vector.broadcast %cst_26 : f32 to vector<8x128xf32>
    %53 = arith.addf %52, %51 : vector<8x128xf32>
    %54 = arith.divf %52, %53 : vector<8x128xf32>
    %55 = vector.extract_strided_slice %54 {offsets = [0, 0], sizes = [8, 32], strides = [1, 1]} : vector<8x128xf32> to vector<8x32xf32>
    %56 = vector.extract_strided_slice %54 {offsets = [0, 32], sizes = [8, 32], strides = [1, 1]} : vector<8x128xf32> to vector<8x32xf32>
    %57 = vector.extract_strided_slice %54 {offsets = [0, 96], sizes = [8, 32], strides = [1, 1]} : vector<8x128xf32> to vector<8x32xf32>
    %58 = vector.extract_strided_slice %49 {offsets = [0, 64], sizes = [8, 32], strides = [1, 1]} : vector<8x128xf32> to vector<8x32xf32>
    %59 = math.tanh %58 : vector<8x32xf32>
    %60 = arith.mulf %56, %17 : vector<8x32xf32>
    %61 = arith.mulf %55, %59 : vector<8x32xf32>
    %62 = arith.addf %60, %61 : vector<8x32xf32>
    %63 = math.tanh %62 : vector<8x32xf32>
    %64 = arith.mulf %57, %63 : vector<8x32xf32>
    %65 = tpu.concatenate %64, %62 in 1 : vector<8x32xf32>, vector<8x32xf32> -> vector<8x64xf32>
    %cst_27 = arith.constant dense<0.000000e+00> : vector<8x32xf32>
    %66 = tpu.matmul %65, %1, %cst_27 {dimension_numbers = #tpu.dot_dimension_numbers<[1], [0], [0], [1], [0, 0, 1, 1], [], []>} : vector<8x64xf32>, vector<64x32xf32>, vector<8x32xf32> -> vector<8x32xf32>
    %67 = vector.shape_cast %66 : vector<8x32xf32> to vector<8x1x32xf32>
    %68 = vector.broadcast %67 : vector<8x1x32xf32> to vector<8x8x32xf32>
    %69 = arith.addf %12, %68 : vector<8x8x32xf32>
    %70 = math.tanh %69 : vector<8x8x32xf32>
    %71 = vector.shape_cast %4 : vector<1x32xf32> to vector<1x1x32xf32>
    %72 = vector.broadcast %71 : vector<1x1x32xf32> to vector<8x8x32xf32>
    %73 = arith.mulf %70, %72 : vector<8x8x32xf32>
    %cst_28 = arith.constant dense<0.000000e+00> : vector<8x8xf32>
    %74 = vector.multi_reduction <add>, %73, %cst_28 [2] : vector<8x8x32xf32> to vector<8x8xf32>
    %75 = vector.shape_cast %74 : vector<8x8xf32> to vector<8x8x1xf32>
    %cst_29 = arith.constant dense<0xFF800000> : vector<8x1xf32>
    %76 = vector.multi_reduction <maximumf>, %75, %cst_29 [1] : vector<8x8x1xf32> to vector<8x1xf32>
    %77 = vector.shape_cast %76 : vector<8x1xf32> to vector<8x1x1xf32>
    %78 = vector.broadcast %77 : vector<8x1x1xf32> to vector<8x8x1xf32>
    %79 = arith.subf %75, %78 : vector<8x8x1xf32>
    %80 = math.exp %79 : vector<8x8x1xf32>
    %cst_30 = arith.constant dense<0.000000e+00> : vector<8x1xf32>
    %81 = vector.multi_reduction <add>, %80, %cst_30 [1] : vector<8x8x1xf32> to vector<8x1xf32>
    %82 = vector.shape_cast %81 : vector<8x1xf32> to vector<8x1x1xf32>
    %83 = tpu.reciprocal %82 {approx = true} : vector<8x1x1xf32> -> vector<8x1x1xf32>
    %84 = arith.mulf %82, %83 : vector<8x1x1xf32>
    %cst_31 = arith.constant 2.000000e+00 : f32
    %85 = vector.broadcast %cst_31 : f32 to vector<8x1x1xf32>
    %86 = arith.subf %85, %84 : vector<8x1x1xf32>
    %87 = arith.mulf %83, %86 : vector<8x1x1xf32>
    %88 = vector.broadcast %87 : vector<8x1x1xf32> to vector<8x8x1xf32>
    %89 = arith.mulf %80, %88 : vector<8x8x1xf32>
    %90 = vector.broadcast %89 : vector<8x8x1xf32> to vector<8x8x32xf32>
    %91 = arith.mulf %90, %0 : vector<8x8x32xf32>
    %cst_32 = arith.constant dense<0.000000e+00> : vector<8x32xf32>
    %92 = vector.multi_reduction <add>, %91, %cst_32 [1] : vector<8x8x32xf32> to vector<8x32xf32>
    %93 = vector.extract_strided_slice %15 {offsets = [0, 1, 0], sizes = [8, 1, 5], strides = [1, 1, 1]} : vector<8x8x5xf32> to vector<8x1x5xf32>
    %94 = vector.shape_cast %93 : vector<8x1x5xf32> to vector<8x5xf32>
    %95 = tpu.concatenate %92, %64, %94 in 1 : vector<8x32xf32>, vector<8x32xf32>, vector<8x5xf32> -> vector<8x69xf32>
    %cst_33 = arith.constant dense<0.000000e+00> : vector<8x128xf32>
    %96 = tpu.matmul %95, %5, %cst_33 {dimension_numbers = #tpu.dot_dimension_numbers<[1], [0], [0], [1], [0, 0, 1, 1], [], []>} : vector<8x69xf32>, vector<69x128xf32>, vector<8x128xf32> -> vector<8x128xf32>
    %97 = arith.negf %96 : vector<8x128xf32>
    %98 = math.exp %97 : vector<8x128xf32>
    %cst_34 = arith.constant 1.000000e+00 : f32
    %99 = vector.broadcast %cst_34 : f32 to vector<8x128xf32>
    %100 = arith.addf %99, %98 : vector<8x128xf32>
    %101 = arith.divf %99, %100 : vector<8x128xf32>
    %102 = vector.extract_strided_slice %101 {offsets = [0, 0], sizes = [8, 32], strides = [1, 1]} : vector<8x128xf32> to vector<8x32xf32>
    %103 = vector.extract_strided_slice %101 {offsets = [0, 32], sizes = [8, 32], strides = [1, 1]} : vector<8x128xf32> to vector<8x32xf32>
    %104 = vector.extract_strided_slice %101 {offsets = [0, 96], sizes = [8, 32], strides = [1, 1]} : vector<8x128xf32> to vector<8x32xf32>
    %105 = vector.extract_strided_slice %96 {offsets = [0, 64], sizes = [8, 32], strides = [1, 1]} : vector<8x128xf32> to vector<8x32xf32>
    %106 = math.tanh %105 : vector<8x32xf32>
    %107 = arith.mulf %103, %62 : vector<8x32xf32>
    %108 = arith.mulf %102, %106 : vector<8x32xf32>
    %109 = arith.addf %107, %108 : vector<8x32xf32>
    %110 = math.tanh %109 : vector<8x32xf32>
    %111 = arith.mulf %104, %110 : vector<8x32xf32>
    %112 = tpu.concatenate %111, %109 in 1 : vector<8x32xf32>, vector<8x32xf32> -> vector<8x64xf32>
    %cst_35 = arith.constant dense<0.000000e+00> : vector<8x32xf32>
    %113 = tpu.matmul %112, %1, %cst_35 {dimension_numbers = #tpu.dot_dimension_numbers<[1], [0], [0], [1], [0, 0, 1, 1], [], []>} : vector<8x64xf32>, vector<64x32xf32>, vector<8x32xf32> -> vector<8x32xf32>
    %114 = vector.shape_cast %113 : vector<8x32xf32> to vector<8x1x32xf32>
    %115 = vector.broadcast %114 : vector<8x1x32xf32> to vector<8x8x32xf32>
    %116 = arith.addf %12, %115 : vector<8x8x32xf32>
    %117 = math.tanh %116 : vector<8x8x32xf32>
    %118 = vector.shape_cast %4 : vector<1x32xf32> to vector<1x1x32xf32>
    %119 = vector.broadcast %118 : vector<1x1x32xf32> to vector<8x8x32xf32>
    %120 = arith.mulf %117, %119 : vector<8x8x32xf32>
    %cst_36 = arith.constant dense<0.000000e+00> : vector<8x8xf32>
    %121 = vector.multi_reduction <add>, %120, %cst_36 [2] : vector<8x8x32xf32> to vector<8x8xf32>
    %122 = vector.shape_cast %121 : vector<8x8xf32> to vector<8x8x1xf32>
    %cst_37 = arith.constant dense<0xFF800000> : vector<8x1xf32>
    %123 = vector.multi_reduction <maximumf>, %122, %cst_37 [1] : vector<8x8x1xf32> to vector<8x1xf32>
    %124 = vector.shape_cast %123 : vector<8x1xf32> to vector<8x1x1xf32>
    %125 = vector.broadcast %124 : vector<8x1x1xf32> to vector<8x8x1xf32>
    %126 = arith.subf %122, %125 : vector<8x8x1xf32>
    %127 = math.exp %126 : vector<8x8x1xf32>
    %cst_38 = arith.constant dense<0.000000e+00> : vector<8x1xf32>
    %128 = vector.multi_reduction <add>, %127, %cst_38 [1] : vector<8x8x1xf32> to vector<8x1xf32>
    %129 = vector.shape_cast %128 : vector<8x1xf32> to vector<8x1x1xf32>
    %130 = tpu.reciprocal %129 {approx = true} : vector<8x1x1xf32> -> vector<8x1x1xf32>
    %131 = arith.mulf %129, %130 : vector<8x1x1xf32>
    %cst_39 = arith.constant 2.000000e+00 : f32
    %132 = vector.broadcast %cst_39 : f32 to vector<8x1x1xf32>
    %133 = arith.subf %132, %131 : vector<8x1x1xf32>
    %134 = arith.mulf %130, %133 : vector<8x1x1xf32>
    %135 = vector.broadcast %134 : vector<8x1x1xf32> to vector<8x8x1xf32>
    %136 = arith.mulf %127, %135 : vector<8x8x1xf32>
    %137 = vector.broadcast %136 : vector<8x8x1xf32> to vector<8x8x32xf32>
    %138 = arith.mulf %137, %0 : vector<8x8x32xf32>
    %cst_40 = arith.constant dense<0.000000e+00> : vector<8x32xf32>
    %139 = vector.multi_reduction <add>, %138, %cst_40 [1] : vector<8x8x32xf32> to vector<8x32xf32>
    %140 = vector.extract_strided_slice %15 {offsets = [0, 2, 0], sizes = [8, 1, 5], strides = [1, 1, 1]} : vector<8x8x5xf32> to vector<8x1x5xf32>
    %141 = vector.shape_cast %140 : vector<8x1x5xf32> to vector<8x5xf32>
    %142 = tpu.concatenate %139, %111, %141 in 1 : vector<8x32xf32>, vector<8x32xf32>, vector<8x5xf32> -> vector<8x69xf32>
    %cst_41 = arith.constant dense<0.000000e+00> : vector<8x128xf32>
    %143 = tpu.matmul %142, %5, %cst_41 {dimension_numbers = #tpu.dot_dimension_numbers<[1], [0], [0], [1], [0, 0, 1, 1], [], []>} : vector<8x69xf32>, vector<69x128xf32>, vector<8x128xf32> -> vector<8x128xf32>
    %144 = arith.negf %143 : vector<8x128xf32>
    %145 = math.exp %144 : vector<8x128xf32>
    %cst_42 = arith.constant 1.000000e+00 : f32
    %146 = vector.broadcast %cst_42 : f32 to vector<8x128xf32>
    %147 = arith.addf %146, %145 : vector<8x128xf32>
    %148 = arith.divf %146, %147 : vector<8x128xf32>
    %149 = vector.extract_strided_slice %148 {offsets = [0, 0], sizes = [8, 32], strides = [1, 1]} : vector<8x128xf32> to vector<8x32xf32>
    %150 = vector.extract_strided_slice %148 {offsets = [0, 32], sizes = [8, 32], strides = [1, 1]} : vector<8x128xf32> to vector<8x32xf32>
    %151 = vector.extract_strided_slice %148 {offsets = [0, 96], sizes = [8, 32], strides = [1, 1]} : vector<8x128xf32> to vector<8x32xf32>
    %152 = vector.extract_strided_slice %143 {offsets = [0, 64], sizes = [8, 32], strides = [1, 1]} : vector<8x128xf32> to vector<8x32xf32>
    %153 = math.tanh %152 : vector<8x32xf32>
    %154 = arith.mulf %150, %109 : vector<8x32xf32>
    %155 = arith.mulf %149, %153 : vector<8x32xf32>
    %156 = arith.addf %154, %155 : vector<8x32xf32>
    %157 = math.tanh %156 : vector<8x32xf32>
    %158 = arith.mulf %151, %157 : vector<8x32xf32>
    %159 = tpu.concatenate %158, %156 in 1 : vector<8x32xf32>, vector<8x32xf32> -> vector<8x64xf32>
    %cst_43 = arith.constant dense<0.000000e+00> : vector<8x32xf32>
    %160 = tpu.matmul %159, %1, %cst_43 {dimension_numbers = #tpu.dot_dimension_numbers<[1], [0], [0], [1], [0, 0, 1, 1], [], []>} : vector<8x64xf32>, vector<64x32xf32>, vector<8x32xf32> -> vector<8x32xf32>
    %161 = vector.shape_cast %160 : vector<8x32xf32> to vector<8x1x32xf32>
    %162 = vector.broadcast %161 : vector<8x1x32xf32> to vector<8x8x32xf32>
    %163 = arith.addf %12, %162 : vector<8x8x32xf32>
    %164 = math.tanh %163 : vector<8x8x32xf32>
    %165 = vector.shape_cast %4 : vector<1x32xf32> to vector<1x1x32xf32>
    %166 = vector.broadcast %165 : vector<1x1x32xf32> to vector<8x8x32xf32>
    %167 = arith.mulf %164, %166 : vector<8x8x32xf32>
    %cst_44 = arith.constant dense<0.000000e+00> : vector<8x8xf32>
    %168 = vector.multi_reduction <add>, %167, %cst_44 [2] : vector<8x8x32xf32> to vector<8x8xf32>
    %169 = vector.shape_cast %168 : vector<8x8xf32> to vector<8x8x1xf32>
    %cst_45 = arith.constant dense<0xFF800000> : vector<8x1xf32>
    %170 = vector.multi_reduction <maximumf>, %169, %cst_45 [1] : vector<8x8x1xf32> to vector<8x1xf32>
    %171 = vector.shape_cast %170 : vector<8x1xf32> to vector<8x1x1xf32>
    %172 = vector.broadcast %171 : vector<8x1x1xf32> to vector<8x8x1xf32>
    %173 = arith.subf %169, %172 : vector<8x8x1xf32>
    %174 = math.exp %173 : vector<8x8x1xf32>
    %cst_46 = arith.constant dense<0.000000e+00> : vector<8x1xf32>
    %175 = vector.multi_reduction <add>, %174, %cst_46 [1] : vector<8x8x1xf32> to vector<8x1xf32>
    %176 = vector.shape_cast %175 : vector<8x1xf32> to vector<8x1x1xf32>
    %177 = tpu.reciprocal %176 {approx = true} : vector<8x1x1xf32> -> vector<8x1x1xf32>
    %178 = arith.mulf %176, %177 : vector<8x1x1xf32>
    %cst_47 = arith.constant 2.000000e+00 : f32
    %179 = vector.broadcast %cst_47 : f32 to vector<8x1x1xf32>
    %180 = arith.subf %179, %178 : vector<8x1x1xf32>
    %181 = arith.mulf %177, %180 : vector<8x1x1xf32>
    %182 = vector.broadcast %181 : vector<8x1x1xf32> to vector<8x8x1xf32>
    %183 = arith.mulf %174, %182 : vector<8x8x1xf32>
    %184 = vector.broadcast %183 : vector<8x8x1xf32> to vector<8x8x32xf32>
    %185 = arith.mulf %184, %0 : vector<8x8x32xf32>
    %cst_48 = arith.constant dense<0.000000e+00> : vector<8x32xf32>
    %186 = vector.multi_reduction <add>, %185, %cst_48 [1] : vector<8x8x32xf32> to vector<8x32xf32>
    %187 = vector.extract_strided_slice %15 {offsets = [0, 3, 0], sizes = [8, 1, 5], strides = [1, 1, 1]} : vector<8x8x5xf32> to vector<8x1x5xf32>
    %188 = vector.shape_cast %187 : vector<8x1x5xf32> to vector<8x5xf32>
    %189 = tpu.concatenate %186, %158, %188 in 1 : vector<8x32xf32>, vector<8x32xf32>, vector<8x5xf32> -> vector<8x69xf32>
    %cst_49 = arith.constant dense<0.000000e+00> : vector<8x128xf32>
    %190 = tpu.matmul %189, %5, %cst_49 {dimension_numbers = #tpu.dot_dimension_numbers<[1], [0], [0], [1], [0, 0, 1, 1], [], []>} : vector<8x69xf32>, vector<69x128xf32>, vector<8x128xf32> -> vector<8x128xf32>
    %191 = arith.negf %190 : vector<8x128xf32>
    %192 = math.exp %191 : vector<8x128xf32>
    %cst_50 = arith.constant 1.000000e+00 : f32
    %193 = vector.broadcast %cst_50 : f32 to vector<8x128xf32>
    %194 = arith.addf %193, %192 : vector<8x128xf32>
    %195 = arith.divf %193, %194 : vector<8x128xf32>
    %196 = vector.extract_strided_slice %195 {offsets = [0, 0], sizes = [8, 32], strides = [1, 1]} : vector<8x128xf32> to vector<8x32xf32>
    %197 = vector.extract_strided_slice %195 {offsets = [0, 32], sizes = [8, 32], strides = [1, 1]} : vector<8x128xf32> to vector<8x32xf32>
    %198 = vector.extract_strided_slice %195 {offsets = [0, 96], sizes = [8, 32], strides = [1, 1]} : vector<8x128xf32> to vector<8x32xf32>
    %199 = vector.extract_strided_slice %190 {offsets = [0, 64], sizes = [8, 32], strides = [1, 1]} : vector<8x128xf32> to vector<8x32xf32>
    %200 = math.tanh %199 : vector<8x32xf32>
    %201 = arith.mulf %197, %156 : vector<8x32xf32>
    %202 = arith.mulf %196, %200 : vector<8x32xf32>
    %203 = arith.addf %201, %202 : vector<8x32xf32>
    %204 = math.tanh %203 : vector<8x32xf32>
    %205 = arith.mulf %198, %204 : vector<8x32xf32>
    %206 = tpu.concatenate %205, %203 in 1 : vector<8x32xf32>, vector<8x32xf32> -> vector<8x64xf32>
    %cst_51 = arith.constant dense<0.000000e+00> : vector<8x32xf32>
    %207 = tpu.matmul %206, %1, %cst_51 {dimension_numbers = #tpu.dot_dimension_numbers<[1], [0], [0], [1], [0, 0, 1, 1], [], []>} : vector<8x64xf32>, vector<64x32xf32>, vector<8x32xf32> -> vector<8x32xf32>
    %208 = vector.shape_cast %207 : vector<8x32xf32> to vector<8x1x32xf32>
    %209 = vector.broadcast %208 : vector<8x1x32xf32> to vector<8x8x32xf32>
    %210 = arith.addf %12, %209 : vector<8x8x32xf32>
    %211 = math.tanh %210 : vector<8x8x32xf32>
    %212 = vector.shape_cast %4 : vector<1x32xf32> to vector<1x1x32xf32>
    %213 = vector.broadcast %212 : vector<1x1x32xf32> to vector<8x8x32xf32>
    %214 = arith.mulf %211, %213 : vector<8x8x32xf32>
    %cst_52 = arith.constant dense<0.000000e+00> : vector<8x8xf32>
    %215 = vector.multi_reduction <add>, %214, %cst_52 [2] : vector<8x8x32xf32> to vector<8x8xf32>
    %216 = vector.shape_cast %215 : vector<8x8xf32> to vector<8x8x1xf32>
    %cst_53 = arith.constant dense<0xFF800000> : vector<8x1xf32>
    %217 = vector.multi_reduction <maximumf>, %216, %cst_53 [1] : vector<8x8x1xf32> to vector<8x1xf32>
    %218 = vector.shape_cast %217 : vector<8x1xf32> to vector<8x1x1xf32>
    %219 = vector.broadcast %218 : vector<8x1x1xf32> to vector<8x8x1xf32>
    %220 = arith.subf %216, %219 : vector<8x8x1xf32>
    %221 = math.exp %220 : vector<8x8x1xf32>
    %cst_54 = arith.constant dense<0.000000e+00> : vector<8x1xf32>
    %222 = vector.multi_reduction <add>, %221, %cst_54 [1] : vector<8x8x1xf32> to vector<8x1xf32>
    %223 = vector.shape_cast %222 : vector<8x1xf32> to vector<8x1x1xf32>
    %224 = tpu.reciprocal %223 {approx = true} : vector<8x1x1xf32> -> vector<8x1x1xf32>
    %225 = arith.mulf %223, %224 : vector<8x1x1xf32>
    %cst_55 = arith.constant 2.000000e+00 : f32
    %226 = vector.broadcast %cst_55 : f32 to vector<8x1x1xf32>
    %227 = arith.subf %226, %225 : vector<8x1x1xf32>
    %228 = arith.mulf %224, %227 : vector<8x1x1xf32>
    %229 = vector.broadcast %228 : vector<8x1x1xf32> to vector<8x8x1xf32>
    %230 = arith.mulf %221, %229 : vector<8x8x1xf32>
    %231 = vector.broadcast %230 : vector<8x8x1xf32> to vector<8x8x32xf32>
    %232 = arith.mulf %231, %0 : vector<8x8x32xf32>
    %cst_56 = arith.constant dense<0.000000e+00> : vector<8x32xf32>
    %233 = vector.multi_reduction <add>, %232, %cst_56 [1] : vector<8x8x32xf32> to vector<8x32xf32>
    %234 = vector.extract_strided_slice %15 {offsets = [0, 4, 0], sizes = [8, 1, 5], strides = [1, 1, 1]} : vector<8x8x5xf32> to vector<8x1x5xf32>
    %235 = vector.shape_cast %234 : vector<8x1x5xf32> to vector<8x5xf32>
    %236 = tpu.concatenate %233, %205, %235 in 1 : vector<8x32xf32>, vector<8x32xf32>, vector<8x5xf32> -> vector<8x69xf32>
    %cst_57 = arith.constant dense<0.000000e+00> : vector<8x128xf32>
    %237 = tpu.matmul %236, %5, %cst_57 {dimension_numbers = #tpu.dot_dimension_numbers<[1], [0], [0], [1], [0, 0, 1, 1], [], []>} : vector<8x69xf32>, vector<69x128xf32>, vector<8x128xf32> -> vector<8x128xf32>
    %238 = arith.negf %237 : vector<8x128xf32>
    %239 = math.exp %238 : vector<8x128xf32>
    %cst_58 = arith.constant 1.000000e+00 : f32
    %240 = vector.broadcast %cst_58 : f32 to vector<8x128xf32>
    %241 = arith.addf %240, %239 : vector<8x128xf32>
    %242 = arith.divf %240, %241 : vector<8x128xf32>
    %243 = vector.extract_strided_slice %242 {offsets = [0, 0], sizes = [8, 32], strides = [1, 1]} : vector<8x128xf32> to vector<8x32xf32>
    %244 = vector.extract_strided_slice %242 {offsets = [0, 32], sizes = [8, 32], strides = [1, 1]} : vector<8x128xf32> to vector<8x32xf32>
    %245 = vector.extract_strided_slice %242 {offsets = [0, 96], sizes = [8, 32], strides = [1, 1]} : vector<8x128xf32> to vector<8x32xf32>
    %246 = vector.extract_strided_slice %237 {offsets = [0, 64], sizes = [8, 32], strides = [1, 1]} : vector<8x128xf32> to vector<8x32xf32>
    %247 = math.tanh %246 : vector<8x32xf32>
    %248 = arith.mulf %244, %203 : vector<8x32xf32>
    %249 = arith.mulf %243, %247 : vector<8x32xf32>
    %250 = arith.addf %248, %249 : vector<8x32xf32>
    %251 = math.tanh %250 : vector<8x32xf32>
    %252 = arith.mulf %245, %251 : vector<8x32xf32>
    %253 = tpu.concatenate %252, %250 in 1 : vector<8x32xf32>, vector<8x32xf32> -> vector<8x64xf32>
    %cst_59 = arith.constant dense<0.000000e+00> : vector<8x32xf32>
    %254 = tpu.matmul %253, %1, %cst_59 {dimension_numbers = #tpu.dot_dimension_numbers<[1], [0], [0], [1], [0, 0, 1, 1], [], []>} : vector<8x64xf32>, vector<64x32xf32>, vector<8x32xf32> -> vector<8x32xf32>
    %255 = vector.shape_cast %254 : vector<8x32xf32> to vector<8x1x32xf32>
    %256 = vector.broadcast %255 : vector<8x1x32xf32> to vector<8x8x32xf32>
    %257 = arith.addf %12, %256 : vector<8x8x32xf32>
    %258 = math.tanh %257 : vector<8x8x32xf32>
    %259 = vector.shape_cast %4 : vector<1x32xf32> to vector<1x1x32xf32>
    %260 = vector.broadcast %259 : vector<1x1x32xf32> to vector<8x8x32xf32>
    %261 = arith.mulf %258, %260 : vector<8x8x32xf32>
    %cst_60 = arith.constant dense<0.000000e+00> : vector<8x8xf32>
    %262 = vector.multi_reduction <add>, %261, %cst_60 [2] : vector<8x8x32xf32> to vector<8x8xf32>
    %263 = vector.shape_cast %262 : vector<8x8xf32> to vector<8x8x1xf32>
    %cst_61 = arith.constant dense<0xFF800000> : vector<8x1xf32>
    %264 = vector.multi_reduction <maximumf>, %263, %cst_61 [1] : vector<8x8x1xf32> to vector<8x1xf32>
    %265 = vector.shape_cast %264 : vector<8x1xf32> to vector<8x1x1xf32>
    %266 = vector.broadcast %265 : vector<8x1x1xf32> to vector<8x8x1xf32>
    %267 = arith.subf %263, %266 : vector<8x8x1xf32>
    %268 = math.exp %267 : vector<8x8x1xf32>
    %cst_62 = arith.constant dense<0.000000e+00> : vector<8x1xf32>
    %269 = vector.multi_reduction <add>, %268, %cst_62 [1] : vector<8x8x1xf32> to vector<8x1xf32>
    %270 = vector.shape_cast %269 : vector<8x1xf32> to vector<8x1x1xf32>
    %271 = tpu.reciprocal %270 {approx = true} : vector<8x1x1xf32> -> vector<8x1x1xf32>
    %272 = arith.mulf %270, %271 : vector<8x1x1xf32>
    %cst_63 = arith.constant 2.000000e+00 : f32
    %273 = vector.broadcast %cst_63 : f32 to vector<8x1x1xf32>
    %274 = arith.subf %273, %272 : vector<8x1x1xf32>
    %275 = arith.mulf %271, %274 : vector<8x1x1xf32>
    %276 = vector.broadcast %275 : vector<8x1x1xf32> to vector<8x8x1xf32>
    %277 = arith.mulf %268, %276 : vector<8x8x1xf32>
    %278 = vector.broadcast %277 : vector<8x8x1xf32> to vector<8x8x32xf32>
    %279 = arith.mulf %278, %0 : vector<8x8x32xf32>
    %cst_64 = arith.constant dense<0.000000e+00> : vector<8x32xf32>
    %280 = vector.multi_reduction <add>, %279, %cst_64 [1] : vector<8x8x32xf32> to vector<8x32xf32>
    %281 = vector.extract_strided_slice %15 {offsets = [0, 5, 0], sizes = [8, 1, 5], strides = [1, 1, 1]} : vector<8x8x5xf32> to vector<8x1x5xf32>
    %282 = vector.shape_cast %281 : vector<8x1x5xf32> to vector<8x5xf32>
    %283 = tpu.concatenate %280, %252, %282 in 1 : vector<8x32xf32>, vector<8x32xf32>, vector<8x5xf32> -> vector<8x69xf32>
    %cst_65 = arith.constant dense<0.000000e+00> : vector<8x128xf32>
    %284 = tpu.matmul %283, %5, %cst_65 {dimension_numbers = #tpu.dot_dimension_numbers<[1], [0], [0], [1], [0, 0, 1, 1], [], []>} : vector<8x69xf32>, vector<69x128xf32>, vector<8x128xf32> -> vector<8x128xf32>
    %285 = arith.negf %284 : vector<8x128xf32>
    %286 = math.exp %285 : vector<8x128xf32>
    %cst_66 = arith.constant 1.000000e+00 : f32
    %287 = vector.broadcast %cst_66 : f32 to vector<8x128xf32>
    %288 = arith.addf %287, %286 : vector<8x128xf32>
    %289 = arith.divf %287, %288 : vector<8x128xf32>
    %290 = vector.extract_strided_slice %289 {offsets = [0, 0], sizes = [8, 32], strides = [1, 1]} : vector<8x128xf32> to vector<8x32xf32>
    %291 = vector.extract_strided_slice %289 {offsets = [0, 32], sizes = [8, 32], strides = [1, 1]} : vector<8x128xf32> to vector<8x32xf32>
    %292 = vector.extract_strided_slice %289 {offsets = [0, 96], sizes = [8, 32], strides = [1, 1]} : vector<8x128xf32> to vector<8x32xf32>
    %293 = vector.extract_strided_slice %284 {offsets = [0, 64], sizes = [8, 32], strides = [1, 1]} : vector<8x128xf32> to vector<8x32xf32>
    %294 = math.tanh %293 : vector<8x32xf32>
    %295 = arith.mulf %291, %250 : vector<8x32xf32>
    %296 = arith.mulf %290, %294 : vector<8x32xf32>
    %297 = arith.addf %295, %296 : vector<8x32xf32>
    %298 = math.tanh %297 : vector<8x32xf32>
    %299 = arith.mulf %292, %298 : vector<8x32xf32>
    %300 = tpu.concatenate %299, %297 in 1 : vector<8x32xf32>, vector<8x32xf32> -> vector<8x64xf32>
    %cst_67 = arith.constant dense<0.000000e+00> : vector<8x32xf32>
    %301 = tpu.matmul %300, %1, %cst_67 {dimension_numbers = #tpu.dot_dimension_numbers<[1], [0], [0], [1], [0, 0, 1, 1], [], []>} : vector<8x64xf32>, vector<64x32xf32>, vector<8x32xf32> -> vector<8x32xf32>
    %302 = vector.shape_cast %301 : vector<8x32xf32> to vector<8x1x32xf32>
    %303 = vector.broadcast %302 : vector<8x1x32xf32> to vector<8x8x32xf32>
    %304 = arith.addf %12, %303 : vector<8x8x32xf32>
    %305 = math.tanh %304 : vector<8x8x32xf32>
    %306 = vector.shape_cast %4 : vector<1x32xf32> to vector<1x1x32xf32>
    %307 = vector.broadcast %306 : vector<1x1x32xf32> to vector<8x8x32xf32>
    %308 = arith.mulf %305, %307 : vector<8x8x32xf32>
    %cst_68 = arith.constant dense<0.000000e+00> : vector<8x8xf32>
    %309 = vector.multi_reduction <add>, %308, %cst_68 [2] : vector<8x8x32xf32> to vector<8x8xf32>
    %310 = vector.shape_cast %309 : vector<8x8xf32> to vector<8x8x1xf32>
    %cst_69 = arith.constant dense<0xFF800000> : vector<8x1xf32>
    %311 = vector.multi_reduction <maximumf>, %310, %cst_69 [1] : vector<8x8x1xf32> to vector<8x1xf32>
    %312 = vector.shape_cast %311 : vector<8x1xf32> to vector<8x1x1xf32>
    %313 = vector.broadcast %312 : vector<8x1x1xf32> to vector<8x8x1xf32>
    %314 = arith.subf %310, %313 : vector<8x8x1xf32>
    %315 = math.exp %314 : vector<8x8x1xf32>
    %cst_70 = arith.constant dense<0.000000e+00> : vector<8x1xf32>
    %316 = vector.multi_reduction <add>, %315, %cst_70 [1] : vector<8x8x1xf32> to vector<8x1xf32>
    %317 = vector.shape_cast %316 : vector<8x1xf32> to vector<8x1x1xf32>
    %318 = tpu.reciprocal %317 {approx = true} : vector<8x1x1xf32> -> vector<8x1x1xf32>
    %319 = arith.mulf %317, %318 : vector<8x1x1xf32>
    %cst_71 = arith.constant 2.000000e+00 : f32
    %320 = vector.broadcast %cst_71 : f32 to vector<8x1x1xf32>
    %321 = arith.subf %320, %319 : vector<8x1x1xf32>
    %322 = arith.mulf %318, %321 : vector<8x1x1xf32>
    %323 = vector.broadcast %322 : vector<8x1x1xf32> to vector<8x8x1xf32>
    %324 = arith.mulf %315, %323 : vector<8x8x1xf32>
    %325 = vector.broadcast %324 : vector<8x8x1xf32> to vector<8x8x32xf32>
    %326 = arith.mulf %325, %0 : vector<8x8x32xf32>
    %cst_72 = arith.constant dense<0.000000e+00> : vector<8x32xf32>
    %327 = vector.multi_reduction <add>, %326, %cst_72 [1] : vector<8x8x32xf32> to vector<8x32xf32>
    %328 = vector.extract_strided_slice %15 {offsets = [0, 6, 0], sizes = [8, 1, 5], strides = [1, 1, 1]} : vector<8x8x5xf32> to vector<8x1x5xf32>
    %329 = vector.shape_cast %328 : vector<8x1x5xf32> to vector<8x5xf32>
    %330 = tpu.concatenate %327, %299, %329 in 1 : vector<8x32xf32>, vector<8x32xf32>, vector<8x5xf32> -> vector<8x69xf32>
    %cst_73 = arith.constant dense<0.000000e+00> : vector<8x128xf32>
    %331 = tpu.matmul %330, %5, %cst_73 {dimension_numbers = #tpu.dot_dimension_numbers<[1], [0], [0], [1], [0, 0, 1, 1], [], []>} : vector<8x69xf32>, vector<69x128xf32>, vector<8x128xf32> -> vector<8x128xf32>
    %332 = arith.negf %331 : vector<8x128xf32>
    %333 = math.exp %332 : vector<8x128xf32>
    %cst_74 = arith.constant 1.000000e+00 : f32
    %334 = vector.broadcast %cst_74 : f32 to vector<8x128xf32>
    %335 = arith.addf %334, %333 : vector<8x128xf32>
    %336 = arith.divf %334, %335 : vector<8x128xf32>
    %337 = vector.extract_strided_slice %336 {offsets = [0, 0], sizes = [8, 32], strides = [1, 1]} : vector<8x128xf32> to vector<8x32xf32>
    %338 = vector.extract_strided_slice %336 {offsets = [0, 32], sizes = [8, 32], strides = [1, 1]} : vector<8x128xf32> to vector<8x32xf32>
    %339 = vector.extract_strided_slice %336 {offsets = [0, 96], sizes = [8, 32], strides = [1, 1]} : vector<8x128xf32> to vector<8x32xf32>
    %340 = vector.extract_strided_slice %331 {offsets = [0, 64], sizes = [8, 32], strides = [1, 1]} : vector<8x128xf32> to vector<8x32xf32>
    %341 = math.tanh %340 : vector<8x32xf32>
    %342 = arith.mulf %338, %297 : vector<8x32xf32>
    %343 = arith.mulf %337, %341 : vector<8x32xf32>
    %344 = arith.addf %342, %343 : vector<8x32xf32>
    %345 = math.tanh %344 : vector<8x32xf32>
    %346 = arith.mulf %339, %345 : vector<8x32xf32>
    %347 = tpu.concatenate %346, %344 in 1 : vector<8x32xf32>, vector<8x32xf32> -> vector<8x64xf32>
    %cst_75 = arith.constant dense<0.000000e+00> : vector<8x32xf32>
    %348 = tpu.matmul %347, %1, %cst_75 {dimension_numbers = #tpu.dot_dimension_numbers<[1], [0], [0], [1], [0, 0, 1, 1], [], []>} : vector<8x64xf32>, vector<64x32xf32>, vector<8x32xf32> -> vector<8x32xf32>
    %349 = vector.shape_cast %348 : vector<8x32xf32> to vector<8x1x32xf32>
    %350 = vector.broadcast %349 : vector<8x1x32xf32> to vector<8x8x32xf32>
    %351 = arith.addf %12, %350 : vector<8x8x32xf32>
    %352 = math.tanh %351 : vector<8x8x32xf32>
    %353 = vector.shape_cast %4 : vector<1x32xf32> to vector<1x1x32xf32>
    %354 = vector.broadcast %353 : vector<1x1x32xf32> to vector<8x8x32xf32>
    %355 = arith.mulf %352, %354 : vector<8x8x32xf32>
    %cst_76 = arith.constant dense<0.000000e+00> : vector<8x8xf32>
    %356 = vector.multi_reduction <add>, %355, %cst_76 [2] : vector<8x8x32xf32> to vector<8x8xf32>
    %357 = vector.shape_cast %356 : vector<8x8xf32> to vector<8x8x1xf32>
    %cst_77 = arith.constant dense<0xFF800000> : vector<8x1xf32>
    %358 = vector.multi_reduction <maximumf>, %357, %cst_77 [1] : vector<8x8x1xf32> to vector<8x1xf32>
    %359 = vector.shape_cast %358 : vector<8x1xf32> to vector<8x1x1xf32>
    %360 = vector.broadcast %359 : vector<8x1x1xf32> to vector<8x8x1xf32>
    %361 = arith.subf %357, %360 : vector<8x8x1xf32>
    %362 = math.exp %361 : vector<8x8x1xf32>
    %cst_78 = arith.constant dense<0.000000e+00> : vector<8x1xf32>
    %363 = vector.multi_reduction <add>, %362, %cst_78 [1] : vector<8x8x1xf32> to vector<8x1xf32>
    %364 = vector.shape_cast %363 : vector<8x1xf32> to vector<8x1x1xf32>
    %365 = tpu.reciprocal %364 {approx = true} : vector<8x1x1xf32> -> vector<8x1x1xf32>
    %366 = arith.mulf %364, %365 : vector<8x1x1xf32>
    %cst_79 = arith.constant 2.000000e+00 : f32
    %367 = vector.broadcast %cst_79 : f32 to vector<8x1x1xf32>
    %368 = arith.subf %367, %366 : vector<8x1x1xf32>
    %369 = arith.mulf %365, %368 : vector<8x1x1xf32>
    %370 = vector.broadcast %369 : vector<8x1x1xf32> to vector<8x8x1xf32>
    %371 = arith.mulf %362, %370 : vector<8x8x1xf32>
    %372 = vector.broadcast %371 : vector<8x8x1xf32> to vector<8x8x32xf32>
    %373 = arith.mulf %372, %0 : vector<8x8x32xf32>
    %cst_80 = arith.constant dense<0.000000e+00> : vector<8x32xf32>
    %374 = vector.multi_reduction <add>, %373, %cst_80 [1] : vector<8x8x32xf32> to vector<8x32xf32>
    %375 = vector.extract_strided_slice %15 {offsets = [0, 7, 0], sizes = [8, 1, 5], strides = [1, 1, 1]} : vector<8x8x5xf32> to vector<8x1x5xf32>
    %376 = vector.shape_cast %375 : vector<8x1x5xf32> to vector<8x5xf32>
    %377 = tpu.concatenate %374, %346, %376 in 1 : vector<8x32xf32>, vector<8x32xf32>, vector<8x5xf32> -> vector<8x69xf32>
    %cst_81 = arith.constant dense<0.000000e+00> : vector<8x128xf32>
    %378 = tpu.matmul %377, %5, %cst_81 {dimension_numbers = #tpu.dot_dimension_numbers<[1], [0], [0], [1], [0, 0, 1, 1], [], []>} : vector<8x69xf32>, vector<69x128xf32>, vector<8x128xf32> -> vector<8x128xf32>
    %379 = arith.negf %378 : vector<8x128xf32>
    %380 = math.exp %379 : vector<8x128xf32>
    %cst_82 = arith.constant 1.000000e+00 : f32
    %381 = vector.broadcast %cst_82 : f32 to vector<8x128xf32>
    %382 = arith.addf %381, %380 : vector<8x128xf32>
    %383 = arith.divf %381, %382 : vector<8x128xf32>
    %384 = vector.extract_strided_slice %383 {offsets = [0, 0], sizes = [8, 32], strides = [1, 1]} : vector<8x128xf32> to vector<8x32xf32>
    %385 = vector.extract_strided_slice %383 {offsets = [0, 32], sizes = [8, 32], strides = [1, 1]} : vector<8x128xf32> to vector<8x32xf32>
    %386 = vector.extract_strided_slice %383 {offsets = [0, 96], sizes = [8, 32], strides = [1, 1]} : vector<8x128xf32> to vector<8x32xf32>
    %387 = vector.extract_strided_slice %378 {offsets = [0, 64], sizes = [8, 32], strides = [1, 1]} : vector<8x128xf32> to vector<8x32xf32>
    %388 = math.tanh %387 : vector<8x32xf32>
    %389 = arith.mulf %385, %344 : vector<8x32xf32>
    %390 = arith.mulf %384, %388 : vector<8x32xf32>
    %391 = arith.addf %389, %390 : vector<8x32xf32>
    %392 = math.tanh %391 : vector<8x32xf32>
    %393 = arith.mulf %386, %392 : vector<8x32xf32>
    %394 = tpu.concatenate %393, %374 in 1 : vector<8x32xf32>, vector<8x32xf32> -> vector<8x64xf32>
    %cst_83 = arith.constant dense<0.000000e+00> : vector<8x4xf32>
    %395 = tpu.matmul %394, %6, %cst_83 {dimension_numbers = #tpu.dot_dimension_numbers<[1], [0], [0], [1], [0, 0, 1, 1], [], []>} : vector<8x64xf32>, vector<64x4xf32>, vector<8x4xf32> -> vector<8x4xf32>
    %396 = vector.broadcast %7 : vector<1x4xf32> to vector<8x4xf32>
    %397 = arith.addf %395, %396 : vector<8x4xf32>
    %c0_84 = arith.constant 0 : index
    %c0_85 = arith.constant 0 : index
    %398 = vector.load %arg5[%c0_84, %c0_85] : memref<8x4xf32, #tpu.memory_space<vmem>>, vector<8x4xf32>
    tpu.vector_store %arg5[%c0_84, %c0_85], %397 {strides = array<i32>} : memref<8x4xf32, #tpu.memory_space<vmem>>, vector<8x4xf32>,
    return
  }
}

</mosaic_0001>

<llo_original>
// kernel: tpu_custom_call.1
$region0: #{tpu_custom_call.1}
  #allocation0 [shape = 'u32[]', space=smem, size = 0x4, offset = 0x4, fixed_abs, tag = 'smem constant byte address 0x4 - core index']
  #allocation1 [shape = 'u32[144,128]{1,0:T(1,128)}', space=vmem, size = 0x12000, scoped, tag = 'internal scratch']
  %s0 = inlined_call_operand.vmem [shape: f32[8,8,32], index: 0, kind: input, shape index: {}]
  %s1 = inlined_call_operand.vmem [shape: f32[8,8,4], index: 1, kind: input, shape index: {}]
  %s2 = inlined_call_operand.vmem [shape: f32[98,32], index: 2, kind: input, shape index: {}]
  %s3 = inlined_call_operand.vmem [shape: f32[69,128], index: 3, kind: input, shape index: {}]
  %s4 = inlined_call_operand.vmem [shape: f32[65,4], index: 4, kind: input, shape index: {}]
  %s5 = inlined_call_operand.vmem [shape: f32[8,4], index: 5, kind: output, shape index: {}]
  %s6 = sld [smem:[#allocation0]]
  $region30: #{tpu_custom_call.1} parent=0
    _
  %s8 = ssub.s32 1, %s6
  %s9 = scalar_select 0, %s8, %s6
  // Predicated region
  $region2: #{tpu_custom_call.1} parent=0 // pred_check
    _
  $region3: #{tpu_custom_call.1} parent=0 // pred_check_branch
    %11 = sbr.rel (0) target = $region5
  $region4: #{tpu_custom_call.1} parent=0 // pred_region
    _
  $region5: #{tpu_custom_call.1} parent=0 // pred_fallthru
    _
  // Predicated region
  $region6: #{tpu_custom_call.1} parent=0 // pred_check
    _
  $region7: #{tpu_custom_call.1} parent=0 // pred_check_branch
    %13 = sbr.rel (0) target = $region9
  $region8: #{tpu_custom_call.1} parent=0 // pred_region
    _
  $region9: #{tpu_custom_call.1} parent=0 // pred_fallthru
    _
  // Predicated region
  $region10: #{tpu_custom_call.1} parent=0 // pred_check
    _
  $region11: #{tpu_custom_call.1} parent=0 // pred_check_branch
    %15 = sbr.rel (0) target = $region13
  $region12: #{tpu_custom_call.1} parent=0 // pred_region
    _
  $region13: #{tpu_custom_call.1} parent=0 // pred_fallthru
    _
  // Predicated region
  $region14: #{tpu_custom_call.1} parent=0 // pred_check
    _
  $region15: #{tpu_custom_call.1} parent=0 // pred_check_branch
    %17 = sbr.rel (0) target = $region17
  $region16: #{tpu_custom_call.1} parent=0 // pred_region
    _
  $region17: #{tpu_custom_call.1} parent=0 // pred_fallthru
    _
  // Predicated region
  $region18: #{tpu_custom_call.1} parent=0 // pred_check
    _
  $region19: #{tpu_custom_call.1} parent=0 // pred_check_branch
    %19 = sbr.rel (0) target = $region21
  $region20: #{tpu_custom_call.1} parent=0 // pred_region
    _
  $region21: #{tpu_custom_call.1} parent=0 // pred_fallthru
    _
  %v20 = vld [vmem:[%s0] sm:$0xff]
  %v21 = vld [vmem:[%s0 + $0x8] sm:$0xff]
  %v22 = vld [vmem:[%s0 + $0x10] sm:$0xff]
  %v23 = vld [vmem:[%s0 + $0x18] sm:$0xff]
  %v24 = vld [vmem:[%s0 + $0x20] sm:$0xff]
  %v25 = vld [vmem:[%s0 + $0x28] sm:$0xff]
  %v26 = vld [vmem:[%s0 + $0x30] sm:$0xff]
  %v27 = vld [vmem:[%s0 + $0x38] sm:$0xff]
  %v28 = vld [vmem:[%s2] sm:$0xff]
  %v29 = vld [vmem:[%s2 + $0x8] sm:$0xff]
  %v30 = vld [vmem:[%s2 + $0x10] sm:$0xff]
  %v31 = vld [vmem:[%s2 + $0x18] sm:$0xff]
  %v32 = vld [vmem:[%s2 + $0x20] sm:$0xff]
  %v33 = vld [vmem:[%s2 + $0x28] sm:$0xff]
  %v34 = vld [vmem:[%s2 + $0x30] sm:$0xff]
  %v35 = vld [vmem:[%s2 + $0x38] sm:$0xff]
  %v36 = vld [vmem:[%s2 + $0x40] sm:$0xff]
  %v37 = vld [vmem:[%s2 + $0x48] sm:$0xff]
  %v38 = vld [vmem:[%s2 + $0x50] sm:$0xff]
  %v39 = vld [vmem:[%s2 + $0x58] sm:$0xff]
  %v40 = vld [vmem:[%s2 + $0x60] sm:$0x1]
  %v41 = vld [vmem:[%s2 + $0x61] sm:$0x1]
  %v42 = vld [vmem:[%s3] sm:$0xff]
  %v43 = vld [vmem:[%s3 + $0x8] sm:$0xff]
  %v44 = vld [vmem:[%s3 + $0x10] sm:$0xff]
  %v45 = vld [vmem:[%s3 + $0x18] sm:$0xff]
  %v46 = vld [vmem:[%s3 + $0x20] sm:$0xff]
  %v47 = vld [vmem:[%s3 + $0x28] sm:$0xff]
  %v48 = vld [vmem:[%s3 + $0x30] sm:$0xff]
  %v49 = vld [vmem:[%s3 + $0x38] sm:$0xff]
  %v50 = vld [vmem:[%s3 + $0x40] sm:$0x1f]
  %v51 = vld [vmem:[%s4] sm:$0xff]
  %v52 = vld [vmem:[%s4 + $0x8] sm:$0xff]
  %v53 = vld [vmem:[%s4 + $0x10] sm:$0xff]
  %v54 = vld [vmem:[%s4 + $0x18] sm:$0xff]
  %v55 = vld [vmem:[%s4 + $0x20] sm:$0xff]
  %v56 = vld [vmem:[%s4 + $0x28] sm:$0xff]
  %v57 = vld [vmem:[%s4 + $0x30] sm:$0xff]
  %v58 = vld [vmem:[%s4 + $0x38] sm:$0xff]
  %v59 = vld [vmem:[%s4 + $0x40] sm:$0x1]
  %v60 = vlaneseq
  %v61 = vshrl.u32 %v60, 7
  %v62 = vsub.s32 0, %v61
  %v63 = vrot.slane %v40, %v62
  %vm64 = vcmask 261120
  %v66 = vsel %vm64, %v20, 0
  %v69 = vsel %vm64, %v21, 0
  %v72 = vsel %vm64, %v22, 0
  %v75 = vsel %vm64, %v23, 0
  %v78 = vsel %vm64, %v24, 0
  %v81 = vsel %vm64, %v25, 0
  %v84 = vsel %vm64, %v26, 0
  %v87 = vsel %vm64, %v27, 0
  %89 = vmatprep.subr.mxu0 0.0
  %90 = vmatpush1.msra.mxu0 %v36
  %91 = vmatprep.subr.mxu0 0.0
  %92 = vmatpush1.msra.mxu0 %v37
  %93 = vmatprep.subr.mxu0 0.0
  %94 = vmatpush1.msra.mxu0 %v38
  %95 = vmatprep.subr.mxu0 0.0
  %96 = vmatpush1.msra.mxu0 %v39
  %97 = vmatprep.subr.mxu0 0.0
  %98 = vmatpush1.msra.mxu0 0.0
  %99 = vmatprep.subr.mxu0 0.0
  %100 = vmatpush1.msra.mxu0 0.0
  %101 = vmatprep.subr.mxu0 0.0
  %102 = vmatpush1.msra.mxu0 0.0
  %103 = vmatprep.subr.mxu0 0.0
  %104 = vmatpush1.msra.mxu0 0.0
  %105 = vmatprep.subr.mxu0 0.0
  %106 = vmatpush1.msra.mxu0 0.0
  %107 = vmatprep.subr.mxu0 0.0
  %108 = vmatpush1.msra.mxu0 0.0
  %109 = vmatprep.subr.mxu0 0.0
  %110 = vmatpush1.msra.mxu0 0.0
  %111 = vmatprep.subr.mxu0 0.0
  %112 = vmatpush1.msra.mxu0 0.0
  %113 = vmatprep.subr.mxu0 0.0
  %114 = vmatpush1.msra.mxu0 0.0
  %115 = vmatprep.subr.mxu0 0.0
  %116 = vmatpush1.msra.mxu0 0.0
  %117 = vmatprep.subr.mxu0 0.0
  %118 = vmatpush1.msra.mxu0 0.0
  %119 = vmatprep.subr.mxu0 0.0
  %120 = vmatpush1.msra.mxu0 0.0
  %121 = vmatprep.subr.mxu0 0.0
  %122 = vmatpush1.msra.mxu0 0.0
  %123 = vmatprep.subr.mxu0 0.0
  %124 = vmatpush1.msra.mxu0 0.0
  %125 = vmatprep.subr.mxu0 0.0
  %126 = vmatpush1.msra.mxu0 0.0
  %127 = vmatprep.subr.mxu0 0.0
  %128 = vmatpush1.msra.mxu0 0.0
  %129 = vmatprep.subr.mxu0 0.0
  %130 = vmatpush1.msra.mxu0 0.0
  %131 = vmatprep.subr.mxu0 0.0
  %132 = vmatpush1.msra.mxu0 0.0
  %133 = vmatprep.subr.mxu0 0.0
  %134 = vmatpush1.msra.mxu0 0.0
  %135 = vmatprep.subr.mxu0 0.0
  %136 = vmatpush1.msra.mxu0 0.0
  %137 = vmatprep.subr.mxu0 0.0
  %138 = vmatpush1.msra.mxu0 0.0
  %139 = vmatprep.subr.mxu0 0.0
  %140 = vmatpush1.msra.mxu0 0.0
  %141 = vmatprep.subr.mxu0 0.0
  %142 = vmatpush1.msra.mxu0 0.0
  %143 = vmatprep.subr.mxu0 0.0
  %144 = vmatpush1.msra.mxu0 0.0
  %145 = vmatprep.subr.mxu0 0.0
  %146 = vmatpush1.msra.mxu0 0.0
  %147 = vmatprep.subr.mxu0 0.0
  %148 = vmatpush1.msra.mxu0 0.0
  %149 = vmatprep.subr.mxu0 0.0
  %150 = vmatpush1.msra.mxu0 0.0
  %151 = vmatprep.subr.mxu0 0.0
  %152 = vmatpush1.msra.mxu0 0.0
  %153 = vmatprep.mubr.f32.mxu0 0.0
  %154 = vmatmul.mubr.f32.gmra.mrb[0].mxu0 %v66
  %v155 = vpop.f32.mrb[0].mxu0
  %v156 = vadd.f32 %v63, %v155
  %v157 = vpop.f32.mrb[0].mxu0
  %158 = vmatprep.mubr.f32.mxu0 0.0
  %159 = vmatmul.mubr.f32.gmra.mrb[0].mxu0 %v69
  %v160 = vpop.f32.mrb[0].mxu0
  %v161 = vadd.f32 %v63, %v160
  %v162 = vpop.f32.mrb[0].mxu0
  %163 = vmatprep.mubr.f32.mxu0 0.0
  %164 = vmatmul.mubr.f32.gmra.mrb[0].mxu0 %v72
  %v165 = vpop.f32.mrb[0].mxu0
  %v166 = vadd.f32 %v63, %v165
  %v167 = vpop.f32.mrb[0].mxu0
  %168 = vmatprep.mubr.f32.mxu0 0.0
  %169 = vmatmul.mubr.f32.gmra.mrb[0].mxu0 %v75
  %v170 = vpop.f32.mrb[0].mxu0
  %v171 = vadd.f32 %v63, %v170
  %v172 = vpop.f32.mrb[0].mxu0
  %173 = vmatprep.mubr.f32.mxu0 0.0
  %174 = vmatmul.mubr.f32.gmra.mrb[0].mxu0 %v78
  %v175 = vpop.f32.mrb[0].mxu0
  %v176 = vadd.f32 %v63, %v175
  %v177 = vpop.f32.mrb[0].mxu0
  %178 = vmatprep.mubr.f32.mxu0 0.0
  %179 = vmatmul.mubr.f32.gmra.mrb[0].mxu0 %v81
  %v180 = vpop.f32.mrb[0].mxu0
  %v181 = vadd.f32 %v63, %v180
  %v182 = vpop.f32.mrb[0].mxu0
  %183 = vmatprep.mubr.f32.mxu0 0.0
  %184 = vmatmul.mubr.f32.gmra.mrb[0].mxu0 %v84
  %v185 = vpop.f32.mrb[0].mxu0
  %v186 = vadd.f32 %v63, %v185
  %v187 = vpop.f32.mrb[0].mxu0
  %188 = vmatprep.mubr.f32.mxu0 0.0
  %189 = vmatmul.mubr.f32.gmra.mrb[0].mxu0 %v87
  %v190 = vpop.f32.mrb[0].mxu0
  %v191 = vadd.f32 %v63, %v190
  %v192 = vpop.f32.mrb[0].mxu0
  %193 = vdwg.mxu0
  %v194 = vld [vmem:[%s1] sm:$0xff]
  %v195 = vld [vmem:[%s1 + $0x8] sm:$0xff]
  %v196 = vld [vmem:[%s1 + $0x10] sm:$0xff]
  %v197 = vld [vmem:[%s1 + $0x18] sm:$0xff]
  %v198 = vld [vmem:[%s1 + $0x20] sm:$0xff]
  %v199 = vld [vmem:[%s1 + $0x28] sm:$0xff]
  %v200 = vld [vmem:[%s1 + $0x30] sm:$0xff]
  %v201 = vld [vmem:[%s1 + $0x38] sm:$0xff]
  %vm202 = vcmask 31744
  %v203 = vsel %vm202, %v194, 1.0
  %v204 = vsel %vm202, %v195, 1.0
  %v205 = vsel %vm202, %v196, 1.0
  %v206 = vsel %vm202, %v197, 1.0
  %v207 = vsel %vm202, %v198, 1.0
  %v208 = vsel %vm202, %v199, 1.0
  %v209 = vsel %vm202, %v200, 1.0
  %v210 = vsel %vm202, %v201, 1.0
  %vm211 = vcmask 523264
  %v213 = vsel %vm211, 0.0, 0
  %215 = vmatprep.subr.mxu0 0.0
  %216 = vmatpush1.msra.mxu0 %v28
  %217 = vmatprep.subr.mxu0 0.0
  %218 = vmatpush1.msra.mxu0 %v29
  %219 = vmatprep.subr.mxu0 0.0
  %220 = vmatpush1.msra.mxu0 %v30
  %221 = vmatprep.subr.mxu0 0.0
  %222 = vmatpush1.msra.mxu0 %v31
  %223 = vmatprep.subr.mxu0 0.0
  %224 = vmatpush1.msra.mxu0 %v32
  %225 = vmatprep.subr.mxu0 0.0
  %226 = vmatpush1.msra.mxu0 %v33
  %227 = vmatprep.subr.mxu0 0.0
  %228 = vmatpush1.msra.mxu0 %v34
  %229 = vmatprep.subr.mxu0 0.0
  %230 = vmatpush1.msra.mxu0 %v35
  %231 = vmatprep.subr.mxu0 0.0
  %232 = vmatpush1.msra.mxu0 0.0
  %233 = vmatprep.subr.mxu0 0.0
  %234 = vmatpush1.msra.mxu0 0.0
  %235 = vmatprep.subr.mxu0 0.0
  %236 = vmatpush1.msra.mxu0 0.0
  %237 = vmatprep.subr.mxu0 0.0
  %238 = vmatpush1.msra.mxu0 0.0
  %239 = vmatprep.subr.mxu0 0.0
  %240 = vmatpush1.msra.mxu0 0.0
  %241 = vmatprep.subr.mxu0 0.0
  %242 = vmatpush1.msra.mxu0 0.0
  %243 = vmatprep.subr.mxu0 0.0
  %244 = vmatpush1.msra.mxu0 0.0
  %245 = vmatprep.subr.mxu0 0.0
  %246 = vmatpush1.msra.mxu0 0.0
  %247 = vmatprep.subr.mxu0 0.0
  %248 = vmatpush1.msra.mxu0 0.0
  %249 = vmatprep.subr.mxu0 0.0
  %250 = vmatpush1.msra.mxu0 0.0
  %251 = vmatprep.subr.mxu0 0.0
  %252 = vmatpush1.msra.mxu0 0.0
  %253 = vmatprep.subr.mxu0 0.0
  %254 = vmatpush1.msra.mxu0 0.0
  %255 = vmatprep.subr.mxu0 0.0
  %256 = vmatpush1.msra.mxu0 0.0
  %257 = vmatprep.subr.mxu0 0.0
  %258 = vmatpush1.msra.mxu0 0.0
  %259 = vmatprep.subr.mxu0 0.0
  %260 = vmatpush1.msra.mxu0 0.0
  %261 = vmatprep.subr.mxu0 0.0
  %262 = vmatpush1.msra.mxu0 0.0
  %263 = vmatprep.subr.mxu0 0.0
  %264 = vmatpush1.msra.mxu0 0.0
  %265 = vmatprep.subr.mxu0 0.0
  %266 = vmatpush1.msra.mxu0 0.0
  %267 = vmatprep.subr.mxu0 0.0
  %268 = vmatpush1.msra.mxu0 0.0
  %269 = vmatprep.subr.mxu0 0.0
  %270 = vmatpush1.msra.mxu0 0.0
  %271 = vmatprep.subr.mxu0 0.0
  %272 = vmatpush1.msra.mxu0 0.0
  %273 = vmatprep.subr.mxu0 0.0
  %274 = vmatpush1.msra.mxu0 0.0
  %275 = vmatprep.subr.mxu0 0.0
  %276 = vmatpush1.msra.mxu0 0.0
  %277 = vmatprep.subr.mxu0 0.0
  %278 = vmatpush1.msra.mxu0 0.0
  %279 = vmatprep.mubr.f32.mxu0 0.0
  %280 = vmatmul.mubr.f32.gmra.mrb[0].mxu0 %v213
  %v281 = vpop.f32.mrb[0].mxu0
  %v282 = vadd.f32 0.0, %v281
  %v283 = vpop.f32.mrb[0].mxu0
  %284 = vdwg.mxu0
  %v286 = vcombine.high %v282, %v282
  %v288 = vunpack.c.l.s4 1966171168
  %v289 = vunpack.c.0.s8 %v288
  %v290 = vlaneseq
  %v291 = vshrl.u32 %v290, 7
  %v292 = vsub.s32 %v289, %v291
  %v293 = vrot.slane %v282, %v292
  %v295 = vunpack.c.l.s4 1966171168
  %v296 = vunpack.c.0.s8 %v295
  %v297 = vlaneseq
  %v298 = vshrl.u32 %v297, 7
  %v299 = vsub.s32 %v296, %v298
  %v300 = vrot.slane %v286, %v299
  %v301 = vcombine.high %v293, %v293
  %v302 = vcombine.high %v300, %v300
  %v304 = vunpack.c.l.s4 1966171168
  %v305 = vunpack.c.0.s8 %v304
  %v306 = vlaneseq
  %v307 = vshrl.u32 %v306, 7
  %v308 = vsub.s32 %v305, %v307
  %v309 = vrot.slane %v293, %v308
  %v311 = vunpack.c.l.s4 1966171168
  %v312 = vunpack.c.0.s8 %v311
  %v313 = vlaneseq
  %v314 = vshrl.u32 %v313, 7
  %v315 = vsub.s32 %v312, %v314
  %v316 = vrot.slane %v300, %v315
  %v318 = vunpack.c.l.s4 1966171168
  %v319 = vunpack.c.0.s8 %v318
  %v320 = vlaneseq
  %v321 = vshrl.u32 %v320, 7
  %v322 = vsub.s32 %v319, %v321
  %v323 = vrot.slane %v301, %v322
  %v325 = vunpack.c.l.s4 1966171168
  %v326 = vunpack.c.0.s8 %v325
  %v327 = vlaneseq
  %v328 = vshrl.u32 %v327, 7
  %v329 = vsub.s32 %v326, %v328
  %v330 = vrot.slane %v302, %v329
  %v331 = vcombine.high %v309, %v309
  %v332 = vcombine.high %v316, %v316
  %v333 = vcombine.high %v323, %v323
  %v334 = vcombine.high %v330, %v330
  %v335 = vlaneseq
  %v336 = vshrl.u32 %v335, 7
  %v337 = vsub.s32 0, %v336
  %v338 = vrot.slane %v309, %v337
  %v339 = vlaneseq
  %v340 = vshrl.u32 %v339, 7
  %v341 = vsub.s32 0, %v340
  %v342 = vrot.slane %v323, %v341
  %v343 = vlaneseq
  %v344 = vshrl.u32 %v343, 7
  %v345 = vsub.s32 0, %v344
  %v346 = vrot.slane %v331, %v345
  %v347 = vlaneseq
  %v348 = vshrl.u32 %v347, 7
  %v349 = vsub.s32 0, %v348
  %v350 = vrot.slane %v333, %v349
  %v351 = vlaneseq
  %v352 = vshrl.u32 %v351, 7
  %v353 = vsub.s32 0, %v352
  %v354 = vrot.slane %v316, %v353
  %v355 = vlaneseq
  %v356 = vshrl.u32 %v355, 7
  %v357 = vsub.s32 0, %v356
  %v358 = vrot.slane %v330, %v357
  %v359 = vlaneseq
  %v360 = vshrl.u32 %v359, 7
  %v361 = vsub.s32 0, %v360
  %v362 = vrot.slane %v332, %v361
  %v363 = vlaneseq
  %v364 = vshrl.u32 %v363, 7
  %v365 = vsub.s32 0, %v364
  %v366 = vrot.slane %v334, %v365
  %v375 = vadd.f32 %v156, %v338
  %v376 = vadd.f32 %v161, %v342
  %v377 = vadd.f32 %v166, %v346
  %v378 = vadd.f32 %v171, %v350
  %v379 = vadd.f32 %v176, %v354
  %v380 = vadd.f32 %v181, %v358
  %v381 = vadd.f32 %v186, %v362
  %v382 = vadd.f32 %v191, %v366
  %v383 = vtanh.pop %v375
  %v384 = vtanh.pop %v376
  %v385 = vtanh.pop %v377
  %v386 = vtanh.pop %v378
  %v387 = vtanh.pop %v379
  %v388 = vtanh.pop %v380
  %v389 = vtanh.pop %v381
  %v390 = vtanh.pop %v382
  %v391 = vlaneseq
  %v392 = vshrl.u32 %v391, 7
  %v393 = vsub.s32 0, %v392
  %v394 = vrot.slane %v41, %v393
  %v395 = vmul.f32 %v383, %v394
  %v396 = vmul.f32 %v384, %v394
  %v397 = vmul.f32 %v385, %v394
  %v398 = vmul.f32 %v386, %v394
  %v399 = vmul.f32 %v387, %v394
  %v400 = vmul.f32 %v388, %v394
  %v401 = vmul.f32 %v389, %v394
  %v402 = vmul.f32 %v390, %v394
  %v403 = vsel %vm64, %v395, 0.0
  %404 = vadd.xlane.f32.xlu0 %v403
  %v405 = vpop.xlane.xlu0 %404
  %v406 = vsel %vm64, %v396, 0.0
  %407 = vadd.xlane.f32.xlu0 %v406
  %v408 = vpop.xlane.xlu0 %407
  %v409 = vsel %vm64, %v397, 0.0
  %410 = vadd.xlane.f32.xlu0 %v409
  %v411 = vpop.xlane.xlu0 %410
  %v412 = vsel %vm64, %v398, 0.0
  %413 = vadd.xlane.f32.xlu0 %v412
  %v414 = vpop.xlane.xlu0 %413
  %v415 = vsel %vm64, %v399, 0.0
  %416 = vadd.xlane.f32.xlu0 %v415
  %v417 = vpop.xlane.xlu0 %416
  %v418 = vsel %vm64, %v400, 0.0
  %419 = vadd.xlane.f32.xlu0 %v418
  %v420 = vpop.xlane.xlu0 %419
  %v421 = vsel %vm64, %v401, 0.0
  %422 = vadd.xlane.f32.xlu0 %v421
  %v423 = vpop.xlane.xlu0 %422
  %v424 = vsel %vm64, %v402, 0.0
  %425 = vadd.xlane.f32.xlu0 %v424
  %v426 = vpop.xlane.xlu0 %425
  %v427 = vrot.slane %v405, 4
  %v428 = vmax.f32 %v405, %v427
  %v429 = vrot.slane %v428, 2
  %v430 = vmax.f32 %v428, %v429
  %v431 = vrot.slane %v430, 1
  %v432 = vmax.f32 %v430, %v431
  %v433 = vrot.slane %v408, 4
  %v434 = vmax.f32 %v408, %v433
  %v435 = vrot.slane %v434, 2
  %v436 = vmax.f32 %v434, %v435
  %v437 = vrot.slane %v436, 1
  %v438 = vmax.f32 %v436, %v437
  %v439 = vrot.slane %v411, 4
  %v440 = vmax.f32 %v411, %v439
  %v441 = vrot.slane %v440, 2
  %v442 = vmax.f32 %v440, %v441
  %v443 = vrot.slane %v442, 1
  %v444 = vmax.f32 %v442, %v443
  %v445 = vrot.slane %v414, 4
  %v446 = vmax.f32 %v414, %v445
  %v447 = vrot.slane %v446, 2
  %v448 = vmax.f32 %v446, %v447
  %v449 = vrot.slane %v448, 1
  %v450 = vmax.f32 %v448, %v449
  %v451 = vrot.slane %v417, 4
  %v452 = vmax.f32 %v417, %v451
  %v453 = vrot.slane %v452, 2
  %v454 = vmax.f32 %v452, %v453
  %v455 = vrot.slane %v454, 1
  %v456 = vmax.f32 %v454, %v455
  %v457 = vrot.slane %v420, 4
  %v458 = vmax.f32 %v420, %v457
  %v459 = vrot.slane %v458, 2
  %v460 = vmax.f32 %v458, %v459
  %v461 = vrot.slane %v460, 1
  %v462 = vmax.f32 %v460, %v461
  %v463 = vrot.slane %v423, 4
  %v464 = vmax.f32 %v423, %v463
  %v465 = vrot.slane %v464, 2
  %v466 = vmax.f32 %v464, %v465
  %v467 = vrot.slane %v466, 1
  %v468 = vmax.f32 %v466, %v467
  %v469 = vrot.slane %v426, 4
  %v470 = vmax.f32 %v426, %v469
  %v471 = vrot.slane %v470, 2
  %v472 = vmax.f32 %v470, %v471
  %v473 = vrot.slane %v472, 1
  %v474 = vmax.f32 %v472, %v473
  %v475 = vsub.f32 %v405, %v432
  %v476 = vsub.f32 %v408, %v438
  %v477 = vsub.f32 %v411, %v444
  %v478 = vsub.f32 %v414, %v450
  %v479 = vsub.f32 %v417, %v456
  %v480 = vsub.f32 %v420, %v462
  %v481 = vsub.f32 %v423, %v468
  %v482 = vsub.f32 %v426, %v474
  %v483 = vmul.f32 %v475, 1.442695
  %v484 = vpow.pop %v483
  %v485 = vmul.f32 %v476, 1.442695
  %v486 = vpow.pop %v485
  %v487 = vmul.f32 %v477, 1.442695
  %v488 = vpow.pop %v487
  %v489 = vmul.f32 %v478, 1.442695
  %v490 = vpow.pop %v489
  %v491 = vmul.f32 %v479, 1.442695
  %v492 = vpow.pop %v491
  %v493 = vmul.f32 %v480, 1.442695
  %v494 = vpow.pop %v493
  %v495 = vmul.f32 %v481, 1.442695
  %v496 = vpow.pop %v495
  %v497 = vmul.f32 %v482, 1.442695
  %v498 = vpow.pop %v497
  %v499 = vrot.slane %v484, 4
  %v500 = vadd.f32 %v484, %v499
  %v501 = vrot.slane %v500, 2
  %v502 = vadd.f32 %v500, %v501
  %v503 = vrot.slane %v502, 1
  %v504 = vadd.f32 %v502, %v503
  %v505 = vrot.slane %v486, 4
  %v506 = vadd.f32 %v486, %v505
  %v507 = vrot.slane %v506, 2
  %v508 = vadd.f32 %v506, %v507
  %v509 = vrot.slane %v508, 1
  %v510 = vadd.f32 %v508, %v509
  %v511 = vrot.slane %v488, 4
  %v512 = vadd.f32 %v488, %v511
  %v513 = vrot.slane %v512, 2
  %v514 = vadd.f32 %v512, %v513
  %v515 = vrot.slane %v514, 1
  %v516 = vadd.f32 %v514, %v515
  %v517 = vrot.slane %v490, 4
  %v518 = vadd.f32 %v490, %v517
  %v519 = vrot.slane %v518, 2
  %v520 = vadd.f32 %v518, %v519
  %v521 = vrot.slane %v520, 1
  %v522 = vadd.f32 %v520, %v521
  %v523 = vrot.slane %v492, 4
  %v524 = vadd.f32 %v492, %v523
  %v525 = vrot.slane %v524, 2
  %v526 = vadd.f32 %v524, %v525
  %v527 = vrot.slane %v526, 1
  %v528 = vadd.f32 %v526, %v527
  %v529 = vrot.slane %v494, 4
  %v530 = vadd.f32 %v494, %v529
  %v531 = vrot.slane %v530, 2
  %v532 = vadd.f32 %v530, %v531
  %v533 = vrot.slane %v532, 1
  %v534 = vadd.f32 %v532, %v533
  %v535 = vrot.slane %v496, 4
  %v536 = vadd.f32 %v496, %v535
  %v537 = vrot.slane %v536, 2
  %v538 = vadd.f32 %v536, %v537
  %v539 = vrot.slane %v538, 1
  %v540 = vadd.f32 %v538, %v539
  %v541 = vrot.slane %v498, 4
  %v542 = vadd.f32 %v498, %v541
  %v543 = vrot.slane %v542, 2
  %v544 = vadd.f32 %v542, %v543
  %v545 = vrot.slane %v544, 1
  %v546 = vadd.f32 %v544, %v545
  %v547 = vrcp.pop %v504
  %v548 = vrcp.pop %v510
  %v549 = vrcp.pop %v516
  %v550 = vrcp.pop %v522
  %v551 = vrcp.pop %v528
  %v552 = vrcp.pop %v534
  %v553 = vrcp.pop %v540
  %v554 = vrcp.pop %v546
  %v555 = vmul.f32 %v504, %v547
  %v556 = vmul.f32 %v510, %v548
  %v557 = vmul.f32 %v516, %v549
  %v558 = vmul.f32 %v522, %v550
  %v559 = vmul.f32 %v528, %v551
  %v560 = vmul.f32 %v534, %v552
  %v561 = vmul.f32 %v540, %v553
  %v562 = vmul.f32 %v546, %v554
  %v563 = vsub.f32 2.0, %v555
  %v564 = vsub.f32 2.0, %v556
  %v565 = vsub.f32 2.0, %v557
  %v566 = vsub.f32 2.0, %v558
  %v567 = vsub.f32 2.0, %v559
  %v568 = vsub.f32 2.0, %v560
  %v569 = vsub.f32 2.0, %v561
  %v570 = vsub.f32 2.0, %v562
  %v571 = vmul.f32 %v547, %v563
  %v572 = vmul.f32 %v548, %v564
  %v573 = vmul.f32 %v549, %v565
  %v574 = vmul.f32 %v550, %v566
  %v575 = vmul.f32 %v551, %v567
  %v576 = vmul.f32 %v552, %v568
  %v577 = vmul.f32 %v553, %v569
  %v578 = vmul.f32 %v554, %v570
  %v579 = vmul.f32 %v484, %v571
  %v580 = vmul.f32 %v486, %v572
  %v581 = vmul.f32 %v488, %v573
  %v582 = vmul.f32 %v490, %v574
  %v583 = vmul.f32 %v492, %v575
  %v584 = vmul.f32 %v494, %v576
  %v585 = vmul.f32 %v496, %v577
  %v586 = vmul.f32 %v498, %v578
  %v587 = vmul.f32 %v579, %v20
  %v588 = vmul.f32 %v580, %v21
  %v589 = vmul.f32 %v581, %v22
  %v590 = vmul.f32 %v582, %v23
  %v591 = vmul.f32 %v583, %v24
  %v592 = vmul.f32 %v584, %v25
  %v593 = vmul.f32 %v585, %v26
  %v594 = vmul.f32 %v586, %v27
  %v595 = vsel %vm64, %v587, 0.0
  %v596 = vrot.slane %v595, 4
  %v597 = vadd.f32 %v595, %v596
  %v598 = vrot.slane %v597, 2
  %v599 = vadd.f32 %v597, %v598
  %v600 = vrot.slane %v599, 1
  %v601 = vadd.f32 %v599, %v600
  %v602 = vsel %vm64, %v588, 0.0
  %v603 = vrot.slane %v602, 4
  %v604 = vadd.f32 %v602, %v603
  %v605 = vrot.slane %v604, 2
  %v606 = vadd.f32 %v604, %v605
  %v607 = vrot.slane %v606, 1
  %v608 = vadd.f32 %v606, %v607
  %v609 = vsel %vm64, %v589, 0.0
  %v610 = vrot.slane %v609, 4
  %v611 = vadd.f32 %v609, %v610
  %v612 = vrot.slane %v611, 2
  %v613 = vadd.f32 %v611, %v612
  %v614 = vrot.slane %v613, 1
  %v615 = vadd.f32 %v613, %v614
  %v616 = vsel %vm64, %v590, 0.0
  %v617 = vrot.slane %v616, 4
  %v618 = vadd.f32 %v616, %v617
  %v619 = vrot.slane %v618, 2
  %v620 = vadd.f32 %v618, %v619
  %v621 = vrot.slane %v620, 1
  %v622 = vadd.f32 %v620, %v621
  %v623 = vsel %vm64, %v591, 0.0
  %v624 = vrot.slane %v623, 4
  %v625 = vadd.f32 %v623, %v624
  %v626 = vrot.slane %v625, 2
  %v627 = vadd.f32 %v625, %v626
  %v628 = vrot.slane %v627, 1
  %v629 = vadd.f32 %v627, %v628
  %v630 = vsel %vm64, %v592, 0.0
  %v631 = vrot.slane %v630, 4
  %v632 = vadd.f32 %v630, %v631
  %v633 = vrot.slane %v632, 2
  %v634 = vadd.f32 %v632, %v633
  %v635 = vrot.slane %v634, 1
  %v636 = vadd.f32 %v634, %v635
  %v637 = vsel %vm64, %v593, 0.0
  %v638 = vrot.slane %v637, 4
  %v639 = vadd.f32 %v637, %v638
  %v640 = vrot.slane %v639, 2
  %v641 = vadd.f32 %v639, %v640
  %v642 = vrot.slane %v641, 1
  %v643 = vadd.f32 %v641, %v642
  %v644 = vsel %vm64, %v594, 0.0
  %v645 = vrot.slane %v644, 4
  %v646 = vadd.f32 %v644, %v645
  %v647 = vrot.slane %v646, 2
  %v648 = vadd.f32 %v646, %v647
  %v649 = vrot.slane %v648, 1
  %v650 = vadd.f32 %v648, %v649
  %vm659 = vcmask 1041409
  %v660 = vsel %vm659, %v608, %v601
  %vm661 = vcmask 1042434
  %v662 = vsel %vm661, %v615, %v660
  %vm663 = vcmask 1043459
  %v664 = vsel %vm663, %v622, %v662
  %vm665 = vcmask 1044484
  %v666 = vsel %vm665, %v629, %v664
  %vm667 = vcmask 1045509
  %v668 = vsel %vm667, %v636, %v666
  %vm669 = vcmask 1046534
  %v670 = vsel %vm669, %v643, %v668
  %vm671 = vcmask 1047559
  %v672 = vsel %vm671, %v650, %v670
  %v682 = vrot.slane %v204, 7
  %v683 = vsel %vm659, %v682, %v203
  %v684 = vrot.slane %v205, 6
  %v685 = vsel %vm661, %v684, %v683
  %v686 = vrot.slane %v206, 5
  %v687 = vsel %vm663, %v686, %v685
  %v688 = vrot.slane %v207, 4
  %v689 = vsel %vm665, %v688, %v687
  %v690 = vrot.slane %v208, 3
  %v691 = vsel %vm667, %v690, %v689
  %v692 = vrot.slane %v209, 2
  %v693 = vsel %vm669, %v692, %v691
  %v694 = vrot.slane %v210, 1
  %v695 = vsel %vm671, %v694, %v693
  %696 = vrot.lane.b32.xlu0 %v695, 64
  %v697 = vpop.permute.xlu0 %696
  %v699 = vsel %vm64, %v672, 0.0
  %v700 = vsel %vm211, %v699, %v697
  %vm701 = vcmask 564224
  %v703 = vsel %vm701, %v700, 0
  %vm705 = vcmask 1044480
  %v707 = vsel %vm705, %v50, 0
  %709 = vmatprep.subr.mxu0 0.0
  %710 = vmatpush1.msra.mxu0 %v42
  %711 = vmatprep.subr.mxu0 0.0
  %712 = vmatpush1.msra.mxu0 %v43
  %713 = vmatprep.subr.mxu0 0.0
  %714 = vmatpush1.msra.mxu0 %v44
  %715 = vmatprep.subr.mxu0 0.0
  %716 = vmatpush1.msra.mxu0 %v45
  %717 = vmatprep.subr.mxu0 0.0
  %718 = vmatpush1.msra.mxu0 %v46
  %719 = vmatprep.subr.mxu0 0.0
  %720 = vmatpush1.msra.mxu0 %v47
  %721 = vmatprep.subr.mxu0 0.0
  %722 = vmatpush1.msra.mxu0 %v48
  %723 = vmatprep.subr.mxu0 0.0
  %724 = vmatpush1.msra.mxu0 %v49
  %725 = vmatprep.subr.mxu0 0.0
  %726 = vmatpush1.msra.mxu0 %v707
  %727 = vmatprep.subr.mxu0 0.0
  %728 = vmatpush1.msra.mxu0 0.0
  %729 = vmatprep.subr.mxu0 0.0
  %730 = vmatpush1.msra.mxu0 0.0
  %731 = vmatprep.subr.mxu0 0.0
  %732 = vmatpush1.msra.mxu0 0.0
  %733 = vmatprep.subr.mxu0 0.0
  %734 = vmatpush1.msra.mxu0 0.0
  %735 = vmatprep.subr.mxu0 0.0
  %736 = vmatpush1.msra.mxu0 0.0
  %737 = vmatprep.subr.mxu0 0.0
  %738 = vmatpush1.msra.mxu0 0.0
  %739 = vmatprep.subr.mxu0 0.0
  %740 = vmatpush1.msra.mxu0 0.0
  %741 = vmatprep.subr.mxu0 0.0
  %742 = vmatpush1.msra.mxu0 0.0
  %743 = vmatprep.subr.mxu0 0.0
  %744 = vmatpush1.msra.mxu0 0.0
  %745 = vmatprep.subr.mxu0 0.0
  %746 = vmatpush1.msra.mxu0 0.0
  %747 = vmatprep.subr.mxu0 0.0
  %748 = vmatpush1.msra.mxu0 0.0
  %749 = vmatprep.subr.mxu0 0.0
  %750 = vmatpush1.msra.mxu0 0.0
  %751 = vmatprep.subr.mxu0 0.0
  %752 = vmatpush1.msra.mxu0 0.0
  %753 = vmatprep.subr.mxu0 0.0
  %754 = vmatpush1.msra.mxu0 0.0
  %755 = vmatprep.subr.mxu0 0.0
  %756 = vmatpush1.msra.mxu0 0.0
  %757 = vmatprep.subr.mxu0 0.0
  %758 = vmatpush1.msra.mxu0 0.0
  %759 = vmatprep.subr.mxu0 0.0
  %760 = vmatpush1.msra.mxu0 0.0
  %761 = vmatprep.subr.mxu0 0.0
  %762 = vmatpush1.msra.mxu0 0.0
  %763 = vmatprep.subr.mxu0 0.0
  %764 = vmatpush1.msra.mxu0 0.0
  %765 = vmatprep.subr.mxu0 0.0
  %766 = vmatpush1.msra.mxu0 0.0
  %767 = vmatprep.subr.mxu0 0.0
  %768 = vmatpush1.msra.mxu0 0.0
  %769 = vmatprep.subr.mxu0 0.0
  %770 = vmatpush1.msra.mxu0 0.0
  %771 = vmatprep.subr.mxu0 0.0
  %772 = vmatpush1.msra.mxu0 0.0
  %773 = vmatprep.mubr.f32.mxu0 0.0
  %774 = vmatmul.mubr.f32.gmra.mrb[0].mxu0 %v703
  %v775 = vpop.f32.mrb[0].mxu0
  %v776 = vadd.f32 0.0, %v775
  %v777 = vpop.f32.mrb[0].mxu0
  %778 = vdwg.mxu0
  %v779 = vxor.u32 %v776, 2147483648
  %v780 = vmul.f32 %v779, 1.442695
  %v781 = vpow.pop %v780
  %v782 = vadd.f32 %v781, 1.0
  %v783 = vrcp.pop %v782
  %v784 = vmul.f32 1.0, %v783
  %v785 = vtanh.pop %v776
  %v786 = vmul.f32 %v784, 0.0
  %788 = vrot.lane.b32.xlu0 %v785, 64
  %v789 = vpop.permute.xlu0 %788
  %v791 = vmul.f32 %v784, %v789
  %793 = vrot.lane.b32.xlu0 %v791, 32
  %v794 = vpop.permute.xlu0 %793
  %v796 = vadd.f32 %v786, %v794
  %v797 = vtanh.pop %v796
  %799 = vrot.lane.b32.xlu0 %v797, 64
  %v800 = vpop.permute.xlu0 %799
  %v802 = vmul.f32 %v784, %v800
  %804 = vrot.lane.b32.xlu0 %v802, 32
  %v805 = vpop.permute.xlu0 %804
  %v807 = vsel %vm64, %v805, %v796
  %v809 = vsel %vm211, %v807, 0
  %811 = vmatprep.subr.mxu0 0.0
  %812 = vmatpush1.msra.mxu0 %v28
  %813 = vmatprep.subr.mxu0 0.0
  %814 = vmatpush1.msra.mxu0 %v29
  %815 = vmatprep.subr.mxu0 0.0
  %816 = vmatpush1.msra.mxu0 %v30
  %817 = vmatprep.subr.mxu0 0.0
  %818 = vmatpush1.msra.mxu0 %v31
  %819 = vmatprep.subr.mxu0 0.0
  %820 = vmatpush1.msra.mxu0 %v32
  %821 = vmatprep.subr.mxu0 0.0
  %822 = vmatpush1.msra.mxu0 %v33
  %823 = vmatprep.subr.mxu0 0.0
  %824 = vmatpush1.msra.mxu0 %v34
  %825 = vmatprep.subr.mxu0 0.0
  %826 = vmatpush1.msra.mxu0 %v35
  %827 = vmatprep.subr.mxu0 0.0
  %828 = vmatpush1.msra.mxu0 0.0
  %829 = vmatprep.subr.mxu0 0.0
  %830 = vmatpush1.msra.mxu0 0.0
  %831 = vmatprep.subr.mxu0 0.0
  %832 = vmatpush1.msra.mxu0 0.0
  %833 = vmatprep.subr.mxu0 0.0
  %834 = vmatpush1.msra.mxu0 0.0
  %835 = vmatprep.subr.mxu0 0.0
  %836 = vmatpush1.msra.mxu0 0.0
  %837 = vmatprep.subr.mxu0 0.0
  %838 = vmatpush1.msra.mxu0 0.0
  %839 = vmatprep.subr.mxu0 0.0
  %840 = vmatpush1.msra.mxu0 0.0
  %841 = vmatprep.subr.mxu0 0.0
  %842 = vmatpush1.msra.mxu0 0.0
  %843 = vmatprep.subr.mxu0 0.0
  %844 = vmatpush1.msra.mxu0 0.0
  %845 = vmatprep.subr.mxu0 0.0
  %846 = vmatpush1.msra.mxu0 0.0
  %847 = vmatprep.subr.mxu0 0.0
  %848 = vmatpush1.msra.mxu0 0.0
  %849 = vmatprep.subr.mxu0 0.0
  %850 = vmatpush1.msra.mxu0 0.0
  %851 = vmatprep.subr.mxu0 0.0
  %852 = vmatpush1.msra.mxu0 0.0
  %853 = vmatprep.subr.mxu0 0.0
  %854 = vmatpush1.msra.mxu0 0.0
  %855 = vmatprep.subr.mxu0 0.0
  %856 = vmatpush1.msra.mxu0 0.0
  %857 = vmatprep.subr.mxu0 0.0
  %858 = vmatpush1.msra.mxu0 0.0
  %859 = vmatprep.subr.mxu0 0.0
  %860 = vmatpush1.msra.mxu0 0.0
  %861 = vmatprep.subr.mxu0 0.0
  %862 = vmatpush1.msra.mxu0 0.0
  %863 = vmatprep.subr.mxu0 0.0
  %864 = vmatpush1.msra.mxu0 0.0
  %865 = vmatprep.subr.mxu0 0.0
  %866 = vmatpush1.msra.mxu0 0.0
  %867 = vmatprep.subr.mxu0 0.0
  %868 = vmatpush1.msra.mxu0 0.0
  %869 = vmatprep.subr.mxu0 0.0
  %870 = vmatpush1.msra.mxu0 0.0
  %871 = vmatprep.subr.mxu0 0.0
  %872 = vmatpush1.msra.mxu0 0.0
  %873 = vmatprep.subr.mxu0 0.0
  %874 = vmatpush1.msra.mxu0 0.0
  %875 = vmatprep.mubr.f32.mxu0 0.0
  %876 = vmatmul.mubr.f32.gmra.mrb[0].mxu0 %v809
  %v877 = vpop.f32.mrb[0].mxu0
  %v878 = vadd.f32 0.0, %v877
  %v879 = vpop.f32.mrb[0].mxu0
  %880 = vdwg.mxu0
  %v882 = vcombine.high %v878, %v878
  %v884 = vunpack.c.l.s4 1966171168
  %v885 = vunpack.c.0.s8 %v884
  %v886 = vlaneseq
  %v887 = vshrl.u32 %v886, 7
  %v888 = vsub.s32 %v885, %v887
  %v889 = vrot.slane %v878, %v888
  %v891 = vunpack.c.l.s4 1966171168
  %v892 = vunpack.c.0.s8 %v891
  %v893 = vlaneseq
  %v894 = vshrl.u32 %v893, 7
  %v895 = vsub.s32 %v892, %v894
  %v896 = vrot.slane %v882, %v895
  %v897 = vcombine.high %v889, %v889
  %v898 = vcombine.high %v896, %v896
  %v900 = vunpack.c.l.s4 1966171168
  %v901 = vunpack.c.0.s8 %v900
  %v902 = vlaneseq
  %v903 = vshrl.u32 %v902, 7
  %v904 = vsub.s32 %v901, %v903
  %v905 = vrot.slane %v889, %v904
  %v907 = vunpack.c.l.s4 1966171168
  %v908 = vunpack.c.0.s8 %v907
  %v909 = vlaneseq
  %v910 = vshrl.u32 %v909, 7
  %v911 = vsub.s32 %v908, %v910
  %v912 = vrot.slane %v896, %v911
  %v914 = vunpack.c.l.s4 1966171168
  %v915 = vunpack.c.0.s8 %v914
  %v916 = vlaneseq
  %v917 = vshrl.u32 %v916, 7
  %v918 = vsub.s32 %v915, %v917
  %v919 = vrot.slane %v897, %v918
  %v921 = vunpack.c.l.s4 1966171168
  %v922 = vunpack.c.0.s8 %v921
  %v923 = vlaneseq
  %v924 = vshrl.u32 %v923, 7
  %v925 = vsub.s32 %v922, %v924
  %v926 = vrot.slane %v898, %v925
  %v927 = vcombine.high %v905, %v905
  %v928 = vcombine.high %v912, %v912
  %v929 = vcombine.high %v919, %v919
  %v930 = vcombine.high %v926, %v926
  %v931 = vlaneseq
  %v932 = vshrl.u32 %v931, 7
  %v933 = vsub.s32 0, %v932
  %v934 = vrot.slane %v905, %v933
  %v935 = vlaneseq
  %v936 = vshrl.u32 %v935, 7
  %v937 = vsub.s32 0, %v936
  %v938 = vrot.slane %v919, %v937
  %v939 = vlaneseq
  %v940 = vshrl.u32 %v939, 7
  %v941 = vsub.s32 0, %v940
  %v942 = vrot.slane %v927, %v941
  %v943 = vlaneseq
  %v944 = vshrl.u32 %v943, 7
  %v945 = vsub.s32 0, %v944
  %v946 = vrot.slane %v929, %v945
  %v947 = vlaneseq
  %v948 = vshrl.u32 %v947, 7
  %v949 = vsub.s32 0, %v948
  %v950 = vrot.slane %v912, %v949
  %v951 = vlaneseq
  %v952 = vshrl.u32 %v951, 7
  %v953 = vsub.s32 0, %v952
  %v954 = vrot.slane %v926, %v953
  %v955 = vlaneseq
  %v956 = vshrl.u32 %v955, 7
  %v957 = vsub.s32 0, %v956
  %v958 = vrot.slane %v928, %v957
  %v959 = vlaneseq
  %v960 = vshrl.u32 %v959, 7
  %v961 = vsub.s32 0, %v960
  %v962 = vrot.slane %v930, %v961
  %v971 = vadd.f32 %v156, %v934
  %v972 = vadd.f32 %v161, %v938
  %v973 = vadd.f32 %v166, %v942
  %v974 = vadd.f32 %v171, %v946
  %v975 = vadd.f32 %v176, %v950
  %v976 = vadd.f32 %v181, %v954
  %v977 = vadd.f32 %v186, %v958
  %v978 = vadd.f32 %v191, %v962
  %v979 = vtanh.pop %v971
  %v980 = vtanh.pop %v972
  %v981 = vtanh.pop %v973
  %v982 = vtanh.pop %v974
  %v983 = vtanh.pop %v975
  %v984 = vtanh.pop %v976
  %v985 = vtanh.pop %v977
  %v986 = vtanh.pop %v978
  %v987 = vmul.f32 %v979, %v394
  %v988 = vmul.f32 %v980, %v394
  %v989 = vmul.f32 %v981, %v394
  %v990 = vmul.f32 %v982, %v394
  %v991 = vmul.f32 %v983, %v394
  %v992 = vmul.f32 %v984, %v394
  %v993 = vmul.f32 %v985, %v394
  %v994 = vmul.f32 %v986, %v394
  %v995 = vsel %vm64, %v987, 0.0
  %996 = vadd.xlane.f32.xlu0 %v995
  %v997 = vpop.xlane.xlu0 %996
  %v998 = vsel %vm64, %v988, 0.0
  %999 = vadd.xlane.f32.xlu0 %v998
  %v1000 = vpop.xlane.xlu0 %999
  %v1001 = vsel %vm64, %v989, 0.0
  %1002 = vadd.xlane.f32.xlu0 %v1001
  %v1003 = vpop.xlane.xlu0 %1002
  %v1004 = vsel %vm64, %v990, 0.0
  %1005 = vadd.xlane.f32.xlu0 %v1004
  %v1006 = vpop.xlane.xlu0 %1005
  %v1007 = vsel %vm64, %v991, 0.0
  %1008 = vadd.xlane.f32.xlu0 %v1007
  %v1009 = vpop.xlane.xlu0 %1008
  %v1010 = vsel %vm64, %v992, 0.0
  %1011 = vadd.xlane.f32.xlu0 %v1010
  %v1012 = vpop.xlane.xlu0 %1011
  %v1013 = vsel %vm64, %v993, 0.0
  %1014 = vadd.xlane.f32.xlu0 %v1013
  %v1015 = vpop.xlane.xlu0 %1014
  %v1016 = vsel %vm64, %v994, 0.0
  %1017 = vadd.xlane.f32.xlu0 %v1016
  %v1018 = vpop.xlane.xlu0 %1017
  %v1019 = vrot.slane %v997, 4
  %v1020 = vmax.f32 %v997, %v1019
  %v1021 = vrot.slane %v1020, 2
  %v1022 = vmax.f32 %v1020, %v1021
  %v1023 = vrot.slane %v1022, 1
  %v1024 = vmax.f32 %v1022, %v1023
  %v1025 = vrot.slane %v1000, 4
  %v1026 = vmax.f32 %v1000, %v1025
  %v1027 = vrot.slane %v1026, 2
  %v1028 = vmax.f32 %v1026, %v1027
  %v1029 = vrot.slane %v1028, 1
  %v1030 = vmax.f32 %v1028, %v1029
  %v1031 = vrot.slane %v1003, 4
  %v1032 = vmax.f32 %v1003, %v1031
  %v1033 = vrot.slane %v1032, 2
  %v1034 = vmax.f32 %v1032, %v1033
  %v1035 = vrot.slane %v1034, 1
  %v1036 = vmax.f32 %v1034, %v1035
  %v1037 = vrot.slane %v1006, 4
  %v1038 = vmax.f32 %v1006, %v1037
  %v1039 = vrot.slane %v1038, 2
  %v1040 = vmax.f32 %v1038, %v1039
  %v1041 = vrot.slane %v1040, 1
  %v1042 = vmax.f32 %v1040, %v1041
  %v1043 = vrot.slane %v1009, 4
  %v1044 = vmax.f32 %v1009, %v1043
  %v1045 = vrot.slane %v1044, 2
  %v1046 = vmax.f32 %v1044, %v1045
  %v1047 = vrot.slane %v1046, 1
  %v1048 = vmax.f32 %v1046, %v1047
  %v1049 = vrot.slane %v1012, 4
  %v1050 = vmax.f32 %v1012, %v1049
  %v1051 = vrot.slane %v1050, 2
  %v1052 = vmax.f32 %v1050, %v1051
  %v1053 = vrot.slane %v1052, 1
  %v1054 = vmax.f32 %v1052, %v1053
  %v1055 = vrot.slane %v1015, 4
  %v1056 = vmax.f32 %v1015, %v1055
  %v1057 = vrot.slane %v1056, 2
  %v1058 = vmax.f32 %v1056, %v1057
  %v1059 = vrot.slane %v1058, 1
  %v1060 = vmax.f32 %v1058, %v1059
  %v1061 = vrot.slane %v1018, 4
  %v1062 = vmax.f32 %v1018, %v1061
  %v1063 = vrot.slane %v1062, 2
  %v1064 = vmax.f32 %v1062, %v1063
  %v1065 = vrot.slane %v1064, 1
  %v1066 = vmax.f32 %v1064, %v1065
  %v1067 = vsub.f32 %v997, %v1024
  %v1068 = vsub.f32 %v1000, %v1030
  %v1069 = vsub.f32 %v1003, %v1036
  %v1070 = vsub.f32 %v1006, %v1042
  %v1071 = vsub.f32 %v1009, %v1048
  %v1072 = vsub.f32 %v1012, %v1054
  %v1073 = vsub.f32 %v1015, %v1060
  %v1074 = vsub.f32 %v1018, %v1066
  %v1075 = vmul.f32 %v1067, 1.442695
  %v1076 = vpow.pop %v1075
  %v1077 = vmul.f32 %v1068, 1.442695
  %v1078 = vpow.pop %v1077
  %v1079 = vmul.f32 %v1069, 1.442695
  %v1080 = vpow.pop %v1079
  %v1081 = vmul.f32 %v1070, 1.442695
  %v1082 = vpow.pop %v1081
  %v1083 = vmul.f32 %v1071, 1.442695
  %v1084 = vpow.pop %v1083
  %v1085 = vmul.f32 %v1072, 1.442695
  %v1086 = vpow.pop %v1085
  %v1087 = vmul.f32 %v1073, 1.442695
  %v1088 = vpow.pop %v1087
  %v1089 = vmul.f32 %v1074, 1.442695
  %v1090 = vpow.pop %v1089
  %v1091 = vrot.slane %v1076, 4
  %v1092 = vadd.f32 %v1076, %v1091
  %v1093 = vrot.slane %v1092, 2
  %v1094 = vadd.f32 %v1092, %v1093
  %v1095 = vrot.slane %v1094, 1
  %v1096 = vadd.f32 %v1094, %v1095
  %v1097 = vrot.slane %v1078, 4
  %v1098 = vadd.f32 %v1078, %v1097
  %v1099 = vrot.slane %v1098, 2
  %v1100 = vadd.f32 %v1098, %v1099
  %v1101 = vrot.slane %v1100, 1
  %v1102 = vadd.f32 %v1100, %v1101
  %v1103 = vrot.slane %v1080, 4
  %v1104 = vadd.f32 %v1080, %v1103
  %v1105 = vrot.slane %v1104, 2
  %v1106 = vadd.f32 %v1104, %v1105
  %v1107 = vrot.slane %v1106, 1
  %v1108 = vadd.f32 %v1106, %v1107
  %v1109 = vrot.slane %v1082, 4
  %v1110 = vadd.f32 %v1082, %v1109
  %v1111 = vrot.slane %v1110, 2
  %v1112 = vadd.f32 %v1110, %v1111
  %v1113 = vrot.slane %v1112, 1
  %v1114 = vadd.f32 %v1112, %v1113
  %v1115 = vrot.slane %v1084, 4
  %v1116 = vadd.f32 %v1084, %v1115
  %v1117 = vrot.slane %v1116, 2
  %v1118 = vadd.f32 %v1116, %v1117
  %v1119 = vrot.slane %v1118, 1
  %v1120 = vadd.f32 %v1118, %v1119
  %v1121 = vrot.slane %v1086, 4
  %v1122 = vadd.f32 %v1086, %v1121
  %v1123 = vrot.slane %v1122, 2
  %v1124 = vadd.f32 %v1122, %v1123
  %v1125 = vrot.slane %v1124, 1
  %v1126 = vadd.f32 %v1124, %v1125
  %v1127 = vrot.slane %v1088, 4
  %v1128 = vadd.f32 %v1088, %v1127
  %v1129 = vrot.slane %v1128, 2
  %v1130 = vadd.f32 %v1128, %v1129
  %v1131 = vrot.slane %v1130, 1
  %v1132 = vadd.f32 %v1130, %v1131
  %v1133 = vrot.slane %v1090, 4
  %v1134 = vadd.f32 %v1090, %v1133
  %v1135 = vrot.slane %v1134, 2
  %v1136 = vadd.f32 %v1134, %v1135
  %v1137 = vrot.slane %v1136, 1
  %v1138 = vadd.f32 %v1136, %v1137
  %v1139 = vrcp.pop %v1096
  %v1140 = vrcp.pop %v1102
  %v1141 = vrcp.pop %v1108
  %v1142 = vrcp.pop %v1114
  %v1143 = vrcp.pop %v1120
  %v1144 = vrcp.pop %v1126
  %v1145 = vrcp.pop %v1132
  %v1146 = vrcp.pop %v1138
  %v1147 = vmul.f32 %v1096, %v1139
  %v1148 = vmul.f32 %v1102, %v1140
  %v1149 = vmul.f32 %v1108, %v1141
  %v1150 = vmul.f32 %v1114, %v1142
  %v1151 = vmul.f32 %v1120, %v1143
  %v1152 = vmul.f32 %v1126, %v1144
  %v1153 = vmul.f32 %v1132, %v1145
  %v1154 = vmul.f32 %v1138, %v1146
  %v1155 = vsub.f32 2.0, %v1147
  %v1156 = vsub.f32 2.0, %v1148
  %v1157 = vsub.f32 2.0, %v1149
  %v1158 = vsub.f32 2.0, %v1150
  %v1159 = vsub.f32 2.0, %v1151
  %v1160 = vsub.f32 2.0, %v1152
  %v1161 = vsub.f32 2.0, %v1153
  %v1162 = vsub.f32 2.0, %v1154
  %v1163 = vmul.f32 %v1139, %v1155
  %v1164 = vmul.f32 %v1140, %v1156
  %v1165 = vmul.f32 %v1141, %v1157
  %v1166 = vmul.f32 %v1142, %v1158
  %v1167 = vmul.f32 %v1143, %v1159
  %v1168 = vmul.f32 %v1144, %v1160
  %v1169 = vmul.f32 %v1145, %v1161
  %v1170 = vmul.f32 %v1146, %v1162
  %v1171 = vmul.f32 %v1076, %v1163
  %v1172 = vmul.f32 %v1078, %v1164
  %v1173 = vmul.f32 %v1080, %v1165
  %v1174 = vmul.f32 %v1082, %v1166
  %v1175 = vmul.f32 %v1084, %v1167
  %v1176 = vmul.f32 %v1086, %v1168
  %v1177 = vmul.f32 %v1088, %v1169
  %v1178 = vmul.f32 %v1090, %v1170
  %v1179 = vmul.f32 %v1171, %v20
  %v1180 = vmul.f32 %v1172, %v21
  %v1181 = vmul.f32 %v1173, %v22
  %v1182 = vmul.f32 %v1174, %v23
  %v1183 = vmul.f32 %v1175, %v24
  %v1184 = vmul.f32 %v1176, %v25
  %v1185 = vmul.f32 %v1177, %v26
  %v1186 = vmul.f32 %v1178, %v27
  %v1187 = vsel %vm64, %v1179, 0.0
  %v1188 = vrot.slane %v1187, 4
  %v1189 = vadd.f32 %v1187, %v1188
  %v1190 = vrot.slane %v1189, 2
  %v1191 = vadd.f32 %v1189, %v1190
  %v1192 = vrot.slane %v1191, 1
  %v1193 = vadd.f32 %v1191, %v1192
  %v1194 = vsel %vm64, %v1180, 0.0
  %v1195 = vrot.slane %v1194, 4
  %v1196 = vadd.f32 %v1194, %v1195
  %v1197 = vrot.slane %v1196, 2
  %v1198 = vadd.f32 %v1196, %v1197
  %v1199 = vrot.slane %v1198, 1
  %v1200 = vadd.f32 %v1198, %v1199
  %v1201 = vsel %vm64, %v1181, 0.0
  %v1202 = vrot.slane %v1201, 4
  %v1203 = vadd.f32 %v1201, %v1202
  %v1204 = vrot.slane %v1203, 2
  %v1205 = vadd.f32 %v1203, %v1204
  %v1206 = vrot.slane %v1205, 1
  %v1207 = vadd.f32 %v1205, %v1206
  %v1208 = vsel %vm64, %v1182, 0.0
  %v1209 = vrot.slane %v1208, 4
  %v1210 = vadd.f32 %v1208, %v1209
  %v1211 = vrot.slane %v1210, 2
  %v1212 = vadd.f32 %v1210, %v1211
  %v1213 = vrot.slane %v1212, 1
  %v1214 = vadd.f32 %v1212, %v1213
  %v1215 = vsel %vm64, %v1183, 0.0
  %v1216 = vrot.slane %v1215, 4
  %v1217 = vadd.f32 %v1215, %v1216
  %v1218 = vrot.slane %v1217, 2
  %v1219 = vadd.f32 %v1217, %v1218
  %v1220 = vrot.slane %v1219, 1
  %v1221 = vadd.f32 %v1219, %v1220
  %v1222 = vsel %vm64, %v1184, 0.0
  %v1223 = vrot.slane %v1222, 4
  %v1224 = vadd.f32 %v1222, %v1223
  %v1225 = vrot.slane %v1224, 2
  %v1226 = vadd.f32 %v1224, %v1225
  %v1227 = vrot.slane %v1226, 1
  %v1228 = vadd.f32 %v1226, %v1227
  %v1229 = vsel %vm64, %v1185, 0.0
  %v1230 = vrot.slane %v1229, 4
  %v1231 = vadd.f32 %v1229, %v1230
  %v1232 = vrot.slane %v1231, 2
  %v1233 = vadd.f32 %v1231, %v1232
  %v1234 = vrot.slane %v1233, 1
  %v1235 = vadd.f32 %v1233, %v1234
  %v1236 = vsel %vm64, %v1186, 0.0
  %v1237 = vrot.slane %v1236, 4
  %v1238 = vadd.f32 %v1236, %v1237
  %v1239 = vrot.slane %v1238, 2
  %v1240 = vadd.f32 %v1238, %v1239
  %v1241 = vrot.slane %v1240, 1
  %v1242 = vadd.f32 %v1240, %v1241
  %v1251 = vsel %vm659, %v1200, %v1193
  %v1252 = vsel %vm661, %v1207, %v1251
  %v1253 = vsel %vm663, %v1214, %v1252
  %v1254 = vsel %vm665, %v1221, %v1253
  %v1255 = vsel %vm667, %v1228, %v1254
  %v1256 = vsel %vm669, %v1235, %v1255
  %v1257 = vsel %vm671, %v1242, %v1256
  %1259 = vrot.lane.b32.xlu0 %v802, 64
  %v1260 = vpop.permute.xlu0 %1259
  %v1262 = vrot.slane %v203, 1
  %v1263 = vsel %vm659, %v204, %v1262
  %v1264 = vrot.slane %v205, 7
  %v1265 = vsel %vm661, %v1264, %v1263
  %v1266 = vrot.slane %v206, 6
  %v1267 = vsel %vm663, %v1266, %v1265
  %v1268 = vrot.slane %v207, 5
  %v1269 = vsel %vm665, %v1268, %v1267
  %v1270 = vrot.slane %v208, 4
  %v1271 = vsel %vm667, %v1270, %v1269
  %v1272 = vrot.slane %v209, 3
  %v1273 = vsel %vm669, %v1272, %v1271
  %v1274 = vrot.slane %v210, 2
  %v1275 = vsel %vm671, %v1274, %v1273
  %1276 = vrot.lane.b32.xlu0 %v1275, 64
  %v1277 = vpop.permute.xlu0 %1276
  %v1279 = vsel %vm64, %v1257, %v1260
  %v1280 = vsel %vm211, %v1279, %v1277
  %v1282 = vsel %vm701, %v1280, 0
  %1284 = vmatprep.subr.mxu0 0.0
  %1285 = vmatpush1.msra.mxu0 %v42
  %1286 = vmatprep.subr.mxu0 0.0
  %1287 = vmatpush1.msra.mxu0 %v43
  %1288 = vmatprep.subr.mxu0 0.0
  %1289 = vmatpush1.msra.mxu0 %v44
  %1290 = vmatprep.subr.mxu0 0.0
  %1291 = vmatpush1.msra.mxu0 %v45
  %1292 = vmatprep.subr.mxu0 0.0
  %1293 = vmatpush1.msra.mxu0 %v46
  %1294 = vmatprep.subr.mxu0 0.0
  %1295 = vmatpush1.msra.mxu0 %v47
  %1296 = vmatprep.subr.mxu0 0.0
  %1297 = vmatpush1.msra.mxu0 %v48
  %1298 = vmatprep.subr.mxu0 0.0
  %1299 = vmatpush1.msra.mxu0 %v49
  %1300 = vmatprep.subr.mxu0 0.0
  %1301 = vmatpush1.msra.mxu0 %v707
  %1302 = vmatprep.subr.mxu0 0.0
  %1303 = vmatpush1.msra.mxu0 0.0
  %1304 = vmatprep.subr.mxu0 0.0
  %1305 = vmatpush1.msra.mxu0 0.0
  %1306 = vmatprep.subr.mxu0 0.0
  %1307 = vmatpush1.msra.mxu0 0.0
  %1308 = vmatprep.subr.mxu0 0.0
  %1309 = vmatpush1.msra.mxu0 0.0
  %1310 = vmatprep.subr.mxu0 0.0
  %1311 = vmatpush1.msra.mxu0 0.0
  %1312 = vmatprep.subr.mxu0 0.0
  %1313 = vmatpush1.msra.mxu0 0.0
  %1314 = vmatprep.subr.mxu0 0.0
  %1315 = vmatpush1.msra.mxu0 0.0
  %1316 = vmatprep.subr.mxu0 0.0
  %1317 = vmatpush1.msra.mxu0 0.0
  %1318 = vmatprep.subr.mxu0 0.0
  %1319 = vmatpush1.msra.mxu0 0.0
  %1320 = vmatprep.subr.mxu0 0.0
  %1321 = vmatpush1.msra.mxu0 0.0
  %1322 = vmatprep.subr.mxu0 0.0
  %1323 = vmatpush1.msra.mxu0 0.0
  %1324 = vmatprep.subr.mxu0 0.0
  %1325 = vmatpush1.msra.mxu0 0.0
  %1326 = vmatprep.subr.mxu0 0.0
  %1327 = vmatpush1.msra.mxu0 0.0
  %1328 = vmatprep.subr.mxu0 0.0
  %1329 = vmatpush1.msra.mxu0 0.0
  %1330 = vmatprep.subr.mxu0 0.0
  %1331 = vmatpush1.msra.mxu0 0.0
  %1332 = vmatprep.subr.mxu0 0.0
  %1333 = vmatpush1.msra.mxu0 0.0
  %1334 = vmatprep.subr.mxu0 0.0
  %1335 = vmatpush1.msra.mxu0 0.0
  %1336 = vmatprep.subr.mxu0 0.0
  %1337 = vmatpush1.msra.mxu0 0.0
  %1338 = vmatprep.subr.mxu0 0.0
  %1339 = vmatpush1.msra.mxu0 0.0
  %1340 = vmatprep.subr.mxu0 0.0
  %1341 = vmatpush1.msra.mxu0 0.0
  %1342 = vmatprep.subr.mxu0 0.0
  %1343 = vmatpush1.msra.mxu0 0.0
  %1344 = vmatprep.subr.mxu0 0.0
  %1345 = vmatpush1.msra.mxu0 0.0
  %1346 = vmatprep.subr.mxu0 0.0
  %1347 = vmatpush1.msra.mxu0 0.0
  %1348 = vmatprep.mubr.f32.mxu0 0.0
  %1349 = vmatmul.mubr.f32.gmra.mrb[0].mxu0 %v1282
  %v1350 = vpop.f32.mrb[0].mxu0
  %v1351 = vadd.f32 0.0, %v1350
  %v1352 = vpop.f32.mrb[0].mxu0
  %1353 = vdwg.mxu0
  %v1354 = vxor.u32 %v1351, 2147483648
  %v1355 = vmul.f32 %v1354, 1.442695
  %v1356 = vpow.pop %v1355
  %v1357 = vadd.f32 %v1356, 1.0
  %v1358 = vrcp.pop %v1357
  %v1359 = vmul.f32 1.0, %v1358
  %v1360 = vtanh.pop %v1351
  %v1361 = vmul.f32 %v1359, %v796
  %1363 = vrot.lane.b32.xlu0 %v1360, 64
  %v1364 = vpop.permute.xlu0 %1363
  %v1366 = vmul.f32 %v1359, %v1364
  %1368 = vrot.lane.b32.xlu0 %v1366, 32
  %v1369 = vpop.permute.xlu0 %1368
  %v1371 = vadd.f32 %v1361, %v1369
  %v1372 = vtanh.pop %v1371
  %1374 = vrot.lane.b32.xlu0 %v1372, 64
  %v1375 = vpop.permute.xlu0 %1374
  %v1377 = vmul.f32 %v1359, %v1375
  %1379 = vrot.lane.b32.xlu0 %v1377, 32
  %v1380 = vpop.permute.xlu0 %1379
  %v1382 = vsel %vm64, %v1380, %v1371
  %v1384 = vsel %vm211, %v1382, 0
  %1386 = vmatprep.subr.mxu0 0.0
  %1387 = vmatpush1.msra.mxu0 %v28
  %1388 = vmatprep.subr.mxu0 0.0
  %1389 = vmatpush1.msra.mxu0 %v29
  %1390 = vmatprep.subr.mxu0 0.0
  %1391 = vmatpush1.msra.mxu0 %v30
  %1392 = vmatprep.subr.mxu0 0.0
  %1393 = vmatpush1.msra.mxu0 %v31
  %1394 = vmatprep.subr.mxu0 0.0
  %1395 = vmatpush1.msra.mxu0 %v32
  %1396 = vmatprep.subr.mxu0 0.0
  %1397 = vmatpush1.msra.mxu0 %v33
  %1398 = vmatprep.subr.mxu0 0.0
  %1399 = vmatpush1.msra.mxu0 %v34
  %1400 = vmatprep.subr.mxu0 0.0
  %1401 = vmatpush1.msra.mxu0 %v35
  %1402 = vmatprep.subr.mxu0 0.0
  %1403 = vmatpush1.msra.mxu0 0.0
  %1404 = vmatprep.subr.mxu0 0.0
  %1405 = vmatpush1.msra.mxu0 0.0
  %1406 = vmatprep.subr.mxu0 0.0
  %1407 = vmatpush1.msra.mxu0 0.0
  %1408 = vmatprep.subr.mxu0 0.0
  %1409 = vmatpush1.msra.mxu0 0.0
  %1410 = vmatprep.subr.mxu0 0.0
  %1411 = vmatpush1.msra.mxu0 0.0
  %1412 = vmatprep.subr.mxu0 0.0
  %1413 = vmatpush1.msra.mxu0 0.0
  %1414 = vmatprep.subr.mxu0 0.0
  %1415 = vmatpush1.msra.mxu0 0.0
  %1416 = vmatprep.subr.mxu0 0.0
  %1417 = vmatpush1.msra.mxu0 0.0
  %1418 = vmatprep.subr.mxu0 0.0
  %1419 = vmatpush1.msra.mxu0 0.0
  %1420 = vmatprep.subr.mxu0 0.0
  %1421 = vmatpush1.msra.mxu0 0.0
  %1422 = vmatprep.subr.mxu0 0.0
  %1423 = vmatpush1.msra.mxu0 0.0
  %1424 = vmatprep.subr.mxu0 0.0
  %1425 = vmatpush1.msra.mxu0 0.0
  %1426 = vmatprep.subr.mxu0 0.0
  %1427 = vmatpush1.msra.mxu0 0.0
  %1428 = vmatprep.subr.mxu0 0.0
  %1429 = vmatpush1.msra.mxu0 0.0
  %1430 = vmatprep.subr.mxu0 0.0
  %1431 = vmatpush1.msra.mxu0 0.0
  %1432 = vmatprep.subr.mxu0 0.0
  %1433 = vmatpush1.msra.mxu0 0.0
  %1434 = vmatprep.subr.mxu0 0.0
  %1435 = vmatpush1.msra.mxu0 0.0
  %1436 = vmatprep.subr.mxu0 0.0
  %1437 = vmatpush1.msra.mxu0 0.0
  %1438 = vmatprep.subr.mxu0 0.0
  %1439 = vmatpush1.msra.mxu0 0.0
  %1440 = vmatprep.subr.mxu0 0.0
  %1441 = vmatpush1.msra.mxu0 0.0
  %1442 = vmatprep.subr.mxu0 0.0
  %1443 = vmatpush1.msra.mxu0 0.0
  %1444 = vmatprep.subr.mxu0 0.0
  %1445 = vmatpush1.msra.mxu0 0.0
  %1446 = vmatprep.subr.mxu0 0.0
  %1447 = vmatpush1.msra.mxu0 0.0
  %1448 = vmatprep.subr.mxu0 0.0
  %1449 = vmatpush1.msra.mxu0 0.0
  %1450 = vmatprep.mubr.f32.mxu0 0.0
  %1451 = vmatmul.mubr.f32.gmra.mrb[0].mxu0 %v1384
  %v1452 = vpop.f32.mrb[0].mxu0
  %v1453 = vadd.f32 0.0, %v1452
  %v1454 = vpop.f32.mrb[0].mxu0
  %1455 = vdwg.mxu0
  %v1457 = vcombine.high %v1453, %v1453
  %v1459 = vunpack.c.l.s4 1966171168
  %v1460 = vunpack.c.0.s8 %v1459
  %v1461 = vlaneseq
  %v1462 = vshrl.u32 %v1461, 7
  %v1463 = vsub.s32 %v1460, %v1462
  %v1464 = vrot.slane %v1453, %v1463
  %v1466 = vunpack.c.l.s4 1966171168
  %v1467 = vunpack.c.0.s8 %v1466
  %v1468 = vlaneseq
  %v1469 = vshrl.u32 %v1468, 7
  %v1470 = vsub.s32 %v1467, %v1469
  %v1471 = vrot.slane %v1457, %v1470
  %v1472 = vcombine.high %v1464, %v1464
  %v1473 = vcombine.high %v1471, %v1471
  %v1475 = vunpack.c.l.s4 1966171168
  %v1476 = vunpack.c.0.s8 %v1475
  %v1477 = vlaneseq
  %v1478 = vshrl.u32 %v1477, 7
  %v1479 = vsub.s32 %v1476, %v1478
  %v1480 = vrot.slane %v1464, %v1479
  %v1482 = vunpack.c.l.s4 1966171168
  %v1483 = vunpack.c.0.s8 %v1482
  %v1484 = vlaneseq
  %v1485 = vshrl.u32 %v1484, 7
  %v1486 = vsub.s32 %v1483, %v1485
  %v1487 = vrot.slane %v1471, %v1486
  %v1489 = vunpack.c.l.s4 1966171168
  %v1490 = vunpack.c.0.s8 %v1489
  %v1491 = vlaneseq
  %v1492 = vshrl.u32 %v1491, 7
  %v1493 = vsub.s32 %v1490, %v1492
  %v1494 = vrot.slane %v1472, %v1493
  %v1496 = vunpack.c.l.s4 1966171168
  %v1497 = vunpack.c.0.s8 %v1496
  %v1498 = vlaneseq
  %v1499 = vshrl.u32 %v1498, 7
  %v1500 = vsub.s32 %v1497, %v1499
  %v1501 = vrot.slane %v1473, %v1500
  %v1502 = vcombine.high %v1480, %v1480
  %v1503 = vcombine.high %v1487, %v1487
  %v1504 = vcombine.high %v1494, %v1494
  %v1505 = vcombine.high %v1501, %v1501
  %v1506 = vlaneseq
  %v1507 = vshrl.u32 %v1506, 7
  %v1508 = vsub.s32 0, %v1507
  %v1509 = vrot.slane %v1480, %v1508
  %v1510 = vlaneseq
  %v1511 = vshrl.u32 %v1510, 7
  %v1512 = vsub.s32 0, %v1511
  %v1513 = vrot.slane %v1494, %v1512
  %v1514 = vlaneseq
  %v1515 = vshrl.u32 %v1514, 7
  %v1516 = vsub.s32 0, %v1515
  %v1517 = vrot.slane %v1502, %v1516
  %v1518 = vlaneseq
  %v1519 = vshrl.u32 %v1518, 7
  %v1520 = vsub.s32 0, %v1519
  %v1521 = vrot.slane %v1504, %v1520
  %v1522 = vlaneseq
  %v1523 = vshrl.u32 %v1522, 7
  %v1524 = vsub.s32 0, %v1523
  %v1525 = vrot.slane %v1487, %v1524
  %v1526 = vlaneseq
  %v1527 = vshrl.u32 %v1526, 7
  %v1528 = vsub.s32 0, %v1527
  %v1529 = vrot.slane %v1501, %v1528
  %v1530 = vlaneseq
  %v1531 = vshrl.u32 %v1530, 7
  %v1532 = vsub.s32 0, %v1531
  %v1533 = vrot.slane %v1503, %v1532
  %v1534 = vlaneseq
  %v1535 = vshrl.u32 %v1534, 7
  %v1536 = vsub.s32 0, %v1535
  %v1537 = vrot.slane %v1505, %v1536
  %v1546 = vadd.f32 %v156, %v1509
  %v1547 = vadd.f32 %v161, %v1513
  %v1548 = vadd.f32 %v166, %v1517
  %v1549 = vadd.f32 %v171, %v1521
  %v1550 = vadd.f32 %v176, %v1525
  %v1551 = vadd.f32 %v181, %v1529
  %v1552 = vadd.f32 %v186, %v1533
  %v1553 = vadd.f32 %v191, %v1537
  %v1554 = vtanh.pop %v1546
  %v1555 = vtanh.pop %v1547
  %v1556 = vtanh.pop %v1548
  %v1557 = vtanh.pop %v1549
  %v1558 = vtanh.pop %v1550
  %v1559 = vtanh.pop %v1551
  %v1560 = vtanh.pop %v1552
  %v1561 = vtanh.pop %v1553
  %v1562 = vmul.f32 %v1554, %v394
  %v1563 = vmul.f32 %v1555, %v394
  %v1564 = vmul.f32 %v1556, %v394
  %v1565 = vmul.f32 %v1557, %v394
  %v1566 = vmul.f32 %v1558, %v394
  %v1567 = vmul.f32 %v1559, %v394
  %v1568 = vmul.f32 %v1560, %v394
  %v1569 = vmul.f32 %v1561, %v394
  %v1570 = vsel %vm64, %v1562, 0.0
  %1571 = vadd.xlane.f32.xlu0 %v1570
  %v1572 = vpop.xlane.xlu0 %1571
  %v1573 = vsel %vm64, %v1563, 0.0
  %1574 = vadd.xlane.f32.xlu0 %v1573
  %v1575 = vpop.xlane.xlu0 %1574
  %v1576 = vsel %vm64, %v1564, 0.0
  %1577 = vadd.xlane.f32.xlu0 %v1576
  %v1578 = vpop.xlane.xlu0 %1577
  %v1579 = vsel %vm64, %v1565, 0.0
  %1580 = vadd.xlane.f32.xlu0 %v1579
  %v1581 = vpop.xlane.xlu0 %1580
  %v1582 = vsel %vm64, %v1566, 0.0
  %1583 = vadd.xlane.f32.xlu0 %v1582
  %v1584 = vpop.xlane.xlu0 %1583
  %v1585 = vsel %vm64, %v1567, 0.0
  %1586 = vadd.xlane.f32.xlu0 %v1585
  %v1587 = vpop.xlane.xlu0 %1586
  %v1588 = vsel %vm64, %v1568, 0.0
  %1589 = vadd.xlane.f32.xlu0 %v1588
  %v1590 = vpop.xlane.xlu0 %1589
  %v1591 = vsel %vm64, %v1569, 0.0
  %1592 = vadd.xlane.f32.xlu0 %v1591
  %v1593 = vpop.xlane.xlu0 %1592
  %v1594 = vrot.slane %v1572, 4
  %v1595 = vmax.f32 %v1572, %v1594
  %v1596 = vrot.slane %v1595, 2
  %v1597 = vmax.f32 %v1595, %v1596
  %v1598 = vrot.slane %v1597, 1
  %v1599 = vmax.f32 %v1597, %v1598
  %v1600 = vrot.slane %v1575, 4
  %v1601 = vmax.f32 %v1575, %v1600
  %v1602 = vrot.slane %v1601, 2
  %v1603 = vmax.f32 %v1601, %v1602
  %v1604 = vrot.slane %v1603, 1
  %v1605 = vmax.f32 %v1603, %v1604
  %v1606 = vrot.slane %v1578, 4
  %v1607 = vmax.f32 %v1578, %v1606
  %v1608 = vrot.slane %v1607, 2
  %v1609 = vmax.f32 %v1607, %v1608
  %v1610 = vrot.slane %v1609, 1
  %v1611 = vmax.f32 %v1609, %v1610
  %v1612 = vrot.slane %v1581, 4
  %v1613 = vmax.f32 %v1581, %v1612
  %v1614 = vrot.slane %v1613, 2
  %v1615 = vmax.f32 %v1613, %v1614
  %v1616 = vrot.slane %v1615, 1
  %v1617 = vmax.f32 %v1615, %v1616
  %v1618 = vrot.slane %v1584, 4
  %v1619 = vmax.f32 %v1584, %v1618
  %v1620 = vrot.slane %v1619, 2
  %v1621 = vmax.f32 %v1619, %v1620
  %v1622 = vrot.slane %v1621, 1
  %v1623 = vmax.f32 %v1621, %v1622
  %v1624 = vrot.slane %v1587, 4
  %v1625 = vmax.f32 %v1587, %v1624
  %v1626 = vrot.slane %v1625, 2
  %v1627 = vmax.f32 %v1625, %v1626
  %v1628 = vrot.slane %v1627, 1
  %v1629 = vmax.f32 %v1627, %v1628
  %v1630 = vrot.slane %v1590, 4
  %v1631 = vmax.f32 %v1590, %v1630
  %v1632 = vrot.slane %v1631, 2
  %v1633 = vmax.f32 %v1631, %v1632
  %v1634 = vrot.slane %v1633, 1
  %v1635 = vmax.f32 %v1633, %v1634
  %v1636 = vrot.slane %v1593, 4
  %v1637 = vmax.f32 %v1593, %v1636
  %v1638 = vrot.slane %v1637, 2
  %v1639 = vmax.f32 %v1637, %v1638
  %v1640 = vrot.slane %v1639, 1
  %v1641 = vmax.f32 %v1639, %v1640
  %v1642 = vsub.f32 %v1572, %v1599
  %v1643 = vsub.f32 %v1575, %v1605
  %v1644 = vsub.f32 %v1578, %v1611
  %v1645 = vsub.f32 %v1581, %v1617
  %v1646 = vsub.f32 %v1584, %v1623
  %v1647 = vsub.f32 %v1587, %v1629
  %v1648 = vsub.f32 %v1590, %v1635
  %v1649 = vsub.f32 %v1593, %v1641
  %v1650 = vmul.f32 %v1642, 1.442695
  %v1651 = vpow.pop %v1650
  %v1652 = vmul.f32 %v1643, 1.442695
  %v1653 = vpow.pop %v1652
  %v1654 = vmul.f32 %v1644, 1.442695
  %v1655 = vpow.pop %v1654
  %v1656 = vmul.f32 %v1645, 1.442695
  %v1657 = vpow.pop %v1656
  %v1658 = vmul.f32 %v1646, 1.442695
  %v1659 = vpow.pop %v1658
  %v1660 = vmul.f32 %v1647, 1.442695
  %v1661 = vpow.pop %v1660
  %v1662 = vmul.f32 %v1648, 1.442695
  %v1663 = vpow.pop %v1662
  %v1664 = vmul.f32 %v1649, 1.442695
  %v1665 = vpow.pop %v1664
  %v1666 = vrot.slane %v1651, 4
  %v1667 = vadd.f32 %v1651, %v1666
  %v1668 = vrot.slane %v1667, 2
  %v1669 = vadd.f32 %v1667, %v1668
  %v1670 = vrot.slane %v1669, 1
  %v1671 = vadd.f32 %v1669, %v1670
  %v1672 = vrot.slane %v1653, 4
  %v1673 = vadd.f32 %v1653, %v1672
  %v1674 = vrot.slane %v1673, 2
  %v1675 = vadd.f32 %v1673, %v1674
  %v1676 = vrot.slane %v1675, 1
  %v1677 = vadd.f32 %v1675, %v1676
  %v1678 = vrot.slane %v1655, 4
  %v1679 = vadd.f32 %v1655, %v1678
  %v1680 = vrot.slane %v1679, 2
  %v1681 = vadd.f32 %v1679, %v1680
  %v1682 = vrot.slane %v1681, 1
  %v1683 = vadd.f32 %v1681, %v1682
  %v1684 = vrot.slane %v1657, 4
  %v1685 = vadd.f32 %v1657, %v1684
  %v1686 = vrot.slane %v1685, 2
  %v1687 = vadd.f32 %v1685, %v1686
  %v1688 = vrot.slane %v1687, 1
  %v1689 = vadd.f32 %v1687, %v1688
  %v1690 = vrot.slane %v1659, 4
  %v1691 = vadd.f32 %v1659, %v1690
  %v1692 = vrot.slane %v1691, 2
  %v1693 = vadd.f32 %v1691, %v1692
  %v1694 = vrot.slane %v1693, 1
  %v1695 = vadd.f32 %v1693, %v1694
  %v1696 = vrot.slane %v1661, 4
  %v1697 = vadd.f32 %v1661, %v1696
  %v1698 = vrot.slane %v1697, 2
  %v1699 = vadd.f32 %v1697, %v1698
  %v1700 = vrot.slane %v1699, 1
  %v1701 = vadd.f32 %v1699, %v1700
  %v1702 = vrot.slane %v1663, 4
  %v1703 = vadd.f32 %v1663, %v1702
  %v1704 = vrot.slane %v1703, 2
  %v1705 = vadd.f32 %v1703, %v1704
  %v1706 = vrot.slane %v1705, 1
  %v1707 = vadd.f32 %v1705, %v1706
  %v1708 = vrot.slane %v1665, 4
  %v1709 = vadd.f32 %v1665, %v1708
  %v1710 = vrot.slane %v1709, 2
  %v1711 = vadd.f32 %v1709, %v1710
  %v1712 = vrot.slane %v1711, 1
  %v1713 = vadd.f32 %v1711, %v1712
  %v1714 = vrcp.pop %v1671
  %v1715 = vrcp.pop %v1677
  %v1716 = vrcp.pop %v1683
  %v1717 = vrcp.pop %v1689
  %v1718 = vrcp.pop %v1695
  %v1719 = vrcp.pop %v1701
  %v1720 = vrcp.pop %v1707
  %v1721 = vrcp.pop %v1713
  %v1722 = vmul.f32 %v1671, %v1714
  %v1723 = vmul.f32 %v1677, %v1715
  %v1724 = vmul.f32 %v1683, %v1716
  %v1725 = vmul.f32 %v1689, %v1717
  %v1726 = vmul.f32 %v1695, %v1718
  %v1727 = vmul.f32 %v1701, %v1719
  %v1728 = vmul.f32 %v1707, %v1720
  %v1729 = vmul.f32 %v1713, %v1721
  %v1730 = vsub.f32 2.0, %v1722
  %v1731 = vsub.f32 2.0, %v1723
  %v1732 = vsub.f32 2.0, %v1724
  %v1733 = vsub.f32 2.0, %v1725
  %v1734 = vsub.f32 2.0, %v1726
  %v1735 = vsub.f32 2.0, %v1727
  %v1736 = vsub.f32 2.0, %v1728
  %v1737 = vsub.f32 2.0, %v1729
  %v1738 = vmul.f32 %v1714, %v1730
  %v1739 = vmul.f32 %v1715, %v1731
  %v1740 = vmul.f32 %v1716, %v1732
  %v1741 = vmul.f32 %v1717, %v1733
  %v1742 = vmul.f32 %v1718, %v1734
  %v1743 = vmul.f32 %v1719, %v1735
  %v1744 = vmul.f32 %v1720, %v1736
  %v1745 = vmul.f32 %v1721, %v1737
  %v1746 = vmul.f32 %v1651, %v1738
  %v1747 = vmul.f32 %v1653, %v1739
  %v1748 = vmul.f32 %v1655, %v1740
  %v1749 = vmul.f32 %v1657, %v1741
  %v1750 = vmul.f32 %v1659, %v1742
  %v1751 = vmul.f32 %v1661, %v1743
  %v1752 = vmul.f32 %v1663, %v1744
  %v1753 = vmul.f32 %v1665, %v1745
  %v1754 = vmul.f32 %v1746, %v20
  %v1755 = vmul.f32 %v1747, %v21
  %v1756 = vmul.f32 %v1748, %v22
  %v1757 = vmul.f32 %v1749, %v23
  %v1758 = vmul.f32 %v1750, %v24
  %v1759 = vmul.f32 %v1751, %v25
  %v1760 = vmul.f32 %v1752, %v26
  %v1761 = vmul.f32 %v1753, %v27
  %v1762 = vsel %vm64, %v1754, 0.0
  %v1763 = vrot.slane %v1762, 4
  %v1764 = vadd.f32 %v1762, %v1763
  %v1765 = vrot.slane %v1764, 2
  %v1766 = vadd.f32 %v1764, %v1765
  %v1767 = vrot.slane %v1766, 1
  %v1768 = vadd.f32 %v1766, %v1767
  %v1769 = vsel %vm64, %v1755, 0.0
  %v1770 = vrot.slane %v1769, 4
  %v1771 = vadd.f32 %v1769, %v1770
  %v1772 = vrot.slane %v1771, 2
  %v1773 = vadd.f32 %v1771, %v1772
  %v1774 = vrot.slane %v1773, 1
  %v1775 = vadd.f32 %v1773, %v1774
  %v1776 = vsel %vm64, %v1756, 0.0
  %v1777 = vrot.slane %v1776, 4
  %v1778 = vadd.f32 %v1776, %v1777
  %v1779 = vrot.slane %v1778, 2
  %v1780 = vadd.f32 %v1778, %v1779
  %v1781 = vrot.slane %v1780, 1
  %v1782 = vadd.f32 %v1780, %v1781
  %v1783 = vsel %vm64, %v1757, 0.0
  %v1784 = vrot.slane %v1783, 4
  %v1785 = vadd.f32 %v1783, %v1784
  %v1786 = vrot.slane %v1785, 2
  %v1787 = vadd.f32 %v1785, %v1786
  %v1788 = vrot.slane %v1787, 1
  %v1789 = vadd.f32 %v1787, %v1788
  %v1790 = vsel %vm64, %v1758, 0.0
  %v1791 = vrot.slane %v1790, 4
  %v1792 = vadd.f32 %v1790, %v1791
  %v1793 = vrot.slane %v1792, 2
  %v1794 = vadd.f32 %v1792, %v1793
  %v1795 = vrot.slane %v1794, 1
  %v1796 = vadd.f32 %v1794, %v1795
  %v1797 = vsel %vm64, %v1759, 0.0
  %v1798 = vrot.slane %v1797, 4
  %v1799 = vadd.f32 %v1797, %v1798
  %v1800 = vrot.slane %v1799, 2
  %v1801 = vadd.f32 %v1799, %v1800
  %v1802 = vrot.slane %v1801, 1
  %v1803 = vadd.f32 %v1801, %v1802
  %v1804 = vsel %vm64, %v1760, 0.0
  %v1805 = vrot.slane %v1804, 4
  %v1806 = vadd.f32 %v1804, %v1805
  %v1807 = vrot.slane %v1806, 2
  %v1808 = vadd.f32 %v1806, %v1807
  %v1809 = vrot.slane %v1808, 1
  %v1810 = vadd.f32 %v1808, %v1809
  %v1811 = vsel %vm64, %v1761, 0.0
  %v1812 = vrot.slane %v1811, 4
  %v1813 = vadd.f32 %v1811, %v1812
  %v1814 = vrot.slane %v1813, 2
  %v1815 = vadd.f32 %v1813, %v1814
  %v1816 = vrot.slane %v1815, 1
  %v1817 = vadd.f32 %v1815, %v1816
  %v1826 = vsel %vm659, %v1775, %v1768
  %v1827 = vsel %vm661, %v1782, %v1826
  %v1828 = vsel %vm663, %v1789, %v1827
  %v1829 = vsel %vm665, %v1796, %v1828
  %v1830 = vsel %vm667, %v1803, %v1829
  %v1831 = vsel %vm669, %v1810, %v1830
  %v1832 = vsel %vm671, %v1817, %v1831
  %1834 = vrot.lane.b32.xlu0 %v1377, 64
  %v1835 = vpop.permute.xlu0 %1834
  %v1837 = vrot.slane %v203, 2
  %v1838 = vrot.slane %v204, 1
  %v1839 = vsel %vm659, %v1838, %v1837
  %v1840 = vsel %vm661, %v205, %v1839
  %v1841 = vrot.slane %v206, 7
  %v1842 = vsel %vm663, %v1841, %v1840
  %v1843 = vrot.slane %v207, 6
  %v1844 = vsel %vm665, %v1843, %v1842
  %v1845 = vrot.slane %v208, 5
  %v1846 = vsel %vm667, %v1845, %v1844
  %v1847 = vrot.slane %v209, 4
  %v1848 = vsel %vm669, %v1847, %v1846
  %v1849 = vrot.slane %v210, 3
  %v1850 = vsel %vm671, %v1849, %v1848
  %1851 = vrot.lane.b32.xlu0 %v1850, 64
  %v1852 = vpop.permute.xlu0 %1851
  %v1854 = vsel %vm64, %v1832, %v1835
  %v1855 = vsel %vm211, %v1854, %v1852
  %v1857 = vsel %vm701, %v1855, 0
  %1859 = vmatprep.subr.mxu0 0.0
  %1860 = vmatpush1.msra.mxu0 %v42
  %1861 = vmatprep.subr.mxu0 0.0
  %1862 = vmatpush1.msra.mxu0 %v43
  %1863 = vmatprep.subr.mxu0 0.0
  %1864 = vmatpush1.msra.mxu0 %v44
  %1865 = vmatprep.subr.mxu0 0.0
  %1866 = vmatpush1.msra.mxu0 %v45
  %1867 = vmatprep.subr.mxu0 0.0
  %1868 = vmatpush1.msra.mxu0 %v46
  %1869 = vmatprep.subr.mxu0 0.0
  %1870 = vmatpush1.msra.mxu0 %v47
  %1871 = vmatprep.subr.mxu0 0.0
  %1872 = vmatpush1.msra.mxu0 %v48
  %1873 = vmatprep.subr.mxu0 0.0
  %1874 = vmatpush1.msra.mxu0 %v49
  %1875 = vmatprep.subr.mxu0 0.0
  %1876 = vmatpush1.msra.mxu0 %v707
  %1877 = vmatprep.subr.mxu0 0.0
  %1878 = vmatpush1.msra.mxu0 0.0
  %1879 = vmatprep.subr.mxu0 0.0
  %1880 = vmatpush1.msra.mxu0 0.0
  %1881 = vmatprep.subr.mxu0 0.0
  %1882 = vmatpush1.msra.mxu0 0.0
  %1883 = vmatprep.subr.mxu0 0.0
  %1884 = vmatpush1.msra.mxu0 0.0
  %1885 = vmatprep.subr.mxu0 0.0
  %1886 = vmatpush1.msra.mxu0 0.0
  %1887 = vmatprep.subr.mxu0 0.0
  %1888 = vmatpush1.msra.mxu0 0.0
  %1889 = vmatprep.subr.mxu0 0.0
  %1890 = vmatpush1.msra.mxu0 0.0
  %1891 = vmatprep.subr.mxu0 0.0
  %1892 = vmatpush1.msra.mxu0 0.0
  %1893 = vmatprep.subr.mxu0 0.0
  %1894 = vmatpush1.msra.mxu0 0.0
  %1895 = vmatprep.subr.mxu0 0.0
  %1896 = vmatpush1.msra.mxu0 0.0
  %1897 = vmatprep.subr.mxu0 0.0
  %1898 = vmatpush1.msra.mxu0 0.0
  %1899 = vmatprep.subr.mxu0 0.0
  %1900 = vmatpush1.msra.mxu0 0.0
  %1901 = vmatprep.subr.mxu0 0.0
  %1902 = vmatpush1.msra.mxu0 0.0
  %1903 = vmatprep.subr.mxu0 0.0
  %1904 = vmatpush1.msra.mxu0 0.0
  %1905 = vmatprep.subr.mxu0 0.0
  %1906 = vmatpush1.msra.mxu0 0.0
  %1907 = vmatprep.subr.mxu0 0.0
  %1908 = vmatpush1.msra.mxu0 0.0
  %1909 = vmatprep.subr.mxu0 0.0
  %1910 = vmatpush1.msra.mxu0 0.0
  %1911 = vmatprep.subr.mxu0 0.0
  %1912 = vmatpush1.msra.mxu0 0.0
  %1913 = vmatprep.subr.mxu0 0.0
  %1914 = vmatpush1.msra.mxu0 0.0
  %1915 = vmatprep.subr.mxu0 0.0
  %1916 = vmatpush1.msra.mxu0 0.0
  %1917 = vmatprep.subr.mxu0 0.0
  %1918 = vmatpush1.msra.mxu0 0.0
  %1919 = vmatprep.subr.mxu0 0.0
  %1920 = vmatpush1.msra.mxu0 0.0
  %1921 = vmatprep.subr.mxu0 0.0
  %1922 = vmatpush1.msra.mxu0 0.0
  %1923 = vmatprep.mubr.f32.mxu0 0.0
  %1924 = vmatmul.mubr.f32.gmra.mrb[0].mxu0 %v1857
  %v1925 = vpop.f32.mrb[0].mxu0
  %v1926 = vadd.f32 0.0, %v1925
  %v1927 = vpop.f32.mrb[0].mxu0
  %1928 = vdwg.mxu0
  %v1929 = vxor.u32 %v1926, 2147483648
  %v1930 = vmul.f32 %v1929, 1.442695
  %v1931 = vpow.pop %v1930
  %v1932 = vadd.f32 %v1931, 1.0
  %v1933 = vrcp.pop %v1932
  %v1934 = vmul.f32 1.0, %v1933
  %v1935 = vtanh.pop %v1926
  %v1936 = vmul.f32 %v1934, %v1371
  %1938 = vrot.lane.b32.xlu0 %v1935, 64
  %v1939 = vpop.permute.xlu0 %1938
  %v1941 = vmul.f32 %v1934, %v1939
  %1943 = vrot.lane.b32.xlu0 %v1941, 32
  %v1944 = vpop.permute.xlu0 %1943
  %v1946 = vadd.f32 %v1936, %v1944
  %v1947 = vtanh.pop %v1946
  %1949 = vrot.lane.b32.xlu0 %v1947, 64
  %v1950 = vpop.permute.xlu0 %1949
  %v1952 = vmul.f32 %v1934, %v1950
  %1954 = vrot.lane.b32.xlu0 %v1952, 32
  %v1955 = vpop.permute.xlu0 %1954
  %v1957 = vsel %vm64, %v1955, %v1946
  %v1959 = vsel %vm211, %v1957, 0
  %1961 = vmatprep.subr.mxu0 0.0
  %1962 = vmatpush1.msra.mxu0 %v28
  %1963 = vmatprep.subr.mxu0 0.0
  %1964 = vmatpush1.msra.mxu0 %v29
  %1965 = vmatprep.subr.mxu0 0.0
  %1966 = vmatpush1.msra.mxu0 %v30
  %1967 = vmatprep.subr.mxu0 0.0
  %1968 = vmatpush1.msra.mxu0 %v31
  %1969 = vmatprep.subr.mxu0 0.0
  %1970 = vmatpush1.msra.mxu0 %v32
  %1971 = vmatprep.subr.mxu0 0.0
  %1972 = vmatpush1.msra.mxu0 %v33
  %1973 = vmatprep.subr.mxu0 0.0
  %1974 = vmatpush1.msra.mxu0 %v34
  %1975 = vmatprep.subr.mxu0 0.0
  %1976 = vmatpush1.msra.mxu0 %v35
  %1977 = vmatprep.subr.mxu0 0.0
  %1978 = vmatpush1.msra.mxu0 0.0
  %1979 = vmatprep.subr.mxu0 0.0
  %1980 = vmatpush1.msra.mxu0 0.0
  %1981 = vmatprep.subr.mxu0 0.0
  %1982 = vmatpush1.msra.mxu0 0.0
  %1983 = vmatprep.subr.mxu0 0.0
  %1984 = vmatpush1.msra.mxu0 0.0
  %1985 = vmatprep.subr.mxu0 0.0
  %1986 = vmatpush1.msra.mxu0 0.0
  %1987 = vmatprep.subr.mxu0 0.0
  %1988 = vmatpush1.msra.mxu0 0.0
  %1989 = vmatprep.subr.mxu0 0.0
  %1990 = vmatpush1.msra.mxu0 0.0
  %1991 = vmatprep.subr.mxu0 0.0
  %1992 = vmatpush1.msra.mxu0 0.0
  %1993 = vmatprep.subr.mxu0 0.0
  %1994 = vmatpush1.msra.mxu0 0.0
  %1995 = vmatprep.subr.mxu0 0.0
  %1996 = vmatpush1.msra.mxu0 0.0
  %1997 = vmatprep.subr.mxu0 0.0
  %1998 = vmatpush1.msra.mxu0 0.0
  %1999 = vmatprep.subr.mxu0 0.0
  %2000 = vmatpush1.msra.mxu0 0.0
  %2001 = vmatprep.subr.mxu0 0.0
  %2002 = vmatpush1.msra.mxu0 0.0
  %2003 = vmatprep.subr.mxu0 0.0
  %2004 = vmatpush1.msra.mxu0 0.0
  %2005 = vmatprep.subr.mxu0 0.0
  %2006 = vmatpush1.msra.mxu0 0.0
  %2007 = vmatprep.subr.mxu0 0.0
  %2008 = vmatpush1.msra.mxu0 0.0
  %2009 = vmatprep.subr.mxu0 0.0
  %2010 = vmatpush1.msra.mxu0 0.0
  %2011 = vmatprep.subr.mxu0 0.0
  %2012 = vmatpush1.msra.mxu0 0.0
  %2013 = vmatprep.subr.mxu0 0.0
  %2014 = vmatpush1.msra.mxu0 0.0
  %2015 = vmatprep.subr.mxu0 0.0
  %2016 = vmatpush1.msra.mxu0 0.0
  %2017 = vmatprep.subr.mxu0 0.0
  %2018 = vmatpush1.msra.mxu0 0.0
  %2019 = vmatprep.subr.mxu0 0.0
  %2020 = vmatpush1.msra.mxu0 0.0
  %2021 = vmatprep.subr.mxu0 0.0
  %2022 = vmatpush1.msra.mxu0 0.0
  %2023 = vmatprep.subr.mxu0 0.0
  %2024 = vmatpush1.msra.mxu0 0.0
  %2025 = vmatprep.mubr.f32.mxu0 0.0
  %2026 = vmatmul.mubr.f32.gmra.mrb[0].mxu0 %v1959
  %v2027 = vpop.f32.mrb[0].mxu0
  %v2028 = vadd.f32 0.0, %v2027
  %v2029 = vpop.f32.mrb[0].mxu0
  %2030 = vdwg.mxu0
  %v2032 = vcombine.high %v2028, %v2028
  %v2034 = vunpack.c.l.s4 1966171168
  %v2035 = vunpack.c.0.s8 %v2034
  %v2036 = vlaneseq
  %v2037 = vshrl.u32 %v2036, 7
  %v2038 = vsub.s32 %v2035, %v2037
  %v2039 = vrot.slane %v2028, %v2038
  %v2041 = vunpack.c.l.s4 1966171168
  %v2042 = vunpack.c.0.s8 %v2041
  %v2043 = vlaneseq
  %v2044 = vshrl.u32 %v2043, 7
  %v2045 = vsub.s32 %v2042, %v2044
  %v2046 = vrot.slane %v2032, %v2045
  %v2047 = vcombine.high %v2039, %v2039
  %v2048 = vcombine.high %v2046, %v2046
  %v2050 = vunpack.c.l.s4 1966171168
  %v2051 = vunpack.c.0.s8 %v2050
  %v2052 = vlaneseq
  %v2053 = vshrl.u32 %v2052, 7
  %v2054 = vsub.s32 %v2051, %v2053
  %v2055 = vrot.slane %v2039, %v2054
  %v2057 = vunpack.c.l.s4 1966171168
  %v2058 = vunpack.c.0.s8 %v2057
  %v2059 = vlaneseq
  %v2060 = vshrl.u32 %v2059, 7
  %v2061 = vsub.s32 %v2058, %v2060
  %v2062 = vrot.slane %v2046, %v2061
  %v2064 = vunpack.c.l.s4 1966171168
  %v2065 = vunpack.c.0.s8 %v2064
  %v2066 = vlaneseq
  %v2067 = vshrl.u32 %v2066, 7
  %v2068 = vsub.s32 %v2065, %v2067
  %v2069 = vrot.slane %v2047, %v2068
  %v2071 = vunpack.c.l.s4 1966171168
  %v2072 = vunpack.c.0.s8 %v2071
  %v2073 = vlaneseq
  %v2074 = vshrl.u32 %v2073, 7
  %v2075 = vsub.s32 %v2072, %v2074
  %v2076 = vrot.slane %v2048, %v2075
  %v2077 = vcombine.high %v2055, %v2055
  %v2078 = vcombine.high %v2062, %v2062
  %v2079 = vcombine.high %v2069, %v2069
  %v2080 = vcombine.high %v2076, %v2076
  %v2081 = vlaneseq
  %v2082 = vshrl.u32 %v2081, 7
  %v2083 = vsub.s32 0, %v2082
  %v2084 = vrot.slane %v2055, %v2083
  %v2085 = vlaneseq
  %v2086 = vshrl.u32 %v2085, 7
  %v2087 = vsub.s32 0, %v2086
  %v2088 = vrot.slane %v2069, %v2087
  %v2089 = vlaneseq
  %v2090 = vshrl.u32 %v2089, 7
  %v2091 = vsub.s32 0, %v2090
  %v2092 = vrot.slane %v2077, %v2091
  %v2093 = vlaneseq
  %v2094 = vshrl.u32 %v2093, 7
  %v2095 = vsub.s32 0, %v2094
  %v2096 = vrot.slane %v2079, %v2095
  %v2097 = vlaneseq
  %v2098 = vshrl.u32 %v2097, 7
  %v2099 = vsub.s32 0, %v2098
  %v2100 = vrot.slane %v2062, %v2099
  %v2101 = vlaneseq
  %v2102 = vshrl.u32 %v2101, 7
  %v2103 = vsub.s32 0, %v2102
  %v2104 = vrot.slane %v2076, %v2103
  %v2105 = vlaneseq
  %v2106 = vshrl.u32 %v2105, 7
  %v2107 = vsub.s32 0, %v2106
  %v2108 = vrot.slane %v2078, %v2107
  %v2109 = vlaneseq
  %v2110 = vshrl.u32 %v2109, 7
  %v2111 = vsub.s32 0, %v2110
  %v2112 = vrot.slane %v2080, %v2111
  %v2121 = vadd.f32 %v156, %v2084
  %v2122 = vadd.f32 %v161, %v2088
  %v2123 = vadd.f32 %v166, %v2092
  %v2124 = vadd.f32 %v171, %v2096
  %v2125 = vadd.f32 %v176, %v2100
  %v2126 = vadd.f32 %v181, %v2104
  %v2127 = vadd.f32 %v186, %v2108
  %v2128 = vadd.f32 %v191, %v2112
  %v2129 = vtanh.pop %v2121
  %v2130 = vtanh.pop %v2122
  %v2131 = vtanh.pop %v2123
  %v2132 = vtanh.pop %v2124
  %v2133 = vtanh.pop %v2125
  %v2134 = vtanh.pop %v2126
  %v2135 = vtanh.pop %v2127
  %v2136 = vtanh.pop %v2128
  %v2137 = vmul.f32 %v2129, %v394
  %v2138 = vmul.f32 %v2130, %v394
  %v2139 = vmul.f32 %v2131, %v394
  %v2140 = vmul.f32 %v2132, %v394
  %v2141 = vmul.f32 %v2133, %v394
  %v2142 = vmul.f32 %v2134, %v394
  %v2143 = vmul.f32 %v2135, %v394
  %v2144 = vmul.f32 %v2136, %v394
  %v2145 = vsel %vm64, %v2137, 0.0
  %2146 = vadd.xlane.f32.xlu0 %v2145
  %v2147 = vpop.xlane.xlu0 %2146
  %v2148 = vsel %vm64, %v2138, 0.0
  %2149 = vadd.xlane.f32.xlu0 %v2148
  %v2150 = vpop.xlane.xlu0 %2149
  %v2151 = vsel %vm64, %v2139, 0.0
  %2152 = vadd.xlane.f32.xlu0 %v2151
  %v2153 = vpop.xlane.xlu0 %2152
  %v2154 = vsel %vm64, %v2140, 0.0
  %2155 = vadd.xlane.f32.xlu0 %v2154
  %v2156 = vpop.xlane.xlu0 %2155
  %v2157 = vsel %vm64, %v2141, 0.0
  %2158 = vadd.xlane.f32.xlu0 %v2157
  %v2159 = vpop.xlane.xlu0 %2158
  %v2160 = vsel %vm64, %v2142, 0.0
  %2161 = vadd.xlane.f32.xlu0 %v2160
  %v2162 = vpop.xlane.xlu0 %2161
  %v2163 = vsel %vm64, %v2143, 0.0
  %2164 = vadd.xlane.f32.xlu0 %v2163
  %v2165 = vpop.xlane.xlu0 %2164
  %v2166 = vsel %vm64, %v2144, 0.0
  %2167 = vadd.xlane.f32.xlu0 %v2166
  %v2168 = vpop.xlane.xlu0 %2167
  %v2169 = vrot.slane %v2147, 4
  %v2170 = vmax.f32 %v2147, %v2169
  %v2171 = vrot.slane %v2170, 2
  %v2172 = vmax.f32 %v2170, %v2171
  %v2173 = vrot.slane %v2172, 1
  %v2174 = vmax.f32 %v2172, %v2173
  %v2175 = vrot.slane %v2150, 4
  %v2176 = vmax.f32 %v2150, %v2175
  %v2177 = vrot.slane %v2176, 2
  %v2178 = vmax.f32 %v2176, %v2177
  %v2179 = vrot.slane %v2178, 1
  %v2180 = vmax.f32 %v2178, %v2179
  %v2181 = vrot.slane %v2153, 4
  %v2182 = vmax.f32 %v2153, %v2181
  %v2183 = vrot.slane %v2182, 2
  %v2184 = vmax.f32 %v2182, %v2183
  %v2185 = vrot.slane %v2184, 1
  %v2186 = vmax.f32 %v2184, %v2185
  %v2187 = vrot.slane %v2156, 4
  %v2188 = vmax.f32 %v2156, %v2187
  %v2189 = vrot.slane %v2188, 2
  %v2190 = vmax.f32 %v2188, %v2189
  %v2191 = vrot.slane %v2190, 1
  %v2192 = vmax.f32 %v2190, %v2191
  %v2193 = vrot.slane %v2159, 4
  %v2194 = vmax.f32 %v2159, %v2193
  %v2195 = vrot.slane %v2194, 2
  %v2196 = vmax.f32 %v2194, %v2195
  %v2197 = vrot.slane %v2196, 1
  %v2198 = vmax.f32 %v2196, %v2197
  %v2199 = vrot.slane %v2162, 4
  %v2200 = vmax.f32 %v2162, %v2199
  %v2201 = vrot.slane %v2200, 2
  %v2202 = vmax.f32 %v2200, %v2201
  %v2203 = vrot.slane %v2202, 1
  %v2204 = vmax.f32 %v2202, %v2203
  %v2205 = vrot.slane %v2165, 4
  %v2206 = vmax.f32 %v2165, %v2205
  %v2207 = vrot.slane %v2206, 2
  %v2208 = vmax.f32 %v2206, %v2207
  %v2209 = vrot.slane %v2208, 1
  %v2210 = vmax.f32 %v2208, %v2209
  %v2211 = vrot.slane %v2168, 4
  %v2212 = vmax.f32 %v2168, %v2211
  %v2213 = vrot.slane %v2212, 2
  %v2214 = vmax.f32 %v2212, %v2213
  %v2215 = vrot.slane %v2214, 1
  %v2216 = vmax.f32 %v2214, %v2215
  %v2217 = vsub.f32 %v2147, %v2174
  %v2218 = vsub.f32 %v2150, %v2180
  %v2219 = vsub.f32 %v2153, %v2186
  %v2220 = vsub.f32 %v2156, %v2192
  %v2221 = vsub.f32 %v2159, %v2198
  %v2222 = vsub.f32 %v2162, %v2204
  %v2223 = vsub.f32 %v2165, %v2210
  %v2224 = vsub.f32 %v2168, %v2216
  %v2225 = vmul.f32 %v2217, 1.442695
  %v2226 = vpow.pop %v2225
  %v2227 = vmul.f32 %v2218, 1.442695
  %v2228 = vpow.pop %v2227
  %v2229 = vmul.f32 %v2219, 1.442695
  %v2230 = vpow.pop %v2229
  %v2231 = vmul.f32 %v2220, 1.442695
  %v2232 = vpow.pop %v2231
  %v2233 = vmul.f32 %v2221, 1.442695
  %v2234 = vpow.pop %v2233
  %v2235 = vmul.f32 %v2222, 1.442695
  %v2236 = vpow.pop %v2235
  %v2237 = vmul.f32 %v2223, 1.442695
  %v2238 = vpow.pop %v2237
  %v2239 = vmul.f32 %v2224, 1.442695
  %v2240 = vpow.pop %v2239
  %v2241 = vrot.slane %v2226, 4
  %v2242 = vadd.f32 %v2226, %v2241
  %v2243 = vrot.slane %v2242, 2
  %v2244 = vadd.f32 %v2242, %v2243
  %v2245 = vrot.slane %v2244, 1
  %v2246 = vadd.f32 %v2244, %v2245
  %v2247 = vrot.slane %v2228, 4
  %v2248 = vadd.f32 %v2228, %v2247
  %v2249 = vrot.slane %v2248, 2
  %v2250 = vadd.f32 %v2248, %v2249
  %v2251 = vrot.slane %v2250, 1
  %v2252 = vadd.f32 %v2250, %v2251
  %v2253 = vrot.slane %v2230, 4
  %v2254 = vadd.f32 %v2230, %v2253
  %v2255 = vrot.slane %v2254, 2
  %v2256 = vadd.f32 %v2254, %v2255
  %v2257 = vrot.slane %v2256, 1
  %v2258 = vadd.f32 %v2256, %v2257
  %v2259 = vrot.slane %v2232, 4
  %v2260 = vadd.f32 %v2232, %v2259
  %v2261 = vrot.slane %v2260, 2
  %v2262 = vadd.f32 %v2260, %v2261
  %v2263 = vrot.slane %v2262, 1
  %v2264 = vadd.f32 %v2262, %v2263
  %v2265 = vrot.slane %v2234, 4
  %v2266 = vadd.f32 %v2234, %v2265
  %v2267 = vrot.slane %v2266, 2
  %v2268 = vadd.f32 %v2266, %v2267
  %v2269 = vrot.slane %v2268, 1
  %v2270 = vadd.f32 %v2268, %v2269
  %v2271 = vrot.slane %v2236, 4
  %v2272 = vadd.f32 %v2236, %v2271
  %v2273 = vrot.slane %v2272, 2
  %v2274 = vadd.f32 %v2272, %v2273
  %v2275 = vrot.slane %v2274, 1
  %v2276 = vadd.f32 %v2274, %v2275
  %v2277 = vrot.slane %v2238, 4
  %v2278 = vadd.f32 %v2238, %v2277
  %v2279 = vrot.slane %v2278, 2
  %v2280 = vadd.f32 %v2278, %v2279
  %v2281 = vrot.slane %v2280, 1
  %v2282 = vadd.f32 %v2280, %v2281
  %v2283 = vrot.slane %v2240, 4
  %v2284 = vadd.f32 %v2240, %v2283
  %v2285 = vrot.slane %v2284, 2
  %v2286 = vadd.f32 %v2284, %v2285
  %v2287 = vrot.slane %v2286, 1
  %v2288 = vadd.f32 %v2286, %v2287
  %v2289 = vrcp.pop %v2246
  %v2290 = vrcp.pop %v2252
  %v2291 = vrcp.pop %v2258
  %v2292 = vrcp.pop %v2264
  %v2293 = vrcp.pop %v2270
  %v2294 = vrcp.pop %v2276
  %v2295 = vrcp.pop %v2282
  %v2296 = vrcp.pop %v2288
  %v2297 = vmul.f32 %v2246, %v2289
  %v2298 = vmul.f32 %v2252, %v2290
  %v2299 = vmul.f32 %v2258, %v2291
  %v2300 = vmul.f32 %v2264, %v2292
  %v2301 = vmul.f32 %v2270, %v2293
  %v2302 = vmul.f32 %v2276, %v2294
  %v2303 = vmul.f32 %v2282, %v2295
  %v2304 = vmul.f32 %v2288, %v2296
  %v2305 = vsub.f32 2.0, %v2297
  %v2306 = vsub.f32 2.0, %v2298
  %v2307 = vsub.f32 2.0, %v2299
  %v2308 = vsub.f32 2.0, %v2300
  %v2309 = vsub.f32 2.0, %v2301
  %v2310 = vsub.f32 2.0, %v2302
  %v2311 = vsub.f32 2.0, %v2303
  %v2312 = vsub.f32 2.0, %v2304
  %v2313 = vmul.f32 %v2289, %v2305
  %v2314 = vmul.f32 %v2290, %v2306
  %v2315 = vmul.f32 %v2291, %v2307
  %v2316 = vmul.f32 %v2292, %v2308
  %v2317 = vmul.f32 %v2293, %v2309
  %v2318 = vmul.f32 %v2294, %v2310
  %v2319 = vmul.f32 %v2295, %v2311
  %v2320 = vmul.f32 %v2296, %v2312
  %v2321 = vmul.f32 %v2226, %v2313
  %v2322 = vmul.f32 %v2228, %v2314
  %v2323 = vmul.f32 %v2230, %v2315
  %v2324 = vmul.f32 %v2232, %v2316
  %v2325 = vmul.f32 %v2234, %v2317
  %v2326 = vmul.f32 %v2236, %v2318
  %v2327 = vmul.f32 %v2238, %v2319
  %v2328 = vmul.f32 %v2240, %v2320
  %v2329 = vmul.f32 %v2321, %v20
  %v2330 = vmul.f32 %v2322, %v21
  %v2331 = vmul.f32 %v2323, %v22
  %v2332 = vmul.f32 %v2324, %v23
  %v2333 = vmul.f32 %v2325, %v24
  %v2334 = vmul.f32 %v2326, %v25
  %v2335 = vmul.f32 %v2327, %v26
  %v2336 = vmul.f32 %v2328, %v27
  %v2337 = vsel %vm64, %v2329, 0.0
  %v2338 = vrot.slane %v2337, 4
  %v2339 = vadd.f32 %v2337, %v2338
  %v2340 = vrot.slane %v2339, 2
  %v2341 = vadd.f32 %v2339, %v2340
  %v2342 = vrot.slane %v2341, 1
  %v2343 = vadd.f32 %v2341, %v2342
  %v2344 = vsel %vm64, %v2330, 0.0
  %v2345 = vrot.slane %v2344, 4
  %v2346 = vadd.f32 %v2344, %v2345
  %v2347 = vrot.slane %v2346, 2
  %v2348 = vadd.f32 %v2346, %v2347
  %v2349 = vrot.slane %v2348, 1
  %v2350 = vadd.f32 %v2348, %v2349
  %v2351 = vsel %vm64, %v2331, 0.0
  %v2352 = vrot.slane %v2351, 4
  %v2353 = vadd.f32 %v2351, %v2352
  %v2354 = vrot.slane %v2353, 2
  %v2355 = vadd.f32 %v2353, %v2354
  %v2356 = vrot.slane %v2355, 1
  %v2357 = vadd.f32 %v2355, %v2356
  %v2358 = vsel %vm64, %v2332, 0.0
  %v2359 = vrot.slane %v2358, 4
  %v2360 = vadd.f32 %v2358, %v2359
  %v2361 = vrot.slane %v2360, 2
  %v2362 = vadd.f32 %v2360, %v2361
  %v2363 = vrot.slane %v2362, 1
  %v2364 = vadd.f32 %v2362, %v2363
  %v2365 = vsel %vm64, %v2333, 0.0
  %v2366 = vrot.slane %v2365, 4
  %v2367 = vadd.f32 %v2365, %v2366
  %v2368 = vrot.slane %v2367, 2
  %v2369 = vadd.f32 %v2367, %v2368
  %v2370 = vrot.slane %v2369, 1
  %v2371 = vadd.f32 %v2369, %v2370
  %v2372 = vsel %vm64, %v2334, 0.0
  %v2373 = vrot.slane %v2372, 4
  %v2374 = vadd.f32 %v2372, %v2373
  %v2375 = vrot.slane %v2374, 2
  %v2376 = vadd.f32 %v2374, %v2375
  %v2377 = vrot.slane %v2376, 1
  %v2378 = vadd.f32 %v2376, %v2377
  %v2379 = vsel %vm64, %v2335, 0.0
  %v2380 = vrot.slane %v2379, 4
  %v2381 = vadd.f32 %v2379, %v2380
  %v2382 = vrot.slane %v2381, 2
  %v2383 = vadd.f32 %v2381, %v2382
  %v2384 = vrot.slane %v2383, 1
  %v2385 = vadd.f32 %v2383, %v2384
  %v2386 = vsel %vm64, %v2336, 0.0
  %v2387 = vrot.slane %v2386, 4
  %v2388 = vadd.f32 %v2386, %v2387
  %v2389 = vrot.slane %v2388, 2
  %v2390 = vadd.f32 %v2388, %v2389
  %v2391 = vrot.slane %v2390, 1
  %v2392 = vadd.f32 %v2390, %v2391
  %v2401 = vsel %vm659, %v2350, %v2343
  %v2402 = vsel %vm661, %v2357, %v2401
  %v2403 = vsel %vm663, %v2364, %v2402
  %v2404 = vsel %vm665, %v2371, %v2403
  %v2405 = vsel %vm667, %v2378, %v2404
  %v2406 = vsel %vm669, %v2385, %v2405
  %v2407 = vsel %vm671, %v2392, %v2406
  %2409 = vrot.lane.b32.xlu0 %v1952, 64
  %v2410 = vpop.permute.xlu0 %2409
  %v2412 = vrot.slane %v203, 3
  %v2413 = vrot.slane %v204, 2
  %v2414 = vsel %vm659, %v2413, %v2412
  %v2415 = vrot.slane %v205, 1
  %v2416 = vsel %vm661, %v2415, %v2414
  %v2417 = vsel %vm663, %v206, %v2416
  %v2418 = vrot.slane %v207, 7
  %v2419 = vsel %vm665, %v2418, %v2417
  %v2420 = vrot.slane %v208, 6
  %v2421 = vsel %vm667, %v2420, %v2419
  %v2422 = vrot.slane %v209, 5
  %v2423 = vsel %vm669, %v2422, %v2421
  %v2424 = vrot.slane %v210, 4
  %v2425 = vsel %vm671, %v2424, %v2423
  %2426 = vrot.lane.b32.xlu0 %v2425, 64
  %v2427 = vpop.permute.xlu0 %2426
  %v2429 = vsel %vm64, %v2407, %v2410
  %v2430 = vsel %vm211, %v2429, %v2427
  %v2432 = vsel %vm701, %v2430, 0
  %2434 = vmatprep.subr.mxu0 0.0
  %2435 = vmatpush1.msra.mxu0 %v42
  %2436 = vmatprep.subr.mxu0 0.0
  %2437 = vmatpush1.msra.mxu0 %v43
  %2438 = vmatprep.subr.mxu0 0.0
  %2439 = vmatpush1.msra.mxu0 %v44
  %2440 = vmatprep.subr.mxu0 0.0
  %2441 = vmatpush1.msra.mxu0 %v45
  %2442 = vmatprep.subr.mxu0 0.0
  %2443 = vmatpush1.msra.mxu0 %v46
  %2444 = vmatprep.subr.mxu0 0.0
  %2445 = vmatpush1.msra.mxu0 %v47
  %2446 = vmatprep.subr.mxu0 0.0
  %2447 = vmatpush1.msra.mxu0 %v48
  %2448 = vmatprep.subr.mxu0 0.0
  %2449 = vmatpush1.msra.mxu0 %v49
  %2450 = vmatprep.subr.mxu0 0.0
  %2451 = vmatpush1.msra.mxu0 %v707
  %2452 = vmatprep.subr.mxu0 0.0
  %2453 = vmatpush1.msra.mxu0 0.0
  %2454 = vmatprep.subr.mxu0 0.0
  %2455 = vmatpush1.msra.mxu0 0.0
  %2456 = vmatprep.subr.mxu0 0.0
  %2457 = vmatpush1.msra.mxu0 0.0
  %2458 = vmatprep.subr.mxu0 0.0
  %2459 = vmatpush1.msra.mxu0 0.0
  %2460 = vmatprep.subr.mxu0 0.0
  %2461 = vmatpush1.msra.mxu0 0.0
  %2462 = vmatprep.subr.mxu0 0.0
  %2463 = vmatpush1.msra.mxu0 0.0
  %2464 = vmatprep.subr.mxu0 0.0
  %2465 = vmatpush1.msra.mxu0 0.0
  %2466 = vmatprep.subr.mxu0 0.0
  %2467 = vmatpush1.msra.mxu0 0.0
  %2468 = vmatprep.subr.mxu0 0.0
  %2469 = vmatpush1.msra.mxu0 0.0
  %2470 = vmatprep.subr.mxu0 0.0
  %2471 = vmatpush1.msra.mxu0 0.0
  %2472 = vmatprep.subr.mxu0 0.0
  %2473 = vmatpush1.msra.mxu0 0.0
  %2474 = vmatprep.subr.mxu0 0.0
  %2475 = vmatpush1.msra.mxu0 0.0
  %2476 = vmatprep.subr.mxu0 0.0
  %2477 = vmatpush1.msra.mxu0 0.0
  %2478 = vmatprep.subr.mxu0 0.0
  %2479 = vmatpush1.msra.mxu0 0.0
  %2480 = vmatprep.subr.mxu0 0.0
  %2481 = vmatpush1.msra.mxu0 0.0
  %2482 = vmatprep.subr.mxu0 0.0
  %2483 = vmatpush1.msra.mxu0 0.0
  %2484 = vmatprep.subr.mxu0 0.0
  %2485 = vmatpush1.msra.mxu0 0.0
  %2486 = vmatprep.subr.mxu0 0.0
  %2487 = vmatpush1.msra.mxu0 0.0
  %2488 = vmatprep.subr.mxu0 0.0
  %2489 = vmatpush1.msra.mxu0 0.0
  %2490 = vmatprep.subr.mxu0 0.0
  %2491 = vmatpush1.msra.mxu0 0.0
  %2492 = vmatprep.subr.mxu0 0.0
  %2493 = vmatpush1.msra.mxu0 0.0
  %2494 = vmatprep.subr.mxu0 0.0
  %2495 = vmatpush1.msra.mxu0 0.0
  %2496 = vmatprep.subr.mxu0 0.0
  %2497 = vmatpush1.msra.mxu0 0.0
  %2498 = vmatprep.mubr.f32.mxu0 0.0
  %2499 = vmatmul.mubr.f32.gmra.mrb[0].mxu0 %v2432
  %v2500 = vpop.f32.mrb[0].mxu0
  %v2501 = vadd.f32 0.0, %v2500
  %v2502 = vpop.f32.mrb[0].mxu0
  %2503 = vdwg.mxu0
  %v2504 = vxor.u32 %v2501, 2147483648
  %v2505 = vmul.f32 %v2504, 1.442695
  %v2506 = vpow.pop %v2505
  %v2507 = vadd.f32 %v2506, 1.0
  %v2508 = vrcp.pop %v2507
  %v2509 = vmul.f32 1.0, %v2508
  %v2510 = vtanh.pop %v2501
  %v2511 = vmul.f32 %v2509, %v1946
  %2513 = vrot.lane.b32.xlu0 %v2510, 64
  %v2514 = vpop.permute.xlu0 %2513
  %v2516 = vmul.f32 %v2509, %v2514
  %2518 = vrot.lane.b32.xlu0 %v2516, 32
  %v2519 = vpop.permute.xlu0 %2518
  %v2521 = vadd.f32 %v2511, %v2519
  %v2522 = vtanh.pop %v2521
  %2524 = vrot.lane.b32.xlu0 %v2522, 64
  %v2525 = vpop.permute.xlu0 %2524
  %v2527 = vmul.f32 %v2509, %v2525
  %2529 = vrot.lane.b32.xlu0 %v2527, 32
  %v2530 = vpop.permute.xlu0 %2529
  %v2532 = vsel %vm64, %v2530, %v2521
  %v2534 = vsel %vm211, %v2532, 0
  %2536 = vmatprep.subr.mxu0 0.0
  %2537 = vmatpush1.msra.mxu0 %v28
  %2538 = vmatprep.subr.mxu0 0.0
  %2539 = vmatpush1.msra.mxu0 %v29
  %2540 = vmatprep.subr.mxu0 0.0
  %2541 = vmatpush1.msra.mxu0 %v30
  %2542 = vmatprep.subr.mxu0 0.0
  %2543 = vmatpush1.msra.mxu0 %v31
  %2544 = vmatprep.subr.mxu0 0.0
  %2545 = vmatpush1.msra.mxu0 %v32
  %2546 = vmatprep.subr.mxu0 0.0
  %2547 = vmatpush1.msra.mxu0 %v33
  %2548 = vmatprep.subr.mxu0 0.0
  %2549 = vmatpush1.msra.mxu0 %v34
  %2550 = vmatprep.subr.mxu0 0.0
  %2551 = vmatpush1.msra.mxu0 %v35
  %2552 = vmatprep.subr.mxu0 0.0
  %2553 = vmatpush1.msra.mxu0 0.0
  %2554 = vmatprep.subr.mxu0 0.0
  %2555 = vmatpush1.msra.mxu0 0.0
  %2556 = vmatprep.subr.mxu0 0.0
  %2557 = vmatpush1.msra.mxu0 0.0
  %2558 = vmatprep.subr.mxu0 0.0
  %2559 = vmatpush1.msra.mxu0 0.0
  %2560 = vmatprep.subr.mxu0 0.0
  %2561 = vmatpush1.msra.mxu0 0.0
  %2562 = vmatprep.subr.mxu0 0.0
  %2563 = vmatpush1.msra.mxu0 0.0
  %2564 = vmatprep.subr.mxu0 0.0
  %2565 = vmatpush1.msra.mxu0 0.0
  %2566 = vmatprep.subr.mxu0 0.0
  %2567 = vmatpush1.msra.mxu0 0.0
  %2568 = vmatprep.subr.mxu0 0.0
  %2569 = vmatpush1.msra.mxu0 0.0
  %2570 = vmatprep.subr.mxu0 0.0
  %2571 = vmatpush1.msra.mxu0 0.0
  %2572 = vmatprep.subr.mxu0 0.0
  %2573 = vmatpush1.msra.mxu0 0.0
  %2574 = vmatprep.subr.mxu0 0.0
  %2575 = vmatpush1.msra.mxu0 0.0
  %2576 = vmatprep.subr.mxu0 0.0
  %2577 = vmatpush1.msra.mxu0 0.0
  %2578 = vmatprep.subr.mxu0 0.0
  %2579 = vmatpush1.msra.mxu0 0.0
  %2580 = vmatprep.subr.mxu0 0.0
  %2581 = vmatpush1.msra.mxu0 0.0
  %2582 = vmatprep.subr.mxu0 0.0
  %2583 = vmatpush1.msra.mxu0 0.0
  %2584 = vmatprep.subr.mxu0 0.0
  %2585 = vmatpush1.msra.mxu0 0.0
  %2586 = vmatprep.subr.mxu0 0.0
  %2587 = vmatpush1.msra.mxu0 0.0
  %2588 = vmatprep.subr.mxu0 0.0
  %2589 = vmatpush1.msra.mxu0 0.0
  %2590 = vmatprep.subr.mxu0 0.0
  %2591 = vmatpush1.msra.mxu0 0.0
  %2592 = vmatprep.subr.mxu0 0.0
  %2593 = vmatpush1.msra.mxu0 0.0
  %2594 = vmatprep.subr.mxu0 0.0
  %2595 = vmatpush1.msra.mxu0 0.0
  %2596 = vmatprep.subr.mxu0 0.0
  %2597 = vmatpush1.msra.mxu0 0.0
  %2598 = vmatprep.subr.mxu0 0.0
  %2599 = vmatpush1.msra.mxu0 0.0
  %2600 = vmatprep.mubr.f32.mxu0 0.0
  %2601 = vmatmul.mubr.f32.gmra.mrb[0].mxu0 %v2534
  %v2602 = vpop.f32.mrb[0].mxu0
  %v2603 = vadd.f32 0.0, %v2602
  %v2604 = vpop.f32.mrb[0].mxu0
  %2605 = vdwg.mxu0
  %v2607 = vcombine.high %v2603, %v2603
  %v2609 = vunpack.c.l.s4 1966171168
  %v2610 = vunpack.c.0.s8 %v2609
  %v2611 = vlaneseq
  %v2612 = vshrl.u32 %v2611, 7
  %v2613 = vsub.s32 %v2610, %v2612
  %v2614 = vrot.slane %v2603, %v2613
  %v2616 = vunpack.c.l.s4 1966171168
  %v2617 = vunpack.c.0.s8 %v2616
  %v2618 = vlaneseq
  %v2619 = vshrl.u32 %v2618, 7
  %v2620 = vsub.s32 %v2617, %v2619
  %v2621 = vrot.slane %v2607, %v2620
  %v2622 = vcombine.high %v2614, %v2614
  %v2623 = vcombine.high %v2621, %v2621
  %v2625 = vunpack.c.l.s4 1966171168
  %v2626 = vunpack.c.0.s8 %v2625
  %v2627 = vlaneseq
  %v2628 = vshrl.u32 %v2627, 7
  %v2629 = vsub.s32 %v2626, %v2628
  %v2630 = vrot.slane %v2614, %v2629
  %v2632 = vunpack.c.l.s4 1966171168
  %v2633 = vunpack.c.0.s8 %v2632
  %v2634 = vlaneseq
  %v2635 = vshrl.u32 %v2634, 7
  %v2636 = vsub.s32 %v2633, %v2635
  %v2637 = vrot.slane %v2621, %v2636
  %v2639 = vunpack.c.l.s4 1966171168
  %v2640 = vunpack.c.0.s8 %v2639
  %v2641 = vlaneseq
  %v2642 = vshrl.u32 %v2641, 7
  %v2643 = vsub.s32 %v2640, %v2642
  %v2644 = vrot.slane %v2622, %v2643
  %v2646 = vunpack.c.l.s4 1966171168
  %v2647 = vunpack.c.0.s8 %v2646
  %v2648 = vlaneseq
  %v2649 = vshrl.u32 %v2648, 7
  %v2650 = vsub.s32 %v2647, %v2649
  %v2651 = vrot.slane %v2623, %v2650
  %v2652 = vcombine.high %v2630, %v2630
  %v2653 = vcombine.high %v2637, %v2637
  %v2654 = vcombine.high %v2644, %v2644
  %v2655 = vcombine.high %v2651, %v2651
  %v2656 = vlaneseq
  %v2657 = vshrl.u32 %v2656, 7
  %v2658 = vsub.s32 0, %v2657
  %v2659 = vrot.slane %v2630, %v2658
  %v2660 = vlaneseq
  %v2661 = vshrl.u32 %v2660, 7
  %v2662 = vsub.s32 0, %v2661
  %v2663 = vrot.slane %v2644, %v2662
  %v2664 = vlaneseq
  %v2665 = vshrl.u32 %v2664, 7
  %v2666 = vsub.s32 0, %v2665
  %v2667 = vrot.slane %v2652, %v2666
  %v2668 = vlaneseq
  %v2669 = vshrl.u32 %v2668, 7
  %v2670 = vsub.s32 0, %v2669
  %v2671 = vrot.slane %v2654, %v2670
  %v2672 = vlaneseq
  %v2673 = vshrl.u32 %v2672, 7
  %v2674 = vsub.s32 0, %v2673
  %v2675 = vrot.slane %v2637, %v2674
  %v2676 = vlaneseq
  %v2677 = vshrl.u32 %v2676, 7
  %v2678 = vsub.s32 0, %v2677
  %v2679 = vrot.slane %v2651, %v2678
  %v2680 = vlaneseq
  %v2681 = vshrl.u32 %v2680, 7
  %v2682 = vsub.s32 0, %v2681
  %v2683 = vrot.slane %v2653, %v2682
  %v2684 = vlaneseq
  %v2685 = vshrl.u32 %v2684, 7
  %v2686 = vsub.s32 0, %v2685
  %v2687 = vrot.slane %v2655, %v2686
  %v2696 = vadd.f32 %v156, %v2659
  %v2697 = vadd.f32 %v161, %v2663
  %v2698 = vadd.f32 %v166, %v2667
  %v2699 = vadd.f32 %v171, %v2671
  %v2700 = vadd.f32 %v176, %v2675
  %v2701 = vadd.f32 %v181, %v2679
  %v2702 = vadd.f32 %v186, %v2683
  %v2703 = vadd.f32 %v191, %v2687
  %v2704 = vtanh.pop %v2696
  %v2705 = vtanh.pop %v2697
  %v2706 = vtanh.pop %v2698
  %v2707 = vtanh.pop %v2699
  %v2708 = vtanh.pop %v2700
  %v2709 = vtanh.pop %v2701
  %v2710 = vtanh.pop %v2702
  %v2711 = vtanh.pop %v2703
  %v2712 = vmul.f32 %v2704, %v394
  %v2713 = vmul.f32 %v2705, %v394
  %v2714 = vmul.f32 %v2706, %v394
  %v2715 = vmul.f32 %v2707, %v394
  %v2716 = vmul.f32 %v2708, %v394
  %v2717 = vmul.f32 %v2709, %v394
  %v2718 = vmul.f32 %v2710, %v394
  %v2719 = vmul.f32 %v2711, %v394
  %v2720 = vsel %vm64, %v2712, 0.0
  %2721 = vadd.xlane.f32.xlu0 %v2720
  %v2722 = vpop.xlane.xlu0 %2721
  %v2723 = vsel %vm64, %v2713, 0.0
  %2724 = vadd.xlane.f32.xlu0 %v2723
  %v2725 = vpop.xlane.xlu0 %2724
  %v2726 = vsel %vm64, %v2714, 0.0
  %2727 = vadd.xlane.f32.xlu0 %v2726
  %v2728 = vpop.xlane.xlu0 %2727
  %v2729 = vsel %vm64, %v2715, 0.0
  %2730 = vadd.xlane.f32.xlu0 %v2729
  %v2731 = vpop.xlane.xlu0 %2730
  %v2732 = vsel %vm64, %v2716, 0.0
  %2733 = vadd.xlane.f32.xlu0 %v2732
  %v2734 = vpop.xlane.xlu0 %2733
  %v2735 = vsel %vm64, %v2717, 0.0
  %2736 = vadd.xlane.f32.xlu0 %v2735
  %v2737 = vpop.xlane.xlu0 %2736
  %v2738 = vsel %vm64, %v2718, 0.0
  %2739 = vadd.xlane.f32.xlu0 %v2738
  %v2740 = vpop.xlane.xlu0 %2739
  %v2741 = vsel %vm64, %v2719, 0.0
  %2742 = vadd.xlane.f32.xlu0 %v2741
  %v2743 = vpop.xlane.xlu0 %2742
  %v2744 = vrot.slane %v2722, 4
  %v2745 = vmax.f32 %v2722, %v2744
  %v2746 = vrot.slane %v2745, 2
  %v2747 = vmax.f32 %v2745, %v2746
  %v2748 = vrot.slane %v2747, 1
  %v2749 = vmax.f32 %v2747, %v2748
  %v2750 = vrot.slane %v2725, 4
  %v2751 = vmax.f32 %v2725, %v2750
  %v2752 = vrot.slane %v2751, 2
  %v2753 = vmax.f32 %v2751, %v2752
  %v2754 = vrot.slane %v2753, 1
  %v2755 = vmax.f32 %v2753, %v2754
  %v2756 = vrot.slane %v2728, 4
  %v2757 = vmax.f32 %v2728, %v2756
  %v2758 = vrot.slane %v2757, 2
  %v2759 = vmax.f32 %v2757, %v2758
  %v2760 = vrot.slane %v2759, 1
  %v2761 = vmax.f32 %v2759, %v2760
  %v2762 = vrot.slane %v2731, 4
  %v2763 = vmax.f32 %v2731, %v2762
  %v2764 = vrot.slane %v2763, 2
  %v2765 = vmax.f32 %v2763, %v2764
  %v2766 = vrot.slane %v2765, 1
  %v2767 = vmax.f32 %v2765, %v2766
  %v2768 = vrot.slane %v2734, 4
  %v2769 = vmax.f32 %v2734, %v2768
  %v2770 = vrot.slane %v2769, 2
  %v2771 = vmax.f32 %v2769, %v2770
  %v2772 = vrot.slane %v2771, 1
  %v2773 = vmax.f32 %v2771, %v2772
  %v2774 = vrot.slane %v2737, 4
  %v2775 = vmax.f32 %v2737, %v2774
  %v2776 = vrot.slane %v2775, 2
  %v2777 = vmax.f32 %v2775, %v2776
  %v2778 = vrot.slane %v2777, 1
  %v2779 = vmax.f32 %v2777, %v2778
  %v2780 = vrot.slane %v2740, 4
  %v2781 = vmax.f32 %v2740, %v2780
  %v2782 = vrot.slane %v2781, 2
  %v2783 = vmax.f32 %v2781, %v2782
  %v2784 = vrot.slane %v2783, 1
  %v2785 = vmax.f32 %v2783, %v2784
  %v2786 = vrot.slane %v2743, 4
  %v2787 = vmax.f32 %v2743, %v2786
  %v2788 = vrot.slane %v2787, 2
  %v2789 = vmax.f32 %v2787, %v2788
  %v2790 = vrot.slane %v2789, 1
  %v2791 = vmax.f32 %v2789, %v2790
  %v2792 = vsub.f32 %v2722, %v2749
  %v2793 = vsub.f32 %v2725, %v2755
  %v2794 = vsub.f32 %v2728, %v2761
  %v2795 = vsub.f32 %v2731, %v2767
  %v2796 = vsub.f32 %v2734, %v2773
  %v2797 = vsub.f32 %v2737, %v2779
  %v2798 = vsub.f32 %v2740, %v2785
  %v2799 = vsub.f32 %v2743, %v2791
  %v2800 = vmul.f32 %v2792, 1.442695
  %v2801 = vpow.pop %v2800
  %v2802 = vmul.f32 %v2793, 1.442695
  %v2803 = vpow.pop %v2802
  %v2804 = vmul.f32 %v2794, 1.442695
  %v2805 = vpow.pop %v2804
  %v2806 = vmul.f32 %v2795, 1.442695
  %v2807 = vpow.pop %v2806
  %v2808 = vmul.f32 %v2796, 1.442695
  %v2809 = vpow.pop %v2808
  %v2810 = vmul.f32 %v2797, 1.442695
  %v2811 = vpow.pop %v2810
  %v2812 = vmul.f32 %v2798, 1.442695
  %v2813 = vpow.pop %v2812
  %v2814 = vmul.f32 %v2799, 1.442695
  %v2815 = vpow.pop %v2814
  %v2816 = vrot.slane %v2801, 4
  %v2817 = vadd.f32 %v2801, %v2816
  %v2818 = vrot.slane %v2817, 2
  %v2819 = vadd.f32 %v2817, %v2818
  %v2820 = vrot.slane %v2819, 1
  %v2821 = vadd.f32 %v2819, %v2820
  %v2822 = vrot.slane %v2803, 4
  %v2823 = vadd.f32 %v2803, %v2822
  %v2824 = vrot.slane %v2823, 2
  %v2825 = vadd.f32 %v2823, %v2824
  %v2826 = vrot.slane %v2825, 1
  %v2827 = vadd.f32 %v2825, %v2826
  %v2828 = vrot.slane %v2805, 4
  %v2829 = vadd.f32 %v2805, %v2828
  %v2830 = vrot.slane %v2829, 2
  %v2831 = vadd.f32 %v2829, %v2830
  %v2832 = vrot.slane %v2831, 1
  %v2833 = vadd.f32 %v2831, %v2832
  %v2834 = vrot.slane %v2807, 4
  %v2835 = vadd.f32 %v2807, %v2834
  %v2836 = vrot.slane %v2835, 2
  %v2837 = vadd.f32 %v2835, %v2836
  %v2838 = vrot.slane %v2837, 1
  %v2839 = vadd.f32 %v2837, %v2838
  %v2840 = vrot.slane %v2809, 4
  %v2841 = vadd.f32 %v2809, %v2840
  %v2842 = vrot.slane %v2841, 2
  %v2843 = vadd.f32 %v2841, %v2842
  %v2844 = vrot.slane %v2843, 1
  %v2845 = vadd.f32 %v2843, %v2844
  %v2846 = vrot.slane %v2811, 4
  %v2847 = vadd.f32 %v2811, %v2846
  %v2848 = vrot.slane %v2847, 2
  %v2849 = vadd.f32 %v2847, %v2848
  %v2850 = vrot.slane %v2849, 1
  %v2851 = vadd.f32 %v2849, %v2850
  %v2852 = vrot.slane %v2813, 4
  %v2853 = vadd.f32 %v2813, %v2852
  %v2854 = vrot.slane %v2853, 2
  %v2855 = vadd.f32 %v2853, %v2854
  %v2856 = vrot.slane %v2855, 1
  %v2857 = vadd.f32 %v2855, %v2856
  %v2858 = vrot.slane %v2815, 4
  %v2859 = vadd.f32 %v2815, %v2858
  %v2860 = vrot.slane %v2859, 2
  %v2861 = vadd.f32 %v2859, %v2860
  %v2862 = vrot.slane %v2861, 1
  %v2863 = vadd.f32 %v2861, %v2862
  %v2864 = vrcp.pop %v2821
  %v2865 = vrcp.pop %v2827
  %v2866 = vrcp.pop %v2833
  %v2867 = vrcp.pop %v2839
  %v2868 = vrcp.pop %v2845
  %v2869 = vrcp.pop %v2851
  %v2870 = vrcp.pop %v2857
  %v2871 = vrcp.pop %v2863
  %v2872 = vmul.f32 %v2821, %v2864
  %v2873 = vmul.f32 %v2827, %v2865
  %v2874 = vmul.f32 %v2833, %v2866
  %v2875 = vmul.f32 %v2839, %v2867
  %v2876 = vmul.f32 %v2845, %v2868
  %v2877 = vmul.f32 %v2851, %v2869
  %v2878 = vmul.f32 %v2857, %v2870
  %v2879 = vmul.f32 %v2863, %v2871
  %v2880 = vsub.f32 2.0, %v2872
  %v2881 = vsub.f32 2.0, %v2873
  %v2882 = vsub.f32 2.0, %v2874
  %v2883 = vsub.f32 2.0, %v2875
  %v2884 = vsub.f32 2.0, %v2876
  %v2885 = vsub.f32 2.0, %v2877
  %v2886 = vsub.f32 2.0, %v2878
  %v2887 = vsub.f32 2.0, %v2879
  %v2888 = vmul.f32 %v2864, %v2880
  %v2889 = vmul.f32 %v2865, %v2881
  %v2890 = vmul.f32 %v2866, %v2882
  %v2891 = vmul.f32 %v2867, %v2883
  %v2892 = vmul.f32 %v2868, %v2884
  %v2893 = vmul.f32 %v2869, %v2885
  %v2894 = vmul.f32 %v2870, %v2886
  %v2895 = vmul.f32 %v2871, %v2887
  %v2896 = vmul.f32 %v2801, %v2888
  %v2897 = vmul.f32 %v2803, %v2889
  %v2898 = vmul.f32 %v2805, %v2890
  %v2899 = vmul.f32 %v2807, %v2891
  %v2900 = vmul.f32 %v2809, %v2892
  %v2901 = vmul.f32 %v2811, %v2893
  %v2902 = vmul.f32 %v2813, %v2894
  %v2903 = vmul.f32 %v2815, %v2895
  %v2904 = vmul.f32 %v2896, %v20
  %v2905 = vmul.f32 %v2897, %v21
  %v2906 = vmul.f32 %v2898, %v22
  %v2907 = vmul.f32 %v2899, %v23
  %v2908 = vmul.f32 %v2900, %v24
  %v2909 = vmul.f32 %v2901, %v25
  %v2910 = vmul.f32 %v2902, %v26
  %v2911 = vmul.f32 %v2903, %v27
  %v2912 = vsel %vm64, %v2904, 0.0
  %v2913 = vrot.slane %v2912, 4
  %v2914 = vadd.f32 %v2912, %v2913
  %v2915 = vrot.slane %v2914, 2
  %v2916 = vadd.f32 %v2914, %v2915
  %v2917 = vrot.slane %v2916, 1
  %v2918 = vadd.f32 %v2916, %v2917
  %v2919 = vsel %vm64, %v2905, 0.0
  %v2920 = vrot.slane %v2919, 4
  %v2921 = vadd.f32 %v2919, %v2920
  %v2922 = vrot.slane %v2921, 2
  %v2923 = vadd.f32 %v2921, %v2922
  %v2924 = vrot.slane %v2923, 1
  %v2925 = vadd.f32 %v2923, %v2924
  %v2926 = vsel %vm64, %v2906, 0.0
  %v2927 = vrot.slane %v2926, 4
  %v2928 = vadd.f32 %v2926, %v2927
  %v2929 = vrot.slane %v2928, 2
  %v2930 = vadd.f32 %v2928, %v2929
  %v2931 = vrot.slane %v2930, 1
  %v2932 = vadd.f32 %v2930, %v2931
  %v2933 = vsel %vm64, %v2907, 0.0
  %v2934 = vrot.slane %v2933, 4
  %v2935 = vadd.f32 %v2933, %v2934
  %v2936 = vrot.slane %v2935, 2
  %v2937 = vadd.f32 %v2935, %v2936
  %v2938 = vrot.slane %v2937, 1
  %v2939 = vadd.f32 %v2937, %v2938
  %v2940 = vsel %vm64, %v2908, 0.0
  %v2941 = vrot.slane %v2940, 4
  %v2942 = vadd.f32 %v2940, %v2941
  %v2943 = vrot.slane %v2942, 2
  %v2944 = vadd.f32 %v2942, %v2943
  %v2945 = vrot.slane %v2944, 1
  %v2946 = vadd.f32 %v2944, %v2945
  %v2947 = vsel %vm64, %v2909, 0.0
  %v2948 = vrot.slane %v2947, 4
  %v2949 = vadd.f32 %v2947, %v2948
  %v2950 = vrot.slane %v2949, 2
  %v2951 = vadd.f32 %v2949, %v2950
  %v2952 = vrot.slane %v2951, 1
  %v2953 = vadd.f32 %v2951, %v2952
  %v2954 = vsel %vm64, %v2910, 0.0
  %v2955 = vrot.slane %v2954, 4
  %v2956 = vadd.f32 %v2954, %v2955
  %v2957 = vrot.slane %v2956, 2
  %v2958 = vadd.f32 %v2956, %v2957
  %v2959 = vrot.slane %v2958, 1
  %v2960 = vadd.f32 %v2958, %v2959
  %v2961 = vsel %vm64, %v2911, 0.0
  %v2962 = vrot.slane %v2961, 4
  %v2963 = vadd.f32 %v2961, %v2962
  %v2964 = vrot.slane %v2963, 2
  %v2965 = vadd.f32 %v2963, %v2964
  %v2966 = vrot.slane %v2965, 1
  %v2967 = vadd.f32 %v2965, %v2966
  %v2976 = vsel %vm659, %v2925, %v2918
  %v2977 = vsel %vm661, %v2932, %v2976
  %v2978 = vsel %vm663, %v2939, %v2977
  %v2979 = vsel %vm665, %v2946, %v2978
  %v2980 = vsel %vm667, %v2953, %v2979
  %v2981 = vsel %vm669, %v2960, %v2980
  %v2982 = vsel %vm671, %v2967, %v2981
  %2984 = vrot.lane.b32.xlu0 %v2527, 64
  %v2985 = vpop.permute.xlu0 %2984
  %v2987 = vrot.slane %v203, 4
  %v2988 = vrot.slane %v204, 3
  %v2989 = vsel %vm659, %v2988, %v2987
  %v2990 = vrot.slane %v205, 2
  %v2991 = vsel %vm661, %v2990, %v2989
  %v2992 = vrot.slane %v206, 1
  %v2993 = vsel %vm663, %v2992, %v2991
  %v2994 = vsel %vm665, %v207, %v2993
  %v2995 = vrot.slane %v208, 7
  %v2996 = vsel %vm667, %v2995, %v2994
  %v2997 = vrot.slane %v209, 6
  %v2998 = vsel %vm669, %v2997, %v2996
  %v2999 = vrot.slane %v210, 5
  %v3000 = vsel %vm671, %v2999, %v2998
  %3001 = vrot.lane.b32.xlu0 %v3000, 64
  %v3002 = vpop.permute.xlu0 %3001
  %v3004 = vsel %vm64, %v2982, %v2985
  %v3005 = vsel %vm211, %v3004, %v3002
  %v3007 = vsel %vm701, %v3005, 0
  %3009 = vmatprep.subr.mxu0 0.0
  %3010 = vmatpush1.msra.mxu0 %v42
  %3011 = vmatprep.subr.mxu0 0.0
  %3012 = vmatpush1.msra.mxu0 %v43
  %3013 = vmatprep.subr.mxu0 0.0
  %3014 = vmatpush1.msra.mxu0 %v44
  %3015 = vmatprep.subr.mxu0 0.0
  %3016 = vmatpush1.msra.mxu0 %v45
  %3017 = vmatprep.subr.mxu0 0.0
  %3018 = vmatpush1.msra.mxu0 %v46
  %3019 = vmatprep.subr.mxu0 0.0
  %3020 = vmatpush1.msra.mxu0 %v47
  %3021 = vmatprep.subr.mxu0 0.0
  %3022 = vmatpush1.msra.mxu0 %v48
  %3023 = vmatprep.subr.mxu0 0.0
  %3024 = vmatpush1.msra.mxu0 %v49
  %3025 = vmatprep.subr.mxu0 0.0
  %3026 = vmatpush1.msra.mxu0 %v707
  %3027 = vmatprep.subr.mxu0 0.0
  %3028 = vmatpush1.msra.mxu0 0.0
  %3029 = vmatprep.subr.mxu0 0.0
  %3030 = vmatpush1.msra.mxu0 0.0
  %3031 = vmatprep.subr.mxu0 0.0
  %3032 = vmatpush1.msra.mxu0 0.0
  %3033 = vmatprep.subr.mxu0 0.0
  %3034 = vmatpush1.msra.mxu0 0.0
  %3035 = vmatprep.subr.mxu0 0.0
  %3036 = vmatpush1.msra.mxu0 0.0
  %3037 = vmatprep.subr.mxu0 0.0
  %3038 = vmatpush1.msra.mxu0 0.0
  %3039 = vmatprep.subr.mxu0 0.0
  %3040 = vmatpush1.msra.mxu0 0.0
  %3041 = vmatprep.subr.mxu0 0.0
  %3042 = vmatpush1.msra.mxu0 0.0
  %3043 = vmatprep.subr.mxu0 0.0
  %3044 = vmatpush1.msra.mxu0 0.0
  %3045 = vmatprep.subr.mxu0 0.0
  %3046 = vmatpush1.msra.mxu0 0.0
  %3047 = vmatprep.subr.mxu0 0.0
  %3048 = vmatpush1.msra.mxu0 0.0
  %3049 = vmatprep.subr.mxu0 0.0
  %3050 = vmatpush1.msra.mxu0 0.0
  %3051 = vmatprep.subr.mxu0 0.0
  %3052 = vmatpush1.msra.mxu0 0.0
  %3053 = vmatprep.subr.mxu0 0.0
  %3054 = vmatpush1.msra.mxu0 0.0
  %3055 = vmatprep.subr.mxu0 0.0
  %3056 = vmatpush1.msra.mxu0 0.0
  %3057 = vmatprep.subr.mxu0 0.0
  %3058 = vmatpush1.msra.mxu0 0.0
  %3059 = vmatprep.subr.mxu0 0.0
  %3060 = vmatpush1.msra.mxu0 0.0
  %3061 = vmatprep.subr.mxu0 0.0
  %3062 = vmatpush1.msra.mxu0 0.0
  %3063 = vmatprep.subr.mxu0 0.0
  %3064 = vmatpush1.msra.mxu0 0.0
  %3065 = vmatprep.subr.mxu0 0.0
  %3066 = vmatpush1.msra.mxu0 0.0
  %3067 = vmatprep.subr.mxu0 0.0
  %3068 = vmatpush1.msra.mxu0 0.0
  %3069 = vmatprep.subr.mxu0 0.0
  %3070 = vmatpush1.msra.mxu0 0.0
  %3071 = vmatprep.subr.mxu0 0.0
  %3072 = vmatpush1.msra.mxu0 0.0
  %3073 = vmatprep.mubr.f32.mxu0 0.0
  %3074 = vmatmul.mubr.f32.gmra.mrb[0].mxu0 %v3007
  %v3075 = vpop.f32.mrb[0].mxu0
  %v3076 = vadd.f32 0.0, %v3075
  %v3077 = vpop.f32.mrb[0].mxu0
  %3078 = vdwg.mxu0
  %v3079 = vxor.u32 %v3076, 2147483648
  %v3080 = vmul.f32 %v3079, 1.442695
  %v3081 = vpow.pop %v3080
  %v3082 = vadd.f32 %v3081, 1.0
  %v3083 = vrcp.pop %v3082
  %v3084 = vmul.f32 1.0, %v3083
  %v3085 = vtanh.pop %v3076
  %v3086 = vmul.f32 %v3084, %v2521
  %3088 = vrot.lane.b32.xlu0 %v3085, 64
  %v3089 = vpop.permute.xlu0 %3088
  %v3091 = vmul.f32 %v3084, %v3089
  %3093 = vrot.lane.b32.xlu0 %v3091, 32
  %v3094 = vpop.permute.xlu0 %3093
  %v3096 = vadd.f32 %v3086, %v3094
  %v3097 = vtanh.pop %v3096
  %3099 = vrot.lane.b32.xlu0 %v3097, 64
  %v3100 = vpop.permute.xlu0 %3099
  %v3102 = vmul.f32 %v3084, %v3100
  %3104 = vrot.lane.b32.xlu0 %v3102, 32
  %v3105 = vpop.permute.xlu0 %3104
  %v3107 = vsel %vm64, %v3105, %v3096
  %v3109 = vsel %vm211, %v3107, 0
  %3111 = vmatprep.subr.mxu0 0.0
  %3112 = vmatpush1.msra.mxu0 %v28
  %3113 = vmatprep.subr.mxu0 0.0
  %3114 = vmatpush1.msra.mxu0 %v29
  %3115 = vmatprep.subr.mxu0 0.0
  %3116 = vmatpush1.msra.mxu0 %v30
  %3117 = vmatprep.subr.mxu0 0.0
  %3118 = vmatpush1.msra.mxu0 %v31
  %3119 = vmatprep.subr.mxu0 0.0
  %3120 = vmatpush1.msra.mxu0 %v32
  %3121 = vmatprep.subr.mxu0 0.0
  %3122 = vmatpush1.msra.mxu0 %v33
  %3123 = vmatprep.subr.mxu0 0.0
  %3124 = vmatpush1.msra.mxu0 %v34
  %3125 = vmatprep.subr.mxu0 0.0
  %3126 = vmatpush1.msra.mxu0 %v35
  %3127 = vmatprep.subr.mxu0 0.0
  %3128 = vmatpush1.msra.mxu0 0.0
  %3129 = vmatprep.subr.mxu0 0.0
  %3130 = vmatpush1.msra.mxu0 0.0
  %3131 = vmatprep.subr.mxu0 0.0
  %3132 = vmatpush1.msra.mxu0 0.0
  %3133 = vmatprep.subr.mxu0 0.0
  %3134 = vmatpush1.msra.mxu0 0.0
  %3135 = vmatprep.subr.mxu0 0.0
  %3136 = vmatpush1.msra.mxu0 0.0
  %3137 = vmatprep.subr.mxu0 0.0
  %3138 = vmatpush1.msra.mxu0 0.0
  %3139 = vmatprep.subr.mxu0 0.0
  %3140 = vmatpush1.msra.mxu0 0.0
  %3141 = vmatprep.subr.mxu0 0.0
  %3142 = vmatpush1.msra.mxu0 0.0
  %3143 = vmatprep.subr.mxu0 0.0
  %3144 = vmatpush1.msra.mxu0 0.0
  %3145 = vmatprep.subr.mxu0 0.0
  %3146 = vmatpush1.msra.mxu0 0.0
  %3147 = vmatprep.subr.mxu0 0.0
  %3148 = vmatpush1.msra.mxu0 0.0
  %3149 = vmatprep.subr.mxu0 0.0
  %3150 = vmatpush1.msra.mxu0 0.0
  %3151 = vmatprep.subr.mxu0 0.0
  %3152 = vmatpush1.msra.mxu0 0.0
  %3153 = vmatprep.subr.mxu0 0.0
  %3154 = vmatpush1.msra.mxu0 0.0
  %3155 = vmatprep.subr.mxu0 0.0
  %3156 = vmatpush1.msra.mxu0 0.0
  %3157 = vmatprep.subr.mxu0 0.0
  %3158 = vmatpush1.msra.mxu0 0.0
  %3159 = vmatprep.subr.mxu0 0.0
  %3160 = vmatpush1.msra.mxu0 0.0
  %3161 = vmatprep.subr.mxu0 0.0
  %3162 = vmatpush1.msra.mxu0 0.0
  %3163 = vmatprep.subr.mxu0 0.0
  %3164 = vmatpush1.msra.mxu0 0.0
  %3165 = vmatprep.subr.mxu0 0.0
  %3166 = vmatpush1.msra.mxu0 0.0
  %3167 = vmatprep.subr.mxu0 0.0
  %3168 = vmatpush1.msra.mxu0 0.0
  %3169 = vmatprep.subr.mxu0 0.0
  %3170 = vmatpush1.msra.mxu0 0.0
  %3171 = vmatprep.subr.mxu0 0.0
  %3172 = vmatpush1.msra.mxu0 0.0
  %3173 = vmatprep.subr.mxu0 0.0
  %3174 = vmatpush1.msra.mxu0 0.0
  %3175 = vmatprep.mubr.f32.mxu0 0.0
  %3176 = vmatmul.mubr.f32.gmra.mrb[0].mxu0 %v3109
  %v3177 = vpop.f32.mrb[0].mxu0
  %v3178 = vadd.f32 0.0, %v3177
  %v3179 = vpop.f32.mrb[0].mxu0
  %3180 = vdwg.mxu0
  %v3182 = vcombine.high %v3178, %v3178
  %v3184 = vunpack.c.l.s4 1966171168
  %v3185 = vunpack.c.0.s8 %v3184
  %v3186 = vlaneseq
  %v3187 = vshrl.u32 %v3186, 7
  %v3188 = vsub.s32 %v3185, %v3187
  %v3189 = vrot.slane %v3178, %v3188
  %v3191 = vunpack.c.l.s4 1966171168
  %v3192 = vunpack.c.0.s8 %v3191
  %v3193 = vlaneseq
  %v3194 = vshrl.u32 %v3193, 7
  %v3195 = vsub.s32 %v3192, %v3194
  %v3196 = vrot.slane %v3182, %v3195
  %v3197 = vcombine.high %v3189, %v3189
  %v3198 = vcombine.high %v3196, %v3196
  %v3200 = vunpack.c.l.s4 1966171168
  %v3201 = vunpack.c.0.s8 %v3200
  %v3202 = vlaneseq
  %v3203 = vshrl.u32 %v3202, 7
  %v3204 = vsub.s32 %v3201, %v3203
  %v3205 = vrot.slane %v3189, %v3204
  %v3207 = vunpack.c.l.s4 1966171168
  %v3208 = vunpack.c.0.s8 %v3207
  %v3209 = vlaneseq
  %v3210 = vshrl.u32 %v3209, 7
  %v3211 = vsub.s32 %v3208, %v3210
  %v3212 = vrot.slane %v3196, %v3211
  %v3214 = vunpack.c.l.s4 1966171168
  %v3215 = vunpack.c.0.s8 %v3214
  %v3216 = vlaneseq
  %v3217 = vshrl.u32 %v3216, 7
  %v3218 = vsub.s32 %v3215, %v3217
  %v3219 = vrot.slane %v3197, %v3218
  %v3221 = vunpack.c.l.s4 1966171168
  %v3222 = vunpack.c.0.s8 %v3221
  %v3223 = vlaneseq
  %v3224 = vshrl.u32 %v3223, 7
  %v3225 = vsub.s32 %v3222, %v3224
  %v3226 = vrot.slane %v3198, %v3225
  %v3227 = vcombine.high %v3205, %v3205
  %v3228 = vcombine.high %v3212, %v3212
  %v3229 = vcombine.high %v3219, %v3219
  %v3230 = vcombine.high %v3226, %v3226
  %v3231 = vlaneseq
  %v3232 = vshrl.u32 %v3231, 7
  %v3233 = vsub.s32 0, %v3232
  %v3234 = vrot.slane %v3205, %v3233
  %v3235 = vlaneseq
  %v3236 = vshrl.u32 %v3235, 7
  %v3237 = vsub.s32 0, %v3236
  %v3238 = vrot.slane %v3219, %v3237
  %v3239 = vlaneseq
  %v3240 = vshrl.u32 %v3239, 7
  %v3241 = vsub.s32 0, %v3240
  %v3242 = vrot.slane %v3227, %v3241
  %v3243 = vlaneseq
  %v3244 = vshrl.u32 %v3243, 7
  %v3245 = vsub.s32 0, %v3244
  %v3246 = vrot.slane %v3229, %v3245
  %v3247 = vlaneseq
  %v3248 = vshrl.u32 %v3247, 7
  %v3249 = vsub.s32 0, %v3248
  %v3250 = vrot.slane %v3212, %v3249
  %v3251 = vlaneseq
  %v3252 = vshrl.u32 %v3251, 7
  %v3253 = vsub.s32 0, %v3252
  %v3254 = vrot.slane %v3226, %v3253
  %v3255 = vlaneseq
  %v3256 = vshrl.u32 %v3255, 7
  %v3257 = vsub.s32 0, %v3256
  %v3258 = vrot.slane %v3228, %v3257
  %v3259 = vlaneseq
  %v3260 = vshrl.u32 %v3259, 7
  %v3261 = vsub.s32 0, %v3260
  %v3262 = vrot.slane %v3230, %v3261
  %v3271 = vadd.f32 %v156, %v3234
  %v3272 = vadd.f32 %v161, %v3238
  %v3273 = vadd.f32 %v166, %v3242
  %v3274 = vadd.f32 %v171, %v3246
  %v3275 = vadd.f32 %v176, %v3250
  %v3276 = vadd.f32 %v181, %v3254
  %v3277 = vadd.f32 %v186, %v3258
  %v3278 = vadd.f32 %v191, %v3262
  %v3279 = vtanh.pop %v3271
  %v3280 = vtanh.pop %v3272
  %v3281 = vtanh.pop %v3273
  %v3282 = vtanh.pop %v3274
  %v3283 = vtanh.pop %v3275
  %v3284 = vtanh.pop %v3276
  %v3285 = vtanh.pop %v3277
  %v3286 = vtanh.pop %v3278
  %v3287 = vmul.f32 %v3279, %v394
  %v3288 = vmul.f32 %v3280, %v394
  %v3289 = vmul.f32 %v3281, %v394
  %v3290 = vmul.f32 %v3282, %v394
  %v3291 = vmul.f32 %v3283, %v394
  %v3292 = vmul.f32 %v3284, %v394
  %v3293 = vmul.f32 %v3285, %v394
  %v3294 = vmul.f32 %v3286, %v394
  %v3295 = vsel %vm64, %v3287, 0.0
  %3296 = vadd.xlane.f32.xlu0 %v3295
  %v3297 = vpop.xlane.xlu0 %3296
  %v3298 = vsel %vm64, %v3288, 0.0
  %3299 = vadd.xlane.f32.xlu0 %v3298
  %v3300 = vpop.xlane.xlu0 %3299
  %v3301 = vsel %vm64, %v3289, 0.0
  %3302 = vadd.xlane.f32.xlu0 %v3301
  %v3303 = vpop.xlane.xlu0 %3302
  %v3304 = vsel %vm64, %v3290, 0.0
  %3305 = vadd.xlane.f32.xlu0 %v3304
  %v3306 = vpop.xlane.xlu0 %3305
  %v3307 = vsel %vm64, %v3291, 0.0
  %3308 = vadd.xlane.f32.xlu0 %v3307
  %v3309 = vpop.xlane.xlu0 %3308
  %v3310 = vsel %vm64, %v3292, 0.0
  %3311 = vadd.xlane.f32.xlu0 %v3310
  %v3312 = vpop.xlane.xlu0 %3311
  %v3313 = vsel %vm64, %v3293, 0.0
  %3314 = vadd.xlane.f32.xlu0 %v3313
  %v3315 = vpop.xlane.xlu0 %3314
  %v3316 = vsel %vm64, %v3294, 0.0
  %3317 = vadd.xlane.f32.xlu0 %v3316
  %v3318 = vpop.xlane.xlu0 %3317
  %v3319 = vrot.slane %v3297, 4
  %v3320 = vmax.f32 %v3297, %v3319
  %v3321 = vrot.slane %v3320, 2
  %v3322 = vmax.f32 %v3320, %v3321
  %v3323 = vrot.slane %v3322, 1
  %v3324 = vmax.f32 %v3322, %v3323
  %v3325 = vrot.slane %v3300, 4
  %v3326 = vmax.f32 %v3300, %v3325
  %v3327 = vrot.slane %v3326, 2
  %v3328 = vmax.f32 %v3326, %v3327
  %v3329 = vrot.slane %v3328, 1
  %v3330 = vmax.f32 %v3328, %v3329
  %v3331 = vrot.slane %v3303, 4
  %v3332 = vmax.f32 %v3303, %v3331
  %v3333 = vrot.slane %v3332, 2
  %v3334 = vmax.f32 %v3332, %v3333
  %v3335 = vrot.slane %v3334, 1
  %v3336 = vmax.f32 %v3334, %v3335
  %v3337 = vrot.slane %v3306, 4
  %v3338 = vmax.f32 %v3306, %v3337
  %v3339 = vrot.slane %v3338, 2
  %v3340 = vmax.f32 %v3338, %v3339
  %v3341 = vrot.slane %v3340, 1
  %v3342 = vmax.f32 %v3340, %v3341
  %v3343 = vrot.slane %v3309, 4
  %v3344 = vmax.f32 %v3309, %v3343
  %v3345 = vrot.slane %v3344, 2
  %v3346 = vmax.f32 %v3344, %v3345
  %v3347 = vrot.slane %v3346, 1
  %v3348 = vmax.f32 %v3346, %v3347
  %v3349 = vrot.slane %v3312, 4
  %v3350 = vmax.f32 %v3312, %v3349
  %v3351 = vrot.slane %v3350, 2
  %v3352 = vmax.f32 %v3350, %v3351
  %v3353 = vrot.slane %v3352, 1
  %v3354 = vmax.f32 %v3352, %v3353
  %v3355 = vrot.slane %v3315, 4
  %v3356 = vmax.f32 %v3315, %v3355
  %v3357 = vrot.slane %v3356, 2
  %v3358 = vmax.f32 %v3356, %v3357
  %v3359 = vrot.slane %v3358, 1
  %v3360 = vmax.f32 %v3358, %v3359
  %v3361 = vrot.slane %v3318, 4
  %v3362 = vmax.f32 %v3318, %v3361
  %v3363 = vrot.slane %v3362, 2
  %v3364 = vmax.f32 %v3362, %v3363
  %v3365 = vrot.slane %v3364, 1
  %v3366 = vmax.f32 %v3364, %v3365
  %v3367 = vsub.f32 %v3297, %v3324
  %v3368 = vsub.f32 %v3300, %v3330
  %v3369 = vsub.f32 %v3303, %v3336
  %v3370 = vsub.f32 %v3306, %v3342
  %v3371 = vsub.f32 %v3309, %v3348
  %v3372 = vsub.f32 %v3312, %v3354
  %v3373 = vsub.f32 %v3315, %v3360
  %v3374 = vsub.f32 %v3318, %v3366
  %v3375 = vmul.f32 %v3367, 1.442695
  %v3376 = vpow.pop %v3375
  %v3377 = vmul.f32 %v3368, 1.442695
  %v3378 = vpow.pop %v3377
  %v3379 = vmul.f32 %v3369, 1.442695
  %v3380 = vpow.pop %v3379
  %v3381 = vmul.f32 %v3370, 1.442695
  %v3382 = vpow.pop %v3381
  %v3383 = vmul.f32 %v3371, 1.442695
  %v3384 = vpow.pop %v3383
  %v3385 = vmul.f32 %v3372, 1.442695
  %v3386 = vpow.pop %v3385
  %v3387 = vmul.f32 %v3373, 1.442695
  %v3388 = vpow.pop %v3387
  %v3389 = vmul.f32 %v3374, 1.442695
  %v3390 = vpow.pop %v3389
  %v3391 = vrot.slane %v3376, 4
  %v3392 = vadd.f32 %v3376, %v3391
  %v3393 = vrot.slane %v3392, 2
  %v3394 = vadd.f32 %v3392, %v3393
  %v3395 = vrot.slane %v3394, 1
  %v3396 = vadd.f32 %v3394, %v3395
  %v3397 = vrot.slane %v3378, 4
  %v3398 = vadd.f32 %v3378, %v3397
  %v3399 = vrot.slane %v3398, 2
  %v3400 = vadd.f32 %v3398, %v3399
  %v3401 = vrot.slane %v3400, 1
  %v3402 = vadd.f32 %v3400, %v3401
  %v3403 = vrot.slane %v3380, 4
  %v3404 = vadd.f32 %v3380, %v3403
  %v3405 = vrot.slane %v3404, 2
  %v3406 = vadd.f32 %v3404, %v3405
  %v3407 = vrot.slane %v3406, 1
  %v3408 = vadd.f32 %v3406, %v3407
  %v3409 = vrot.slane %v3382, 4
  %v3410 = vadd.f32 %v3382, %v3409
  %v3411 = vrot.slane %v3410, 2
  %v3412 = vadd.f32 %v3410, %v3411
  %v3413 = vrot.slane %v3412, 1
  %v3414 = vadd.f32 %v3412, %v3413
  %v3415 = vrot.slane %v3384, 4
  %v3416 = vadd.f32 %v3384, %v3415
  %v3417 = vrot.slane %v3416, 2
  %v3418 = vadd.f32 %v3416, %v3417
  %v3419 = vrot.slane %v3418, 1
  %v3420 = vadd.f32 %v3418, %v3419
  %v3421 = vrot.slane %v3386, 4
  %v3422 = vadd.f32 %v3386, %v3421
  %v3423 = vrot.slane %v3422, 2
  %v3424 = vadd.f32 %v3422, %v3423
  %v3425 = vrot.slane %v3424, 1
  %v3426 = vadd.f32 %v3424, %v3425
  %v3427 = vrot.slane %v3388, 4
  %v3428 = vadd.f32 %v3388, %v3427
  %v3429 = vrot.slane %v3428, 2
  %v3430 = vadd.f32 %v3428, %v3429
  %v3431 = vrot.slane %v3430, 1
  %v3432 = vadd.f32 %v3430, %v3431
  %v3433 = vrot.slane %v3390, 4
  %v3434 = vadd.f32 %v3390, %v3433
  %v3435 = vrot.slane %v3434, 2
  %v3436 = vadd.f32 %v3434, %v3435
  %v3437 = vrot.slane %v3436, 1
  %v3438 = vadd.f32 %v3436, %v3437
  %v3439 = vrcp.pop %v3396
  %v3440 = vrcp.pop %v3402
  %v3441 = vrcp.pop %v3408
  %v3442 = vrcp.pop %v3414
  %v3443 = vrcp.pop %v3420
  %v3444 = vrcp.pop %v3426
  %v3445 = vrcp.pop %v3432
  %v3446 = vrcp.pop %v3438
  %v3447 = vmul.f32 %v3396, %v3439
  %v3448 = vmul.f32 %v3402, %v3440
  %v3449 = vmul.f32 %v3408, %v3441
  %v3450 = vmul.f32 %v3414, %v3442
  %v3451 = vmul.f32 %v3420, %v3443
  %v3452 = vmul.f32 %v3426, %v3444
  %v3453 = vmul.f32 %v3432, %v3445
  %v3454 = vmul.f32 %v3438, %v3446
  %v3455 = vsub.f32 2.0, %v3447
  %v3456 = vsub.f32 2.0, %v3448
  %v3457 = vsub.f32 2.0, %v3449
  %v3458 = vsub.f32 2.0, %v3450
  %v3459 = vsub.f32 2.0, %v3451
  %v3460 = vsub.f32 2.0, %v3452
  %v3461 = vsub.f32 2.0, %v3453
  %v3462 = vsub.f32 2.0, %v3454
  %v3463 = vmul.f32 %v3439, %v3455
  %v3464 = vmul.f32 %v3440, %v3456
  %v3465 = vmul.f32 %v3441, %v3457
  %v3466 = vmul.f32 %v3442, %v3458
  %v3467 = vmul.f32 %v3443, %v3459
  %v3468 = vmul.f32 %v3444, %v3460
  %v3469 = vmul.f32 %v3445, %v3461
  %v3470 = vmul.f32 %v3446, %v3462
  %v3471 = vmul.f32 %v3376, %v3463
  %v3472 = vmul.f32 %v3378, %v3464
  %v3473 = vmul.f32 %v3380, %v3465
  %v3474 = vmul.f32 %v3382, %v3466
  %v3475 = vmul.f32 %v3384, %v3467
  %v3476 = vmul.f32 %v3386, %v3468
  %v3477 = vmul.f32 %v3388, %v3469
  %v3478 = vmul.f32 %v3390, %v3470
  %v3479 = vmul.f32 %v3471, %v20
  %v3480 = vmul.f32 %v3472, %v21
  %v3481 = vmul.f32 %v3473, %v22
  %v3482 = vmul.f32 %v3474, %v23
  %v3483 = vmul.f32 %v3475, %v24
  %v3484 = vmul.f32 %v3476, %v25
  %v3485 = vmul.f32 %v3477, %v26
  %v3486 = vmul.f32 %v3478, %v27
  %v3487 = vsel %vm64, %v3479, 0.0
  %v3488 = vrot.slane %v3487, 4
  %v3489 = vadd.f32 %v3487, %v3488
  %v3490 = vrot.slane %v3489, 2
  %v3491 = vadd.f32 %v3489, %v3490
  %v3492 = vrot.slane %v3491, 1
  %v3493 = vadd.f32 %v3491, %v3492
  %v3494 = vsel %vm64, %v3480, 0.0
  %v3495 = vrot.slane %v3494, 4
  %v3496 = vadd.f32 %v3494, %v3495
  %v3497 = vrot.slane %v3496, 2
  %v3498 = vadd.f32 %v3496, %v3497
  %v3499 = vrot.slane %v3498, 1
  %v3500 = vadd.f32 %v3498, %v3499
  %v3501 = vsel %vm64, %v3481, 0.0
  %v3502 = vrot.slane %v3501, 4
  %v3503 = vadd.f32 %v3501, %v3502
  %v3504 = vrot.slane %v3503, 2
  %v3505 = vadd.f32 %v3503, %v3504
  %v3506 = vrot.slane %v3505, 1
  %v3507 = vadd.f32 %v3505, %v3506
  %v3508 = vsel %vm64, %v3482, 0.0
  %v3509 = vrot.slane %v3508, 4
  %v3510 = vadd.f32 %v3508, %v3509
  %v3511 = vrot.slane %v3510, 2
  %v3512 = vadd.f32 %v3510, %v3511
  %v3513 = vrot.slane %v3512, 1
  %v3514 = vadd.f32 %v3512, %v3513
  %v3515 = vsel %vm64, %v3483, 0.0
  %v3516 = vrot.slane %v3515, 4
  %v3517 = vadd.f32 %v3515, %v3516
  %v3518 = vrot.slane %v3517, 2
  %v3519 = vadd.f32 %v3517, %v3518
  %v3520 = vrot.slane %v3519, 1
  %v3521 = vadd.f32 %v3519, %v3520
  %v3522 = vsel %vm64, %v3484, 0.0
  %v3523 = vrot.slane %v3522, 4
  %v3524 = vadd.f32 %v3522, %v3523
  %v3525 = vrot.slane %v3524, 2
  %v3526 = vadd.f32 %v3524, %v3525
  %v3527 = vrot.slane %v3526, 1
  %v3528 = vadd.f32 %v3526, %v3527
  %v3529 = vsel %vm64, %v3485, 0.0
  %v3530 = vrot.slane %v3529, 4
  %v3531 = vadd.f32 %v3529, %v3530
  %v3532 = vrot.slane %v3531, 2
  %v3533 = vadd.f32 %v3531, %v3532
  %v3534 = vrot.slane %v3533, 1
  %v3535 = vadd.f32 %v3533, %v3534
  %v3536 = vsel %vm64, %v3486, 0.0
  %v3537 = vrot.slane %v3536, 4
  %v3538 = vadd.f32 %v3536, %v3537
  %v3539 = vrot.slane %v3538, 2
  %v3540 = vadd.f32 %v3538, %v3539
  %v3541 = vrot.slane %v3540, 1
  %v3542 = vadd.f32 %v3540, %v3541
  %v3551 = vsel %vm659, %v3500, %v3493
  %v3552 = vsel %vm661, %v3507, %v3551
  %v3553 = vsel %vm663, %v3514, %v3552
  %v3554 = vsel %vm665, %v3521, %v3553
  %v3555 = vsel %vm667, %v3528, %v3554
  %v3556 = vsel %vm669, %v3535, %v3555
  %v3557 = vsel %vm671, %v3542, %v3556
  %3559 = vrot.lane.b32.xlu0 %v3102, 64
  %v3560 = vpop.permute.xlu0 %3559
  %v3562 = vrot.slane %v203, 5
  %v3563 = vrot.slane %v204, 4
  %v3564 = vsel %vm659, %v3563, %v3562
  %v3565 = vrot.slane %v205, 3
  %v3566 = vsel %vm661, %v3565, %v3564
  %v3567 = vrot.slane %v206, 2
  %v3568 = vsel %vm663, %v3567, %v3566
  %v3569 = vrot.slane %v207, 1
  %v3570 = vsel %vm665, %v3569, %v3568
  %v3571 = vsel %vm667, %v208, %v3570
  %v3572 = vrot.slane %v209, 7
  %v3573 = vsel %vm669, %v3572, %v3571
  %v3574 = vrot.slane %v210, 6
  %v3575 = vsel %vm671, %v3574, %v3573
  %3576 = vrot.lane.b32.xlu0 %v3575, 64
  %v3577 = vpop.permute.xlu0 %3576
  %v3579 = vsel %vm64, %v3557, %v3560
  %v3580 = vsel %vm211, %v3579, %v3577
  %v3582 = vsel %vm701, %v3580, 0
  %3584 = vmatprep.subr.mxu0 0.0
  %3585 = vmatpush1.msra.mxu0 %v42
  %3586 = vmatprep.subr.mxu0 0.0
  %3587 = vmatpush1.msra.mxu0 %v43
  %3588 = vmatprep.subr.mxu0 0.0
  %3589 = vmatpush1.msra.mxu0 %v44
  %3590 = vmatprep.subr.mxu0 0.0
  %3591 = vmatpush1.msra.mxu0 %v45
  %3592 = vmatprep.subr.mxu0 0.0
  %3593 = vmatpush1.msra.mxu0 %v46
  %3594 = vmatprep.subr.mxu0 0.0
  %3595 = vmatpush1.msra.mxu0 %v47
  %3596 = vmatprep.subr.mxu0 0.0
  %3597 = vmatpush1.msra.mxu0 %v48
  %3598 = vmatprep.subr.mxu0 0.0
  %3599 = vmatpush1.msra.mxu0 %v49
  %3600 = vmatprep.subr.mxu0 0.0
  %3601 = vmatpush1.msra.mxu0 %v707
  %3602 = vmatprep.subr.mxu0 0.0
  %3603 = vmatpush1.msra.mxu0 0.0
  %3604 = vmatprep.subr.mxu0 0.0
  %3605 = vmatpush1.msra.mxu0 0.0
  %3606 = vmatprep.subr.mxu0 0.0
  %3607 = vmatpush1.msra.mxu0 0.0
  %3608 = vmatprep.subr.mxu0 0.0
  %3609 = vmatpush1.msra.mxu0 0.0
  %3610 = vmatprep.subr.mxu0 0.0
  %3611 = vmatpush1.msra.mxu0 0.0
  %3612 = vmatprep.subr.mxu0 0.0
  %3613 = vmatpush1.msra.mxu0 0.0
  %3614 = vmatprep.subr.mxu0 0.0
  %3615 = vmatpush1.msra.mxu0 0.0
  %3616 = vmatprep.subr.mxu0 0.0
  %3617 = vmatpush1.msra.mxu0 0.0
  %3618 = vmatprep.subr.mxu0 0.0
  %3619 = vmatpush1.msra.mxu0 0.0
  %3620 = vmatprep.subr.mxu0 0.0
  %3621 = vmatpush1.msra.mxu0 0.0
  %3622 = vmatprep.subr.mxu0 0.0
  %3623 = vmatpush1.msra.mxu0 0.0
  %3624 = vmatprep.subr.mxu0 0.0
  %3625 = vmatpush1.msra.mxu0 0.0
  %3626 = vmatprep.subr.mxu0 0.0
  %3627 = vmatpush1.msra.mxu0 0.0
  %3628 = vmatprep.subr.mxu0 0.0
  %3629 = vmatpush1.msra.mxu0 0.0
  %3630 = vmatprep.subr.mxu0 0.0
  %3631 = vmatpush1.msra.mxu0 0.0
  %3632 = vmatprep.subr.mxu0 0.0
  %3633 = vmatpush1.msra.mxu0 0.0
  %3634 = vmatprep.subr.mxu0 0.0
  %3635 = vmatpush1.msra.mxu0 0.0
  %3636 = vmatprep.subr.mxu0 0.0
  %3637 = vmatpush1.msra.mxu0 0.0
  %3638 = vmatprep.subr.mxu0 0.0
  %3639 = vmatpush1.msra.mxu0 0.0
  %3640 = vmatprep.subr.mxu0 0.0
  %3641 = vmatpush1.msra.mxu0 0.0
  %3642 = vmatprep.subr.mxu0 0.0
  %3643 = vmatpush1.msra.mxu0 0.0
  %3644 = vmatprep.subr.mxu0 0.0
  %3645 = vmatpush1.msra.mxu0 0.0
  %3646 = vmatprep.subr.mxu0 0.0
  %3647 = vmatpush1.msra.mxu0 0.0
  %3648 = vmatprep.mubr.f32.mxu0 0.0
  %3649 = vmatmul.mubr.f32.gmra.mrb[0].mxu0 %v3582
  %v3650 = vpop.f32.mrb[0].mxu0
  %v3651 = vadd.f32 0.0, %v3650
  %v3652 = vpop.f32.mrb[0].mxu0
  %3653 = vdwg.mxu0
  %v3654 = vxor.u32 %v3651, 2147483648
  %v3655 = vmul.f32 %v3654, 1.442695
  %v3656 = vpow.pop %v3655
  %v3657 = vadd.f32 %v3656, 1.0
  %v3658 = vrcp.pop %v3657
  %v3659 = vmul.f32 1.0, %v3658
  %v3660 = vtanh.pop %v3651
  %v3661 = vmul.f32 %v3659, %v3096
  %3663 = vrot.lane.b32.xlu0 %v3660, 64
  %v3664 = vpop.permute.xlu0 %3663
  %v3666 = vmul.f32 %v3659, %v3664
  %3668 = vrot.lane.b32.xlu0 %v3666, 32
  %v3669 = vpop.permute.xlu0 %3668
  %v3671 = vadd.f32 %v3661, %v3669
  %v3672 = vtanh.pop %v3671
  %3674 = vrot.lane.b32.xlu0 %v3672, 64
  %v3675 = vpop.permute.xlu0 %3674
  %v3677 = vmul.f32 %v3659, %v3675
  %3679 = vrot.lane.b32.xlu0 %v3677, 32
  %v3680 = vpop.permute.xlu0 %3679
  %v3682 = vsel %vm64, %v3680, %v3671
  %v3684 = vsel %vm211, %v3682, 0
  %3686 = vmatprep.subr.mxu0 0.0
  %3687 = vmatpush1.msra.mxu0 %v28
  %3688 = vmatprep.subr.mxu0 0.0
  %3689 = vmatpush1.msra.mxu0 %v29
  %3690 = vmatprep.subr.mxu0 0.0
  %3691 = vmatpush1.msra.mxu0 %v30
  %3692 = vmatprep.subr.mxu0 0.0
  %3693 = vmatpush1.msra.mxu0 %v31
  %3694 = vmatprep.subr.mxu0 0.0
  %3695 = vmatpush1.msra.mxu0 %v32
  %3696 = vmatprep.subr.mxu0 0.0
  %3697 = vmatpush1.msra.mxu0 %v33
  %3698 = vmatprep.subr.mxu0 0.0
  %3699 = vmatpush1.msra.mxu0 %v34
  %3700 = vmatprep.subr.mxu0 0.0
  %3701 = vmatpush1.msra.mxu0 %v35
  %3702 = vmatprep.subr.mxu0 0.0
  %3703 = vmatpush1.msra.mxu0 0.0
  %3704 = vmatprep.subr.mxu0 0.0
  %3705 = vmatpush1.msra.mxu0 0.0
  %3706 = vmatprep.subr.mxu0 0.0
  %3707 = vmatpush1.msra.mxu0 0.0
  %3708 = vmatprep.subr.mxu0 0.0
  %3709 = vmatpush1.msra.mxu0 0.0
  %3710 = vmatprep.subr.mxu0 0.0
  %3711 = vmatpush1.msra.mxu0 0.0
  %3712 = vmatprep.subr.mxu0 0.0
  %3713 = vmatpush1.msra.mxu0 0.0
  %3714 = vmatprep.subr.mxu0 0.0
  %3715 = vmatpush1.msra.mxu0 0.0
  %3716 = vmatprep.subr.mxu0 0.0
  %3717 = vmatpush1.msra.mxu0 0.0
  %3718 = vmatprep.subr.mxu0 0.0
  %3719 = vmatpush1.msra.mxu0 0.0
  %3720 = vmatprep.subr.mxu0 0.0
  %3721 = vmatpush1.msra.mxu0 0.0
  %3722 = vmatprep.subr.mxu0 0.0
  %3723 = vmatpush1.msra.mxu0 0.0
  %3724 = vmatprep.subr.mxu0 0.0
  %3725 = vmatpush1.msra.mxu0 0.0
  %3726 = vmatprep.subr.mxu0 0.0
  %3727 = vmatpush1.msra.mxu0 0.0
  %3728 = vmatprep.subr.mxu0 0.0
  %3729 = vmatpush1.msra.mxu0 0.0
  %3730 = vmatprep.subr.mxu0 0.0
  %3731 = vmatpush1.msra.mxu0 0.0
  %3732 = vmatprep.subr.mxu0 0.0
  %3733 = vmatpush1.msra.mxu0 0.0
  %3734 = vmatprep.subr.mxu0 0.0
  %3735 = vmatpush1.msra.mxu0 0.0
  %3736 = vmatprep.subr.mxu0 0.0
  %3737 = vmatpush1.msra.mxu0 0.0
  %3738 = vmatprep.subr.mxu0 0.0
  %3739 = vmatpush1.msra.mxu0 0.0
  %3740 = vmatprep.subr.mxu0 0.0
  %3741 = vmatpush1.msra.mxu0 0.0
  %3742 = vmatprep.subr.mxu0 0.0
  %3743 = vmatpush1.msra.mxu0 0.0
  %3744 = vmatprep.subr.mxu0 0.0
  %3745 = vmatpush1.msra.mxu0 0.0
  %3746 = vmatprep.subr.mxu0 0.0
  %3747 = vmatpush1.msra.mxu0 0.0
  %3748 = vmatprep.subr.mxu0 0.0
  %3749 = vmatpush1.msra.mxu0 0.0
  %3750 = vmatprep.mubr.f32.mxu0 0.0
  %3751 = vmatmul.mubr.f32.gmra.mrb[0].mxu0 %v3684
  %v3752 = vpop.f32.mrb[0].mxu0
  %v3753 = vadd.f32 0.0, %v3752
  %v3754 = vpop.f32.mrb[0].mxu0
  %3755 = vdwg.mxu0
  %v3757 = vcombine.high %v3753, %v3753
  %v3759 = vunpack.c.l.s4 1966171168
  %v3760 = vunpack.c.0.s8 %v3759
  %v3761 = vlaneseq
  %v3762 = vshrl.u32 %v3761, 7
  %v3763 = vsub.s32 %v3760, %v3762
  %v3764 = vrot.slane %v3753, %v3763
  %v3766 = vunpack.c.l.s4 1966171168
  %v3767 = vunpack.c.0.s8 %v3766
  %v3768 = vlaneseq
  %v3769 = vshrl.u32 %v3768, 7
  %v3770 = vsub.s32 %v3767, %v3769
  %v3771 = vrot.slane %v3757, %v3770
  %v3772 = vcombine.high %v3764, %v3764
  %v3773 = vcombine.high %v3771, %v3771
  %v3775 = vunpack.c.l.s4 1966171168
  %v3776 = vunpack.c.0.s8 %v3775
  %v3777 = vlaneseq
  %v3778 = vshrl.u32 %v3777, 7
  %v3779 = vsub.s32 %v3776, %v3778
  %v3780 = vrot.slane %v3764, %v3779
  %v3782 = vunpack.c.l.s4 1966171168
  %v3783 = vunpack.c.0.s8 %v3782
  %v3784 = vlaneseq
  %v3785 = vshrl.u32 %v3784, 7
  %v3786 = vsub.s32 %v3783, %v3785
  %v3787 = vrot.slane %v3771, %v3786
  %v3789 = vunpack.c.l.s4 1966171168
  %v3790 = vunpack.c.0.s8 %v3789
  %v3791 = vlaneseq
  %v3792 = vshrl.u32 %v3791, 7
  %v3793 = vsub.s32 %v3790, %v3792
  %v3794 = vrot.slane %v3772, %v3793
  %v3796 = vunpack.c.l.s4 1966171168
  %v3797 = vunpack.c.0.s8 %v3796
  %v3798 = vlaneseq
  %v3799 = vshrl.u32 %v3798, 7
  %v3800 = vsub.s32 %v3797, %v3799
  %v3801 = vrot.slane %v3773, %v3800
  %v3802 = vcombine.high %v3780, %v3780
  %v3803 = vcombine.high %v3787, %v3787
  %v3804 = vcombine.high %v3794, %v3794
  %v3805 = vcombine.high %v3801, %v3801
  %v3806 = vlaneseq
  %v3807 = vshrl.u32 %v3806, 7
  %v3808 = vsub.s32 0, %v3807
  %v3809 = vrot.slane %v3780, %v3808
  %v3810 = vlaneseq
  %v3811 = vshrl.u32 %v3810, 7
  %v3812 = vsub.s32 0, %v3811
  %v3813 = vrot.slane %v3794, %v3812
  %v3814 = vlaneseq
  %v3815 = vshrl.u32 %v3814, 7
  %v3816 = vsub.s32 0, %v3815
  %v3817 = vrot.slane %v3802, %v3816
  %v3818 = vlaneseq
  %v3819 = vshrl.u32 %v3818, 7
  %v3820 = vsub.s32 0, %v3819
  %v3821 = vrot.slane %v3804, %v3820
  %v3822 = vlaneseq
  %v3823 = vshrl.u32 %v3822, 7
  %v3824 = vsub.s32 0, %v3823
  %v3825 = vrot.slane %v3787, %v3824
  %v3826 = vlaneseq
  %v3827 = vshrl.u32 %v3826, 7
  %v3828 = vsub.s32 0, %v3827
  %v3829 = vrot.slane %v3801, %v3828
  %v3830 = vlaneseq
  %v3831 = vshrl.u32 %v3830, 7
  %v3832 = vsub.s32 0, %v3831
  %v3833 = vrot.slane %v3803, %v3832
  %v3834 = vlaneseq
  %v3835 = vshrl.u32 %v3834, 7
  %v3836 = vsub.s32 0, %v3835
  %v3837 = vrot.slane %v3805, %v3836
  %v3846 = vadd.f32 %v156, %v3809
  %v3847 = vadd.f32 %v161, %v3813
  %v3848 = vadd.f32 %v166, %v3817
  %v3849 = vadd.f32 %v171, %v3821
  %v3850 = vadd.f32 %v176, %v3825
  %v3851 = vadd.f32 %v181, %v3829
  %v3852 = vadd.f32 %v186, %v3833
  %v3853 = vadd.f32 %v191, %v3837
  %v3854 = vtanh.pop %v3846
  %v3855 = vtanh.pop %v3847
  %v3856 = vtanh.pop %v3848
  %v3857 = vtanh.pop %v3849
  %v3858 = vtanh.pop %v3850
  %v3859 = vtanh.pop %v3851
  %v3860 = vtanh.pop %v3852
  %v3861 = vtanh.pop %v3853
  %v3862 = vmul.f32 %v3854, %v394
  %v3863 = vmul.f32 %v3855, %v394
  %v3864 = vmul.f32 %v3856, %v394
  %v3865 = vmul.f32 %v3857, %v394
  %v3866 = vmul.f32 %v3858, %v394
  %v3867 = vmul.f32 %v3859, %v394
  %v3868 = vmul.f32 %v3860, %v394
  %v3869 = vmul.f32 %v3861, %v394
  %v3870 = vsel %vm64, %v3862, 0.0
  %3871 = vadd.xlane.f32.xlu0 %v3870
  %v3872 = vpop.xlane.xlu0 %3871
  %v3873 = vsel %vm64, %v3863, 0.0
  %3874 = vadd.xlane.f32.xlu0 %v3873
  %v3875 = vpop.xlane.xlu0 %3874
  %v3876 = vsel %vm64, %v3864, 0.0
  %3877 = vadd.xlane.f32.xlu0 %v3876
  %v3878 = vpop.xlane.xlu0 %3877
  %v3879 = vsel %vm64, %v3865, 0.0
  %3880 = vadd.xlane.f32.xlu0 %v3879
  %v3881 = vpop.xlane.xlu0 %3880
  %v3882 = vsel %vm64, %v3866, 0.0
  %3883 = vadd.xlane.f32.xlu0 %v3882
  %v3884 = vpop.xlane.xlu0 %3883
  %v3885 = vsel %vm64, %v3867, 0.0
  %3886 = vadd.xlane.f32.xlu0 %v3885
  %v3887 = vpop.xlane.xlu0 %3886
  %v3888 = vsel %vm64, %v3868, 0.0
  %3889 = vadd.xlane.f32.xlu0 %v3888
  %v3890 = vpop.xlane.xlu0 %3889
  %v3891 = vsel %vm64, %v3869, 0.0
  %3892 = vadd.xlane.f32.xlu0 %v3891
  %v3893 = vpop.xlane.xlu0 %3892
  %v3894 = vrot.slane %v3872, 4
  %v3895 = vmax.f32 %v3872, %v3894
  %v3896 = vrot.slane %v3895, 2
  %v3897 = vmax.f32 %v3895, %v3896
  %v3898 = vrot.slane %v3897, 1
  %v3899 = vmax.f32 %v3897, %v3898
  %v3900 = vrot.slane %v3875, 4
  %v3901 = vmax.f32 %v3875, %v3900
  %v3902 = vrot.slane %v3901, 2
  %v3903 = vmax.f32 %v3901, %v3902
  %v3904 = vrot.slane %v3903, 1
  %v3905 = vmax.f32 %v3903, %v3904
  %v3906 = vrot.slane %v3878, 4
  %v3907 = vmax.f32 %v3878, %v3906
  %v3908 = vrot.slane %v3907, 2
  %v3909 = vmax.f32 %v3907, %v3908
  %v3910 = vrot.slane %v3909, 1
  %v3911 = vmax.f32 %v3909, %v3910
  %v3912 = vrot.slane %v3881, 4
  %v3913 = vmax.f32 %v3881, %v3912
  %v3914 = vrot.slane %v3913, 2
  %v3915 = vmax.f32 %v3913, %v3914
  %v3916 = vrot.slane %v3915, 1
  %v3917 = vmax.f32 %v3915, %v3916
  %v3918 = vrot.slane %v3884, 4
  %v3919 = vmax.f32 %v3884, %v3918
  %v3920 = vrot.slane %v3919, 2
  %v3921 = vmax.f32 %v3919, %v3920
  %v3922 = vrot.slane %v3921, 1
  %v3923 = vmax.f32 %v3921, %v3922
  %v3924 = vrot.slane %v3887, 4
  %v3925 = vmax.f32 %v3887, %v3924
  %v3926 = vrot.slane %v3925, 2
  %v3927 = vmax.f32 %v3925, %v3926
  %v3928 = vrot.slane %v3927, 1
  %v3929 = vmax.f32 %v3927, %v3928
  %v3930 = vrot.slane %v3890, 4
  %v3931 = vmax.f32 %v3890, %v3930
  %v3932 = vrot.slane %v3931, 2
  %v3933 = vmax.f32 %v3931, %v3932
  %v3934 = vrot.slane %v3933, 1
  %v3935 = vmax.f32 %v3933, %v3934
  %v3936 = vrot.slane %v3893, 4
  %v3937 = vmax.f32 %v3893, %v3936
  %v3938 = vrot.slane %v3937, 2
  %v3939 = vmax.f32 %v3937, %v3938
  %v3940 = vrot.slane %v3939, 1
  %v3941 = vmax.f32 %v3939, %v3940
  %v3942 = vsub.f32 %v3872, %v3899
  %v3943 = vsub.f32 %v3875, %v3905
  %v3944 = vsub.f32 %v3878, %v3911
  %v3945 = vsub.f32 %v3881, %v3917
  %v3946 = vsub.f32 %v3884, %v3923
  %v3947 = vsub.f32 %v3887, %v3929
  %v3948 = vsub.f32 %v3890, %v3935
  %v3949 = vsub.f32 %v3893, %v3941
  %v3950 = vmul.f32 %v3942, 1.442695
  %v3951 = vpow.pop %v3950
  %v3952 = vmul.f32 %v3943, 1.442695
  %v3953 = vpow.pop %v3952
  %v3954 = vmul.f32 %v3944, 1.442695
  %v3955 = vpow.pop %v3954
  %v3956 = vmul.f32 %v3945, 1.442695
  %v3957 = vpow.pop %v3956
  %v3958 = vmul.f32 %v3946, 1.442695
  %v3959 = vpow.pop %v3958
  %v3960 = vmul.f32 %v3947, 1.442695
  %v3961 = vpow.pop %v3960
  %v3962 = vmul.f32 %v3948, 1.442695
  %v3963 = vpow.pop %v3962
  %v3964 = vmul.f32 %v3949, 1.442695
  %v3965 = vpow.pop %v3964
  %v3966 = vrot.slane %v3951, 4
  %v3967 = vadd.f32 %v3951, %v3966
  %v3968 = vrot.slane %v3967, 2
  %v3969 = vadd.f32 %v3967, %v3968
  %v3970 = vrot.slane %v3969, 1
  %v3971 = vadd.f32 %v3969, %v3970
  %v3972 = vrot.slane %v3953, 4
  %v3973 = vadd.f32 %v3953, %v3972
  %v3974 = vrot.slane %v3973, 2
  %v3975 = vadd.f32 %v3973, %v3974
  %v3976 = vrot.slane %v3975, 1
  %v3977 = vadd.f32 %v3975, %v3976
  %v3978 = vrot.slane %v3955, 4
  %v3979 = vadd.f32 %v3955, %v3978
  %v3980 = vrot.slane %v3979, 2
  %v3981 = vadd.f32 %v3979, %v3980
  %v3982 = vrot.slane %v3981, 1
  %v3983 = vadd.f32 %v3981, %v3982
  %v3984 = vrot.slane %v3957, 4
  %v3985 = vadd.f32 %v3957, %v3984
  %v3986 = vrot.slane %v3985, 2
  %v3987 = vadd.f32 %v3985, %v3986
  %v3988 = vrot.slane %v3987, 1
  %v3989 = vadd.f32 %v3987, %v3988
  %v3990 = vrot.slane %v3959, 4
  %v3991 = vadd.f32 %v3959, %v3990
  %v3992 = vrot.slane %v3991, 2
  %v3993 = vadd.f32 %v3991, %v3992
  %v3994 = vrot.slane %v3993, 1
  %v3995 = vadd.f32 %v3993, %v3994
  %v3996 = vrot.slane %v3961, 4
  %v3997 = vadd.f32 %v3961, %v3996
  %v3998 = vrot.slane %v3997, 2
  %v3999 = vadd.f32 %v3997, %v3998
  %v4000 = vrot.slane %v3999, 1
  %v4001 = vadd.f32 %v3999, %v4000
  %v4002 = vrot.slane %v3963, 4
  %v4003 = vadd.f32 %v3963, %v4002
  %v4004 = vrot.slane %v4003, 2
  %v4005 = vadd.f32 %v4003, %v4004
  %v4006 = vrot.slane %v4005, 1
  %v4007 = vadd.f32 %v4005, %v4006
  %v4008 = vrot.slane %v3965, 4
  %v4009 = vadd.f32 %v3965, %v4008
  %v4010 = vrot.slane %v4009, 2
  %v4011 = vadd.f32 %v4009, %v4010
  %v4012 = vrot.slane %v4011, 1
  %v4013 = vadd.f32 %v4011, %v4012
  %v4014 = vrcp.pop %v3971
  %v4015 = vrcp.pop %v3977
  %v4016 = vrcp.pop %v3983
  %v4017 = vrcp.pop %v3989
  %v4018 = vrcp.pop %v3995
  %v4019 = vrcp.pop %v4001
  %v4020 = vrcp.pop %v4007
  %v4021 = vrcp.pop %v4013
  %v4022 = vmul.f32 %v3971, %v4014
  %v4023 = vmul.f32 %v3977, %v4015
  %v4024 = vmul.f32 %v3983, %v4016
  %v4025 = vmul.f32 %v3989, %v4017
  %v4026 = vmul.f32 %v3995, %v4018
  %v4027 = vmul.f32 %v4001, %v4019
  %v4028 = vmul.f32 %v4007, %v4020
  %v4029 = vmul.f32 %v4013, %v4021
  %v4030 = vsub.f32 2.0, %v4022
  %v4031 = vsub.f32 2.0, %v4023
  %v4032 = vsub.f32 2.0, %v4024
  %v4033 = vsub.f32 2.0, %v4025
  %v4034 = vsub.f32 2.0, %v4026
  %v4035 = vsub.f32 2.0, %v4027
  %v4036 = vsub.f32 2.0, %v4028
  %v4037 = vsub.f32 2.0, %v4029
  %v4038 = vmul.f32 %v4014, %v4030
  %v4039 = vmul.f32 %v4015, %v4031
  %v4040 = vmul.f32 %v4016, %v4032
  %v4041 = vmul.f32 %v4017, %v4033
  %v4042 = vmul.f32 %v4018, %v4034
  %v4043 = vmul.f32 %v4019, %v4035
  %v4044 = vmul.f32 %v4020, %v4036
  %v4045 = vmul.f32 %v4021, %v4037
  %v4046 = vmul.f32 %v3951, %v4038
  %v4047 = vmul.f32 %v3953, %v4039
  %v4048 = vmul.f32 %v3955, %v4040
  %v4049 = vmul.f32 %v3957, %v4041
  %v4050 = vmul.f32 %v3959, %v4042
  %v4051 = vmul.f32 %v3961, %v4043
  %v4052 = vmul.f32 %v3963, %v4044
  %v4053 = vmul.f32 %v3965, %v4045
  %v4054 = vmul.f32 %v4046, %v20
  %v4055 = vmul.f32 %v4047, %v21
  %v4056 = vmul.f32 %v4048, %v22
  %v4057 = vmul.f32 %v4049, %v23
  %v4058 = vmul.f32 %v4050, %v24
  %v4059 = vmul.f32 %v4051, %v25
  %v4060 = vmul.f32 %v4052, %v26
  %v4061 = vmul.f32 %v4053, %v27
  %v4062 = vsel %vm64, %v4054, 0.0
  %v4063 = vrot.slane %v4062, 4
  %v4064 = vadd.f32 %v4062, %v4063
  %v4065 = vrot.slane %v4064, 2
  %v4066 = vadd.f32 %v4064, %v4065
  %v4067 = vrot.slane %v4066, 1
  %v4068 = vadd.f32 %v4066, %v4067
  %v4069 = vsel %vm64, %v4055, 0.0
  %v4070 = vrot.slane %v4069, 4
  %v4071 = vadd.f32 %v4069, %v4070
  %v4072 = vrot.slane %v4071, 2
  %v4073 = vadd.f32 %v4071, %v4072
  %v4074 = vrot.slane %v4073, 1
  %v4075 = vadd.f32 %v4073, %v4074
  %v4076 = vsel %vm64, %v4056, 0.0
  %v4077 = vrot.slane %v4076, 4
  %v4078 = vadd.f32 %v4076, %v4077
  %v4079 = vrot.slane %v4078, 2
  %v4080 = vadd.f32 %v4078, %v4079
  %v4081 = vrot.slane %v4080, 1
  %v4082 = vadd.f32 %v4080, %v4081
  %v4083 = vsel %vm64, %v4057, 0.0
  %v4084 = vrot.slane %v4083, 4
  %v4085 = vadd.f32 %v4083, %v4084
  %v4086 = vrot.slane %v4085, 2
  %v4087 = vadd.f32 %v4085, %v4086
  %v4088 = vrot.slane %v4087, 1
  %v4089 = vadd.f32 %v4087, %v4088
  %v4090 = vsel %vm64, %v4058, 0.0
  %v4091 = vrot.slane %v4090, 4
  %v4092 = vadd.f32 %v4090, %v4091
  %v4093 = vrot.slane %v4092, 2
  %v4094 = vadd.f32 %v4092, %v4093
  %v4095 = vrot.slane %v4094, 1
  %v4096 = vadd.f32 %v4094, %v4095
  %v4097 = vsel %vm64, %v4059, 0.0
  %v4098 = vrot.slane %v4097, 4
  %v4099 = vadd.f32 %v4097, %v4098
  %v4100 = vrot.slane %v4099, 2
  %v4101 = vadd.f32 %v4099, %v4100
  %v4102 = vrot.slane %v4101, 1
  %v4103 = vadd.f32 %v4101, %v4102
  %v4104 = vsel %vm64, %v4060, 0.0
  %v4105 = vrot.slane %v4104, 4
  %v4106 = vadd.f32 %v4104, %v4105
  %v4107 = vrot.slane %v4106, 2
  %v4108 = vadd.f32 %v4106, %v4107
  %v4109 = vrot.slane %v4108, 1
  %v4110 = vadd.f32 %v4108, %v4109
  %v4111 = vsel %vm64, %v4061, 0.0
  %v4112 = vrot.slane %v4111, 4
  %v4113 = vadd.f32 %v4111, %v4112
  %v4114 = vrot.slane %v4113, 2
  %v4115 = vadd.f32 %v4113, %v4114
  %v4116 = vrot.slane %v4115, 1
  %v4117 = vadd.f32 %v4115, %v4116
  %v4126 = vsel %vm659, %v4075, %v4068
  %v4127 = vsel %vm661, %v4082, %v4126
  %v4128 = vsel %vm663, %v4089, %v4127
  %v4129 = vsel %vm665, %v4096, %v4128
  %v4130 = vsel %vm667, %v4103, %v4129
  %v4131 = vsel %vm669, %v4110, %v4130
  %v4132 = vsel %vm671, %v4117, %v4131
  %4134 = vrot.lane.b32.xlu0 %v3677, 64
  %v4135 = vpop.permute.xlu0 %4134
  %v4137 = vrot.slane %v203, 6
  %v4138 = vrot.slane %v204, 5
  %v4139 = vsel %vm659, %v4138, %v4137
  %v4140 = vrot.slane %v205, 4
  %v4141 = vsel %vm661, %v4140, %v4139
  %v4142 = vrot.slane %v206, 3
  %v4143 = vsel %vm663, %v4142, %v4141
  %v4144 = vrot.slane %v207, 2
  %v4145 = vsel %vm665, %v4144, %v4143
  %v4146 = vrot.slane %v208, 1
  %v4147 = vsel %vm667, %v4146, %v4145
  %v4148 = vsel %vm669, %v209, %v4147
  %v4149 = vrot.slane %v210, 7
  %v4150 = vsel %vm671, %v4149, %v4148
  %4151 = vrot.lane.b32.xlu0 %v4150, 64
  %v4152 = vpop.permute.xlu0 %4151
  %v4154 = vsel %vm64, %v4132, %v4135
  %v4155 = vsel %vm211, %v4154, %v4152
  %v4157 = vsel %vm701, %v4155, 0
  %4159 = vmatprep.subr.mxu0 0.0
  %4160 = vmatpush1.msra.mxu0 %v42
  %4161 = vmatprep.subr.mxu0 0.0
  %4162 = vmatpush1.msra.mxu0 %v43
  %4163 = vmatprep.subr.mxu0 0.0
  %4164 = vmatpush1.msra.mxu0 %v44
  %4165 = vmatprep.subr.mxu0 0.0
  %4166 = vmatpush1.msra.mxu0 %v45
  %4167 = vmatprep.subr.mxu0 0.0
  %4168 = vmatpush1.msra.mxu0 %v46
  %4169 = vmatprep.subr.mxu0 0.0
  %4170 = vmatpush1.msra.mxu0 %v47
  %4171 = vmatprep.subr.mxu0 0.0
  %4172 = vmatpush1.msra.mxu0 %v48
  %4173 = vmatprep.subr.mxu0 0.0
  %4174 = vmatpush1.msra.mxu0 %v49
  %4175 = vmatprep.subr.mxu0 0.0
  %4176 = vmatpush1.msra.mxu0 %v707
  %4177 = vmatprep.subr.mxu0 0.0
  %4178 = vmatpush1.msra.mxu0 0.0
  %4179 = vmatprep.subr.mxu0 0.0
  %4180 = vmatpush1.msra.mxu0 0.0
  %4181 = vmatprep.subr.mxu0 0.0
  %4182 = vmatpush1.msra.mxu0 0.0
  %4183 = vmatprep.subr.mxu0 0.0
  %4184 = vmatpush1.msra.mxu0 0.0
  %4185 = vmatprep.subr.mxu0 0.0
  %4186 = vmatpush1.msra.mxu0 0.0
  %4187 = vmatprep.subr.mxu0 0.0
  %4188 = vmatpush1.msra.mxu0 0.0
  %4189 = vmatprep.subr.mxu0 0.0
  %4190 = vmatpush1.msra.mxu0 0.0
  %4191 = vmatprep.subr.mxu0 0.0
  %4192 = vmatpush1.msra.mxu0 0.0
  %4193 = vmatprep.subr.mxu0 0.0
  %4194 = vmatpush1.msra.mxu0 0.0
  %4195 = vmatprep.subr.mxu0 0.0
  %4196 = vmatpush1.msra.mxu0 0.0
  %4197 = vmatprep.subr.mxu0 0.0
  %4198 = vmatpush1.msra.mxu0 0.0
  %4199 = vmatprep.subr.mxu0 0.0
  %4200 = vmatpush1.msra.mxu0 0.0
  %4201 = vmatprep.subr.mxu0 0.0
  %4202 = vmatpush1.msra.mxu0 0.0
  %4203 = vmatprep.subr.mxu0 0.0
  %4204 = vmatpush1.msra.mxu0 0.0
  %4205 = vmatprep.subr.mxu0 0.0
  %4206 = vmatpush1.msra.mxu0 0.0
  %4207 = vmatprep.subr.mxu0 0.0
  %4208 = vmatpush1.msra.mxu0 0.0
  %4209 = vmatprep.subr.mxu0 0.0
  %4210 = vmatpush1.msra.mxu0 0.0
  %4211 = vmatprep.subr.mxu0 0.0
  %4212 = vmatpush1.msra.mxu0 0.0
  %4213 = vmatprep.subr.mxu0 0.0
  %4214 = vmatpush1.msra.mxu0 0.0
  %4215 = vmatprep.subr.mxu0 0.0
  %4216 = vmatpush1.msra.mxu0 0.0
  %4217 = vmatprep.subr.mxu0 0.0
  %4218 = vmatpush1.msra.mxu0 0.0
  %4219 = vmatprep.subr.mxu0 0.0
  %4220 = vmatpush1.msra.mxu0 0.0
  %4221 = vmatprep.subr.mxu0 0.0
  %4222 = vmatpush1.msra.mxu0 0.0
  %4223 = vmatprep.mubr.f32.mxu0 0.0
  %4224 = vmatmul.mubr.f32.gmra.mrb[0].mxu0 %v4157
  %v4225 = vpop.f32.mrb[0].mxu0
  %v4226 = vadd.f32 0.0, %v4225
  %v4227 = vpop.f32.mrb[0].mxu0
  %4228 = vdwg.mxu0
  %v4229 = vxor.u32 %v4226, 2147483648
  %v4230 = vmul.f32 %v4229, 1.442695
  %v4231 = vpow.pop %v4230
  %v4232 = vadd.f32 %v4231, 1.0
  %v4233 = vrcp.pop %v4232
  %v4234 = vmul.f32 1.0, %v4233
  %v4235 = vtanh.pop %v4226
  %v4236 = vmul.f32 %v4234, %v3671
  %4238 = vrot.lane.b32.xlu0 %v4235, 64
  %v4239 = vpop.permute.xlu0 %4238
  %v4241 = vmul.f32 %v4234, %v4239
  %4243 = vrot.lane.b32.xlu0 %v4241, 32
  %v4244 = vpop.permute.xlu0 %4243
  %v4246 = vadd.f32 %v4236, %v4244
  %v4247 = vtanh.pop %v4246
  %4249 = vrot.lane.b32.xlu0 %v4247, 64
  %v4250 = vpop.permute.xlu0 %4249
  %v4252 = vmul.f32 %v4234, %v4250
  %4254 = vrot.lane.b32.xlu0 %v4252, 32
  %v4255 = vpop.permute.xlu0 %4254
  %v4257 = vsel %vm64, %v4255, %v4246
  %v4259 = vsel %vm211, %v4257, 0
  %4261 = vmatprep.subr.mxu0 0.0
  %4262 = vmatpush1.msra.mxu0 %v28
  %4263 = vmatprep.subr.mxu0 0.0
  %4264 = vmatpush1.msra.mxu0 %v29
  %4265 = vmatprep.subr.mxu0 0.0
  %4266 = vmatpush1.msra.mxu0 %v30
  %4267 = vmatprep.subr.mxu0 0.0
  %4268 = vmatpush1.msra.mxu0 %v31
  %4269 = vmatprep.subr.mxu0 0.0
  %4270 = vmatpush1.msra.mxu0 %v32
  %4271 = vmatprep.subr.mxu0 0.0
  %4272 = vmatpush1.msra.mxu0 %v33
  %4273 = vmatprep.subr.mxu0 0.0
  %4274 = vmatpush1.msra.mxu0 %v34
  %4275 = vmatprep.subr.mxu0 0.0
  %4276 = vmatpush1.msra.mxu0 %v35
  %4277 = vmatprep.subr.mxu0 0.0
  %4278 = vmatpush1.msra.mxu0 0.0
  %4279 = vmatprep.subr.mxu0 0.0
  %4280 = vmatpush1.msra.mxu0 0.0
  %4281 = vmatprep.subr.mxu0 0.0
  %4282 = vmatpush1.msra.mxu0 0.0
  %4283 = vmatprep.subr.mxu0 0.0
  %4284 = vmatpush1.msra.mxu0 0.0
  %4285 = vmatprep.subr.mxu0 0.0
  %4286 = vmatpush1.msra.mxu0 0.0
  %4287 = vmatprep.subr.mxu0 0.0
  %4288 = vmatpush1.msra.mxu0 0.0
  %4289 = vmatprep.subr.mxu0 0.0
  %4290 = vmatpush1.msra.mxu0 0.0
  %4291 = vmatprep.subr.mxu0 0.0
  %4292 = vmatpush1.msra.mxu0 0.0
  %4293 = vmatprep.subr.mxu0 0.0
  %4294 = vmatpush1.msra.mxu0 0.0
  %4295 = vmatprep.subr.mxu0 0.0
  %4296 = vmatpush1.msra.mxu0 0.0
  %4297 = vmatprep.subr.mxu0 0.0
  %4298 = vmatpush1.msra.mxu0 0.0
  %4299 = vmatprep.subr.mxu0 0.0
  %4300 = vmatpush1.msra.mxu0 0.0
  %4301 = vmatprep.subr.mxu0 0.0
  %4302 = vmatpush1.msra.mxu0 0.0
  %4303 = vmatprep.subr.mxu0 0.0
  %4304 = vmatpush1.msra.mxu0 0.0
  %4305 = vmatprep.subr.mxu0 0.0
  %4306 = vmatpush1.msra.mxu0 0.0
  %4307 = vmatprep.subr.mxu0 0.0
  %4308 = vmatpush1.msra.mxu0 0.0
  %4309 = vmatprep.subr.mxu0 0.0
  %4310 = vmatpush1.msra.mxu0 0.0
  %4311 = vmatprep.subr.mxu0 0.0
  %4312 = vmatpush1.msra.mxu0 0.0
  %4313 = vmatprep.subr.mxu0 0.0
  %4314 = vmatpush1.msra.mxu0 0.0
  %4315 = vmatprep.subr.mxu0 0.0
  %4316 = vmatpush1.msra.mxu0 0.0
  %4317 = vmatprep.subr.mxu0 0.0
  %4318 = vmatpush1.msra.mxu0 0.0
  %4319 = vmatprep.subr.mxu0 0.0
  %4320 = vmatpush1.msra.mxu0 0.0
  %4321 = vmatprep.subr.mxu0 0.0
  %4322 = vmatpush1.msra.mxu0 0.0
  %4323 = vmatprep.subr.mxu0 0.0
  %4324 = vmatpush1.msra.mxu0 0.0
  %4325 = vmatprep.mubr.f32.mxu0 0.0
  %4326 = vmatmul.mubr.f32.gmra.mrb[0].mxu0 %v4259
  %v4327 = vpop.f32.mrb[0].mxu0
  %v4328 = vadd.f32 0.0, %v4327
  %v4329 = vpop.f32.mrb[0].mxu0
  %4330 = vdwg.mxu0
  %v4332 = vcombine.high %v4328, %v4328
  %v4334 = vunpack.c.l.s4 1966171168
  %v4335 = vunpack.c.0.s8 %v4334
  %v4336 = vlaneseq
  %v4337 = vshrl.u32 %v4336, 7
  %v4338 = vsub.s32 %v4335, %v4337
  %v4339 = vrot.slane %v4328, %v4338
  %v4341 = vunpack.c.l.s4 1966171168
  %v4342 = vunpack.c.0.s8 %v4341
  %v4343 = vlaneseq
  %v4344 = vshrl.u32 %v4343, 7
  %v4345 = vsub.s32 %v4342, %v4344
  %v4346 = vrot.slane %v4332, %v4345
  %v4347 = vcombine.high %v4339, %v4339
  %v4348 = vcombine.high %v4346, %v4346
  %v4350 = vunpack.c.l.s4 1966171168
  %v4351 = vunpack.c.0.s8 %v4350
  %v4352 = vlaneseq
  %v4353 = vshrl.u32 %v4352, 7
  %v4354 = vsub.s32 %v4351, %v4353
  %v4355 = vrot.slane %v4339, %v4354
  %v4357 = vunpack.c.l.s4 1966171168
  %v4358 = vunpack.c.0.s8 %v4357
  %v4359 = vlaneseq
  %v4360 = vshrl.u32 %v4359, 7
  %v4361 = vsub.s32 %v4358, %v4360
  %v4362 = vrot.slane %v4346, %v4361
  %v4364 = vunpack.c.l.s4 1966171168
  %v4365 = vunpack.c.0.s8 %v4364
  %v4366 = vlaneseq
  %v4367 = vshrl.u32 %v4366, 7
  %v4368 = vsub.s32 %v4365, %v4367
  %v4369 = vrot.slane %v4347, %v4368
  %v4371 = vunpack.c.l.s4 1966171168
  %v4372 = vunpack.c.0.s8 %v4371
  %v4373 = vlaneseq
  %v4374 = vshrl.u32 %v4373, 7
  %v4375 = vsub.s32 %v4372, %v4374
  %v4376 = vrot.slane %v4348, %v4375
  %v4377 = vcombine.high %v4355, %v4355
  %v4378 = vcombine.high %v4362, %v4362
  %v4379 = vcombine.high %v4369, %v4369
  %v4380 = vcombine.high %v4376, %v4376
  %v4381 = vlaneseq
  %v4382 = vshrl.u32 %v4381, 7
  %v4383 = vsub.s32 0, %v4382
  %v4384 = vrot.slane %v4355, %v4383
  %v4385 = vlaneseq
  %v4386 = vshrl.u32 %v4385, 7
  %v4387 = vsub.s32 0, %v4386
  %v4388 = vrot.slane %v4369, %v4387
  %v4389 = vlaneseq
  %v4390 = vshrl.u32 %v4389, 7
  %v4391 = vsub.s32 0, %v4390
  %v4392 = vrot.slane %v4377, %v4391
  %v4393 = vlaneseq
  %v4394 = vshrl.u32 %v4393, 7
  %v4395 = vsub.s32 0, %v4394
  %v4396 = vrot.slane %v4379, %v4395
  %v4397 = vlaneseq
  %v4398 = vshrl.u32 %v4397, 7
  %v4399 = vsub.s32 0, %v4398
  %v4400 = vrot.slane %v4362, %v4399
  %v4401 = vlaneseq
  %v4402 = vshrl.u32 %v4401, 7
  %v4403 = vsub.s32 0, %v4402
  %v4404 = vrot.slane %v4376, %v4403
  %v4405 = vlaneseq
  %v4406 = vshrl.u32 %v4405, 7
  %v4407 = vsub.s32 0, %v4406
  %v4408 = vrot.slane %v4378, %v4407
  %v4409 = vlaneseq
  %v4410 = vshrl.u32 %v4409, 7
  %v4411 = vsub.s32 0, %v4410
  %v4412 = vrot.slane %v4380, %v4411
  %v4421 = vadd.f32 %v156, %v4384
  %v4422 = vadd.f32 %v161, %v4388
  %v4423 = vadd.f32 %v166, %v4392
  %v4424 = vadd.f32 %v171, %v4396
  %v4425 = vadd.f32 %v176, %v4400
  %v4426 = vadd.f32 %v181, %v4404
  %v4427 = vadd.f32 %v186, %v4408
  %v4428 = vadd.f32 %v191, %v4412
  %v4429 = vtanh.pop %v4421
  %v4430 = vtanh.pop %v4422
  %v4431 = vtanh.pop %v4423
  %v4432 = vtanh.pop %v4424
  %v4433 = vtanh.pop %v4425
  %v4434 = vtanh.pop %v4426
  %v4435 = vtanh.pop %v4427
  %v4436 = vtanh.pop %v4428
  %v4437 = vmul.f32 %v4429, %v394
  %v4438 = vmul.f32 %v4430, %v394
  %v4439 = vmul.f32 %v4431, %v394
  %v4440 = vmul.f32 %v4432, %v394
  %v4441 = vmul.f32 %v4433, %v394
  %v4442 = vmul.f32 %v4434, %v394
  %v4443 = vmul.f32 %v4435, %v394
  %v4444 = vmul.f32 %v4436, %v394
  %v4445 = vsel %vm64, %v4437, 0.0
  %4446 = vadd.xlane.f32.xlu0 %v4445
  %v4447 = vpop.xlane.xlu0 %4446
  %v4448 = vsel %vm64, %v4438, 0.0
  %4449 = vadd.xlane.f32.xlu0 %v4448
  %v4450 = vpop.xlane.xlu0 %4449
  %v4451 = vsel %vm64, %v4439, 0.0
  %4452 = vadd.xlane.f32.xlu0 %v4451
  %v4453 = vpop.xlane.xlu0 %4452
  %v4454 = vsel %vm64, %v4440, 0.0
  %4455 = vadd.xlane.f32.xlu0 %v4454
  %v4456 = vpop.xlane.xlu0 %4455
  %v4457 = vsel %vm64, %v4441, 0.0
  %4458 = vadd.xlane.f32.xlu0 %v4457
  %v4459 = vpop.xlane.xlu0 %4458
  %v4460 = vsel %vm64, %v4442, 0.0
  %4461 = vadd.xlane.f32.xlu0 %v4460
  %v4462 = vpop.xlane.xlu0 %4461
  %v4463 = vsel %vm64, %v4443, 0.0
  %4464 = vadd.xlane.f32.xlu0 %v4463
  %v4465 = vpop.xlane.xlu0 %4464
  %v4466 = vsel %vm64, %v4444, 0.0
  %4467 = vadd.xlane.f32.xlu0 %v4466
  %v4468 = vpop.xlane.xlu0 %4467
  %v4469 = vrot.slane %v4447, 4
  %v4470 = vmax.f32 %v4447, %v4469
  %v4471 = vrot.slane %v4470, 2
  %v4472 = vmax.f32 %v4470, %v4471
  %v4473 = vrot.slane %v4472, 1
  %v4474 = vmax.f32 %v4472, %v4473
  %v4475 = vrot.slane %v4450, 4
  %v4476 = vmax.f32 %v4450, %v4475
  %v4477 = vrot.slane %v4476, 2
  %v4478 = vmax.f32 %v4476, %v4477
  %v4479 = vrot.slane %v4478, 1
  %v4480 = vmax.f32 %v4478, %v4479
  %v4481 = vrot.slane %v4453, 4
  %v4482 = vmax.f32 %v4453, %v4481
  %v4483 = vrot.slane %v4482, 2
  %v4484 = vmax.f32 %v4482, %v4483
  %v4485 = vrot.slane %v4484, 1
  %v4486 = vmax.f32 %v4484, %v4485
  %v4487 = vrot.slane %v4456, 4
  %v4488 = vmax.f32 %v4456, %v4487
  %v4489 = vrot.slane %v4488, 2
  %v4490 = vmax.f32 %v4488, %v4489
  %v4491 = vrot.slane %v4490, 1
  %v4492 = vmax.f32 %v4490, %v4491
  %v4493 = vrot.slane %v4459, 4
  %v4494 = vmax.f32 %v4459, %v4493
  %v4495 = vrot.slane %v4494, 2
  %v4496 = vmax.f32 %v4494, %v4495
  %v4497 = vrot.slane %v4496, 1
  %v4498 = vmax.f32 %v4496, %v4497
  %v4499 = vrot.slane %v4462, 4
  %v4500 = vmax.f32 %v4462, %v4499
  %v4501 = vrot.slane %v4500, 2
  %v4502 = vmax.f32 %v4500, %v4501
  %v4503 = vrot.slane %v4502, 1
  %v4504 = vmax.f32 %v4502, %v4503
  %v4505 = vrot.slane %v4465, 4
  %v4506 = vmax.f32 %v4465, %v4505
  %v4507 = vrot.slane %v4506, 2
  %v4508 = vmax.f32 %v4506, %v4507
  %v4509 = vrot.slane %v4508, 1
  %v4510 = vmax.f32 %v4508, %v4509
  %v4511 = vrot.slane %v4468, 4
  %v4512 = vmax.f32 %v4468, %v4511
  %v4513 = vrot.slane %v4512, 2
  %v4514 = vmax.f32 %v4512, %v4513
  %v4515 = vrot.slane %v4514, 1
  %v4516 = vmax.f32 %v4514, %v4515
  %v4517 = vsub.f32 %v4447, %v4474
  %v4518 = vsub.f32 %v4450, %v4480
  %v4519 = vsub.f32 %v4453, %v4486
  %v4520 = vsub.f32 %v4456, %v4492
  %v4521 = vsub.f32 %v4459, %v4498
  %v4522 = vsub.f32 %v4462, %v4504
  %v4523 = vsub.f32 %v4465, %v4510
  %v4524 = vsub.f32 %v4468, %v4516
  %v4525 = vmul.f32 %v4517, 1.442695
  %v4526 = vpow.pop %v4525
  %v4527 = vmul.f32 %v4518, 1.442695
  %v4528 = vpow.pop %v4527
  %v4529 = vmul.f32 %v4519, 1.442695
  %v4530 = vpow.pop %v4529
  %v4531 = vmul.f32 %v4520, 1.442695
  %v4532 = vpow.pop %v4531
  %v4533 = vmul.f32 %v4521, 1.442695
  %v4534 = vpow.pop %v4533
  %v4535 = vmul.f32 %v4522, 1.442695
  %v4536 = vpow.pop %v4535
  %v4537 = vmul.f32 %v4523, 1.442695
  %v4538 = vpow.pop %v4537
  %v4539 = vmul.f32 %v4524, 1.442695
  %v4540 = vpow.pop %v4539
  %v4541 = vrot.slane %v4526, 4
  %v4542 = vadd.f32 %v4526, %v4541
  %v4543 = vrot.slane %v4542, 2
  %v4544 = vadd.f32 %v4542, %v4543
  %v4545 = vrot.slane %v4544, 1
  %v4546 = vadd.f32 %v4544, %v4545
  %v4547 = vrot.slane %v4528, 4
  %v4548 = vadd.f32 %v4528, %v4547
  %v4549 = vrot.slane %v4548, 2
  %v4550 = vadd.f32 %v4548, %v4549
  %v4551 = vrot.slane %v4550, 1
  %v4552 = vadd.f32 %v4550, %v4551
  %v4553 = vrot.slane %v4530, 4
  %v4554 = vadd.f32 %v4530, %v4553
  %v4555 = vrot.slane %v4554, 2
  %v4556 = vadd.f32 %v4554, %v4555
  %v4557 = vrot.slane %v4556, 1
  %v4558 = vadd.f32 %v4556, %v4557
  %v4559 = vrot.slane %v4532, 4
  %v4560 = vadd.f32 %v4532, %v4559
  %v4561 = vrot.slane %v4560, 2
  %v4562 = vadd.f32 %v4560, %v4561
  %v4563 = vrot.slane %v4562, 1
  %v4564 = vadd.f32 %v4562, %v4563
  %v4565 = vrot.slane %v4534, 4
  %v4566 = vadd.f32 %v4534, %v4565
  %v4567 = vrot.slane %v4566, 2
  %v4568 = vadd.f32 %v4566, %v4567
  %v4569 = vrot.slane %v4568, 1
  %v4570 = vadd.f32 %v4568, %v4569
  %v4571 = vrot.slane %v4536, 4
  %v4572 = vadd.f32 %v4536, %v4571
  %v4573 = vrot.slane %v4572, 2
  %v4574 = vadd.f32 %v4572, %v4573
  %v4575 = vrot.slane %v4574, 1
  %v4576 = vadd.f32 %v4574, %v4575
  %v4577 = vrot.slane %v4538, 4
  %v4578 = vadd.f32 %v4538, %v4577
  %v4579 = vrot.slane %v4578, 2
  %v4580 = vadd.f32 %v4578, %v4579
  %v4581 = vrot.slane %v4580, 1
  %v4582 = vadd.f32 %v4580, %v4581
  %v4583 = vrot.slane %v4540, 4
  %v4584 = vadd.f32 %v4540, %v4583
  %v4585 = vrot.slane %v4584, 2
  %v4586 = vadd.f32 %v4584, %v4585
  %v4587 = vrot.slane %v4586, 1
  %v4588 = vadd.f32 %v4586, %v4587
  %v4589 = vrcp.pop %v4546
  %v4590 = vrcp.pop %v4552
  %v4591 = vrcp.pop %v4558
  %v4592 = vrcp.pop %v4564
  %v4593 = vrcp.pop %v4570
  %v4594 = vrcp.pop %v4576
  %v4595 = vrcp.pop %v4582
  %v4596 = vrcp.pop %v4588
  %v4597 = vmul.f32 %v4546, %v4589
  %v4598 = vmul.f32 %v4552, %v4590
  %v4599 = vmul.f32 %v4558, %v4591
  %v4600 = vmul.f32 %v4564, %v4592
  %v4601 = vmul.f32 %v4570, %v4593
  %v4602 = vmul.f32 %v4576, %v4594
  %v4603 = vmul.f32 %v4582, %v4595
  %v4604 = vmul.f32 %v4588, %v4596
  %v4605 = vsub.f32 2.0, %v4597
  %v4606 = vsub.f32 2.0, %v4598
  %v4607 = vsub.f32 2.0, %v4599
  %v4608 = vsub.f32 2.0, %v4600
  %v4609 = vsub.f32 2.0, %v4601
  %v4610 = vsub.f32 2.0, %v4602
  %v4611 = vsub.f32 2.0, %v4603
  %v4612 = vsub.f32 2.0, %v4604
  %v4613 = vmul.f32 %v4589, %v4605
  %v4614 = vmul.f32 %v4590, %v4606
  %v4615 = vmul.f32 %v4591, %v4607
  %v4616 = vmul.f32 %v4592, %v4608
  %v4617 = vmul.f32 %v4593, %v4609
  %v4618 = vmul.f32 %v4594, %v4610
  %v4619 = vmul.f32 %v4595, %v4611
  %v4620 = vmul.f32 %v4596, %v4612
  %v4621 = vmul.f32 %v4526, %v4613
  %v4622 = vmul.f32 %v4528, %v4614
  %v4623 = vmul.f32 %v4530, %v4615
  %v4624 = vmul.f32 %v4532, %v4616
  %v4625 = vmul.f32 %v4534, %v4617
  %v4626 = vmul.f32 %v4536, %v4618
  %v4627 = vmul.f32 %v4538, %v4619
  %v4628 = vmul.f32 %v4540, %v4620
  %v4629 = vmul.f32 %v4621, %v20
  %v4630 = vmul.f32 %v4622, %v21
  %v4631 = vmul.f32 %v4623, %v22
  %v4632 = vmul.f32 %v4624, %v23
  %v4633 = vmul.f32 %v4625, %v24
  %v4634 = vmul.f32 %v4626, %v25
  %v4635 = vmul.f32 %v4627, %v26
  %v4636 = vmul.f32 %v4628, %v27
  %v4637 = vsel %vm64, %v4629, 0.0
  %v4638 = vrot.slane %v4637, 4
  %v4639 = vadd.f32 %v4637, %v4638
  %v4640 = vrot.slane %v4639, 2
  %v4641 = vadd.f32 %v4639, %v4640
  %v4642 = vrot.slane %v4641, 1
  %v4643 = vadd.f32 %v4641, %v4642
  %v4644 = vsel %vm64, %v4630, 0.0
  %v4645 = vrot.slane %v4644, 4
  %v4646 = vadd.f32 %v4644, %v4645
  %v4647 = vrot.slane %v4646, 2
  %v4648 = vadd.f32 %v4646, %v4647
  %v4649 = vrot.slane %v4648, 1
  %v4650 = vadd.f32 %v4648, %v4649
  %v4651 = vsel %vm64, %v4631, 0.0
  %v4652 = vrot.slane %v4651, 4
  %v4653 = vadd.f32 %v4651, %v4652
  %v4654 = vrot.slane %v4653, 2
  %v4655 = vadd.f32 %v4653, %v4654
  %v4656 = vrot.slane %v4655, 1
  %v4657 = vadd.f32 %v4655, %v4656
  %v4658 = vsel %vm64, %v4632, 0.0
  %v4659 = vrot.slane %v4658, 4
  %v4660 = vadd.f32 %v4658, %v4659
  %v4661 = vrot.slane %v4660, 2
  %v4662 = vadd.f32 %v4660, %v4661
  %v4663 = vrot.slane %v4662, 1
  %v4664 = vadd.f32 %v4662, %v4663
  %v4665 = vsel %vm64, %v4633, 0.0
  %v4666 = vrot.slane %v4665, 4
  %v4667 = vadd.f32 %v4665, %v4666
  %v4668 = vrot.slane %v4667, 2
  %v4669 = vadd.f32 %v4667, %v4668
  %v4670 = vrot.slane %v4669, 1
  %v4671 = vadd.f32 %v4669, %v4670
  %v4672 = vsel %vm64, %v4634, 0.0
  %v4673 = vrot.slane %v4672, 4
  %v4674 = vadd.f32 %v4672, %v4673
  %v4675 = vrot.slane %v4674, 2
  %v4676 = vadd.f32 %v4674, %v4675
  %v4677 = vrot.slane %v4676, 1
  %v4678 = vadd.f32 %v4676, %v4677
  %v4679 = vsel %vm64, %v4635, 0.0
  %v4680 = vrot.slane %v4679, 4
  %v4681 = vadd.f32 %v4679, %v4680
  %v4682 = vrot.slane %v4681, 2
  %v4683 = vadd.f32 %v4681, %v4682
  %v4684 = vrot.slane %v4683, 1
  %v4685 = vadd.f32 %v4683, %v4684
  %v4686 = vsel %vm64, %v4636, 0.0
  %v4687 = vrot.slane %v4686, 4
  %v4688 = vadd.f32 %v4686, %v4687
  %v4689 = vrot.slane %v4688, 2
  %v4690 = vadd.f32 %v4688, %v4689
  %v4691 = vrot.slane %v4690, 1
  %v4692 = vadd.f32 %v4690, %v4691
  %v4701 = vsel %vm659, %v4650, %v4643
  %v4702 = vsel %vm661, %v4657, %v4701
  %v4703 = vsel %vm663, %v4664, %v4702
  %v4704 = vsel %vm665, %v4671, %v4703
  %v4705 = vsel %vm667, %v4678, %v4704
  %v4706 = vsel %vm669, %v4685, %v4705
  %v4707 = vsel %vm671, %v4692, %v4706
  %4709 = vrot.lane.b32.xlu0 %v4252, 64
  %v4710 = vpop.permute.xlu0 %4709
  %v4712 = vrot.slane %v203, 7
  %v4713 = vrot.slane %v204, 6
  %v4714 = vsel %vm659, %v4713, %v4712
  %v4715 = vrot.slane %v205, 5
  %v4716 = vsel %vm661, %v4715, %v4714
  %v4717 = vrot.slane %v206, 4
  %v4718 = vsel %vm663, %v4717, %v4716
  %v4719 = vrot.slane %v207, 3
  %v4720 = vsel %vm665, %v4719, %v4718
  %v4721 = vrot.slane %v208, 2
  %v4722 = vsel %vm667, %v4721, %v4720
  %v4723 = vrot.slane %v209, 1
  %v4724 = vsel %vm669, %v4723, %v4722
  %v4725 = vsel %vm671, %v210, %v4724
  %4726 = vrot.lane.b32.xlu0 %v4725, 64
  %v4727 = vpop.permute.xlu0 %4726
  %v4729 = vsel %vm64, %v4707, %v4710
  %v4730 = vsel %vm211, %v4729, %v4727
  %v4732 = vsel %vm701, %v4730, 0
  %4734 = vmatprep.subr.mxu0 0.0
  %4735 = vmatpush1.msra.mxu0 %v42
  %4736 = vmatprep.subr.mxu0 0.0
  %4737 = vmatpush1.msra.mxu0 %v43
  %4738 = vmatprep.subr.mxu0 0.0
  %4739 = vmatpush1.msra.mxu0 %v44
  %4740 = vmatprep.subr.mxu0 0.0
  %4741 = vmatpush1.msra.mxu0 %v45
  %4742 = vmatprep.subr.mxu0 0.0
  %4743 = vmatpush1.msra.mxu0 %v46
  %4744 = vmatprep.subr.mxu0 0.0
  %4745 = vmatpush1.msra.mxu0 %v47
  %4746 = vmatprep.subr.mxu0 0.0
  %4747 = vmatpush1.msra.mxu0 %v48
  %4748 = vmatprep.subr.mxu0 0.0
  %4749 = vmatpush1.msra.mxu0 %v49
  %4750 = vmatprep.subr.mxu0 0.0
  %4751 = vmatpush1.msra.mxu0 %v707
  %4752 = vmatprep.subr.mxu0 0.0
  %4753 = vmatpush1.msra.mxu0 0.0
  %4754 = vmatprep.subr.mxu0 0.0
  %4755 = vmatpush1.msra.mxu0 0.0
  %4756 = vmatprep.subr.mxu0 0.0
  %4757 = vmatpush1.msra.mxu0 0.0
  %4758 = vmatprep.subr.mxu0 0.0
  %4759 = vmatpush1.msra.mxu0 0.0
  %4760 = vmatprep.subr.mxu0 0.0
  %4761 = vmatpush1.msra.mxu0 0.0
  %4762 = vmatprep.subr.mxu0 0.0
  %4763 = vmatpush1.msra.mxu0 0.0
  %4764 = vmatprep.subr.mxu0 0.0
  %4765 = vmatpush1.msra.mxu0 0.0
  %4766 = vmatprep.subr.mxu0 0.0
  %4767 = vmatpush1.msra.mxu0 0.0
  %4768 = vmatprep.subr.mxu0 0.0
  %4769 = vmatpush1.msra.mxu0 0.0
  %4770 = vmatprep.subr.mxu0 0.0
  %4771 = vmatpush1.msra.mxu0 0.0
  %4772 = vmatprep.subr.mxu0 0.0
  %4773 = vmatpush1.msra.mxu0 0.0
  %4774 = vmatprep.subr.mxu0 0.0
  %4775 = vmatpush1.msra.mxu0 0.0
  %4776 = vmatprep.subr.mxu0 0.0
  %4777 = vmatpush1.msra.mxu0 0.0
  %4778 = vmatprep.subr.mxu0 0.0
  %4779 = vmatpush1.msra.mxu0 0.0
  %4780 = vmatprep.subr.mxu0 0.0
  %4781 = vmatpush1.msra.mxu0 0.0
  %4782 = vmatprep.subr.mxu0 0.0
  %4783 = vmatpush1.msra.mxu0 0.0
  %4784 = vmatprep.subr.mxu0 0.0
  %4785 = vmatpush1.msra.mxu0 0.0
  %4786 = vmatprep.subr.mxu0 0.0
  %4787 = vmatpush1.msra.mxu0 0.0
  %4788 = vmatprep.subr.mxu0 0.0
  %4789 = vmatpush1.msra.mxu0 0.0
  %4790 = vmatprep.subr.mxu0 0.0
  %4791 = vmatpush1.msra.mxu0 0.0
  %4792 = vmatprep.subr.mxu0 0.0
  %4793 = vmatpush1.msra.mxu0 0.0
  %4794 = vmatprep.subr.mxu0 0.0
  %4795 = vmatpush1.msra.mxu0 0.0
  %4796 = vmatprep.subr.mxu0 0.0
  %4797 = vmatpush1.msra.mxu0 0.0
  %4798 = vmatprep.mubr.f32.mxu0 0.0
  %4799 = vmatmul.mubr.f32.gmra.mrb[0].mxu0 %v4732
  %v4800 = vpop.f32.mrb[0].mxu0
  %v4801 = vadd.f32 0.0, %v4800
  %v4802 = vpop.f32.mrb[0].mxu0
  %4803 = vdwg.mxu0
  %v4804 = vxor.u32 %v4801, 2147483648
  %v4805 = vmul.f32 %v4804, 1.442695
  %v4806 = vpow.pop %v4805
  %v4807 = vadd.f32 %v4806, 1.0
  %v4808 = vrcp.pop %v4807
  %v4809 = vmul.f32 1.0, %v4808
  %v4810 = vtanh.pop %v4801
  %v4811 = vmul.f32 %v4809, %v4246
  %4813 = vrot.lane.b32.xlu0 %v4810, 64
  %v4814 = vpop.permute.xlu0 %4813
  %v4816 = vmul.f32 %v4809, %v4814
  %4818 = vrot.lane.b32.xlu0 %v4816, 32
  %v4819 = vpop.permute.xlu0 %4818
  %v4821 = vadd.f32 %v4811, %v4819
  %v4822 = vtanh.pop %v4821
  %4824 = vrot.lane.b32.xlu0 %v4822, 64
  %v4825 = vpop.permute.xlu0 %4824
  %v4827 = vmul.f32 %v4809, %v4825
  %4829 = vrot.lane.b32.xlu0 %v4827, 32
  %v4830 = vpop.permute.xlu0 %4829
  %4832 = vrot.lane.b32.xlu0 %v4707, 32
  %v4833 = vpop.permute.xlu0 %4832
  %v4835 = vsel %vm64, %v4830, %v4833
  %v4836 = vlaneseq
  %v4837 = vshrl.u32 %v4836, 7
  %v4838 = vsub.s32 0, %v4837
  %v4839 = vrot.slane %v59, %v4838
  %v4841 = vsel %vm211, %v4835, 0
  %4843 = vmatprep.subr.mxu0 0.0
  %4844 = vmatpush1.msra.mxu0 %v51
  %4845 = vmatprep.subr.mxu0 0.0
  %4846 = vmatpush1.msra.mxu0 %v52
  %4847 = vmatprep.subr.mxu0 0.0
  %4848 = vmatpush1.msra.mxu0 %v53
  %4849 = vmatprep.subr.mxu0 0.0
  %4850 = vmatpush1.msra.mxu0 %v54
  %4851 = vmatprep.subr.mxu0 0.0
  %4852 = vmatpush1.msra.mxu0 %v55
  %4853 = vmatprep.subr.mxu0 0.0
  %4854 = vmatpush1.msra.mxu0 %v56
  %4855 = vmatprep.subr.mxu0 0.0
  %4856 = vmatpush1.msra.mxu0 %v57
  %4857 = vmatprep.subr.mxu0 0.0
  %4858 = vmatpush1.msra.mxu0 %v58
  %4859 = vmatprep.subr.mxu0 0.0
  %4860 = vmatpush1.msra.mxu0 0.0
  %4861 = vmatprep.subr.mxu0 0.0
  %4862 = vmatpush1.msra.mxu0 0.0
  %4863 = vmatprep.subr.mxu0 0.0
  %4864 = vmatpush1.msra.mxu0 0.0
  %4865 = vmatprep.subr.mxu0 0.0
  %4866 = vmatpush1.msra.mxu0 0.0
  %4867 = vmatprep.subr.mxu0 0.0
  %4868 = vmatpush1.msra.mxu0 0.0
  %4869 = vmatprep.subr.mxu0 0.0
  %4870 = vmatpush1.msra.mxu0 0.0
  %4871 = vmatprep.subr.mxu0 0.0
  %4872 = vmatpush1.msra.mxu0 0.0
  %4873 = vmatprep.subr.mxu0 0.0
  %4874 = vmatpush1.msra.mxu0 0.0
  %4875 = vmatprep.subr.mxu0 0.0
  %4876 = vmatpush1.msra.mxu0 0.0
  %4877 = vmatprep.subr.mxu0 0.0
  %4878 = vmatpush1.msra.mxu0 0.0
  %4879 = vmatprep.subr.mxu0 0.0
  %4880 = vmatpush1.msra.mxu0 0.0
  %4881 = vmatprep.subr.mxu0 0.0
  %4882 = vmatpush1.msra.mxu0 0.0
  %4883 = vmatprep.subr.mxu0 0.0
  %4884 = vmatpush1.msra.mxu0 0.0
  %4885 = vmatprep.subr.mxu0 0.0
  %4886 = vmatpush1.msra.mxu0 0.0
  %4887 = vmatprep.subr.mxu0 0.0
  %4888 = vmatpush1.msra.mxu0 0.0
  %4889 = vmatprep.subr.mxu0 0.0
  %4890 = vmatpush1.msra.mxu0 0.0
  %4891 = vmatprep.subr.mxu0 0.0
  %4892 = vmatpush1.msra.mxu0 0.0
  %4893 = vmatprep.subr.mxu0 0.0
  %4894 = vmatpush1.msra.mxu0 0.0
  %4895 = vmatprep.subr.mxu0 0.0
  %4896 = vmatpush1.msra.mxu0 0.0
  %4897 = vmatprep.subr.mxu0 0.0
  %4898 = vmatpush1.msra.mxu0 0.0
  %4899 = vmatprep.subr.mxu0 0.0
  %4900 = vmatpush1.msra.mxu0 0.0
  %4901 = vmatprep.subr.mxu0 0.0
  %4902 = vmatpush1.msra.mxu0 0.0
  %4903 = vmatprep.subr.mxu0 0.0
  %4904 = vmatpush1.msra.mxu0 0.0
  %4905 = vmatprep.subr.mxu0 0.0
  %4906 = vmatpush1.msra.mxu0 0.0
  %4907 = vmatprep.mubr.f32.mxu0 0.0
  %4908 = vmatmul.mubr.f32.gmra.mrb[0].mxu0 %v4841
  %v4909 = vpop.f32.mrb[0].mxu0
  %v4910 = vadd.f32 %v4839, %v4909
  %v4911 = vpop.f32.mrb[0].mxu0
  %4912 = vdwg.mxu0
  %4913 = vst.msk [vmem:[%s5] sm:$0xff] %vm202, %v4910
  // Predicated region
  $region22: #{tpu_custom_call.1} parent=0 // pred_check
    _
  $region23: #{tpu_custom_call.1} parent=0 // pred_check_branch
    %4915 = sbr.rel (0) target = $region25
  $region24: #{tpu_custom_call.1} parent=0 // pred_region
    _
  $region25: #{tpu_custom_call.1} parent=0 // pred_fallthru
    _
  // Predicated region
  $region26: #{tpu_custom_call.1} parent=0 // pred_check
    _
  $region27: #{tpu_custom_call.1} parent=0 // pred_check_branch
    %4917 = sbr.rel (0) target = $region29
  $region28: #{tpu_custom_call.1} parent=0 // pred_region
    _
  $region29: #{tpu_custom_call.1} parent=0 // pred_fallthru
    _

</llo_original>
